<compile_context>
chip_gen: v6e
topology: v6e:2x2x1
jax: 0.10.0
libtpu: 0.0.40
codegen_flags: <defaults>
</compile_context>

<pallas_src>
import functools

import jax
import jax.numpy as jnp
from jax import lax
from jax.experimental import pallas as pl
from jax.experimental.pallas import tpu as pltpu


def _conv_bn_relu_kernel(x_ref, w_ref, shift_ref, o_ref, *, H, W, KH, KW):
    """One batch element: 3x3 conv (stride 1, pad 1) + folded BN + ReLU.

    x_ref:     (H+2, W+2, C_in_pad)            bf16  halo-padded input
    w_ref:     (KH, KW, C_in_pad, C_out_pad)   bf16  BN-scale-folded weights
    shift_ref: (1, C_out_pad)                  f32   folded conv-bias + BN shift
    o_ref:     (H*W, C_out_pad)                f32   output (also accumulator)
    """
    first = True
    for kh in range(KH):
        for kw in range(KW):
            # Shifted window of the padded input (static slices, stays in VMEM).
            x_sub = x_ref[kh:kh + H, kw:kw + W, :]          # (H, W, C_in_pad)
            x2d = x_sub.reshape(H * W, x_sub.shape[-1])     # (H*W, C_in_pad)
            contrib = jnp.dot(x2d, w_ref[kh, kw],           # MXU, bf16 x bf16
                              preferred_element_type=jnp.float32)
            if first:
                o_ref[...] = contrib
                first = False
            else:
                o_ref[...] += contrib
    # Folded bias/BN shift + ReLU (f32 VPU epilogue, lane-dense store).
    o_ref[...] = jnp.maximum(o_ref[...] + shift_ref[...], 0.0)


def conv_block_forward(x, w, b, gamma, beta, running_mean, running_var,
                       *, eps=1e-5):
    """x: [N, C_in, H, W] (NCHW, like PyTorch). Returns [N, C_out, H, W] f32."""
    N, C_in, H, W = x.shape
    C_out, C_in_w, KH, KW = w.shape
    assert C_in_w == C_in
    assert KH == 3 and KW == 3, "configured for kernel_size=3, stride=1, padding=1"

    C_in_pad = max(16, -(-C_in // 16) * 16)        # bf16-friendly contraction pad
    C_out_pad = max(128, -(-C_out // 128) * 128)   # lane-dense output channels

    # --- glue: NHWC, spatial halo pad (padding=1), channel pad, bf16 ---------
    x_nhwc = jnp.transpose(x, (0, 2, 3, 1))                          # [N,H,W,C_in]
    xp = jnp.pad(x_nhwc, ((0, 0), (1, 1), (1, 1), (0, C_in_pad - C_in)))
    xp = xp.astype(jnp.bfloat16)                                     # [N,H+2,W+2,C_in_pad]

    # --- glue: fold eval-mode BN into the conv -------------------------------
    inv_std = lax.rsqrt(running_var.astype(jnp.float32) + eps)
    scale = gamma.astype(jnp.float32) * inv_std                      # [C_out]
    w_hwio = jnp.transpose(w, (2, 3, 1, 0)).astype(jnp.float32)      # [KH,KW,C_in,C_out]
    w_folded = (w_hwio * scale[None, None, None, :]).astype(jnp.bfloat16)
    w_folded = jnp.pad(w_folded, ((0, 0), (0, 0),
                                  (0, C_in_pad - C_in),
                                  (0, C_out_pad - C_out)))           # [KH,KW,Cip,Cop]
    shift = (b.astype(jnp.float32) - running_mean.astype(jnp.float32)) * scale \
            + beta.astype(jnp.float32)
    shift = jnp.pad(shift, (0, C_out_pad - C_out)).reshape(1, C_out_pad)

    kernel = functools.partial(_conv_bn_relu_kernel, H=H, W=W, KH=KH, KW=KW)

    out = pl.pallas_call(
        kernel,
        out_shape=jax.ShapeDtypeStruct((N, H * W, C_out_pad), jnp.float32),
        grid_spec=pltpu.PrefetchScalarGridSpec(
            num_scalar_prefetch=0,
            grid=(N,),
            in_specs=[
                # Whole padded image for this batch element (batch dim squeezed).
                pl.BlockSpec((None, H + 2, W + 2, C_in_pad),
                             lambda n: (n, 0, 0, 0)),
                # Full folded weight slab, resident across grid steps.
                pl.BlockSpec((KH, KW, C_in_pad, C_out_pad),
                             lambda n: (0, 0, 0, 0)),
                # Folded shift vector.
                pl.BlockSpec((1, C_out_pad), lambda n: (0, 0)),
            ],
            out_specs=pl.BlockSpec((None, H * W, C_out_pad),
                                   lambda n: (n, 0, 0)),
        ),
        compiler_params=pltpu.CompilerParams(
            dimension_semantics=("parallel",),
            vmem_limit_bytes=32 * 1024 * 1024,
        ),
    )(xp, w_folded, shift)

    out = out.reshape(N, H, W, C_out_pad)[..., :C_out]
    return jnp.transpose(out, (0, 3, 1, 2))       # back to NCHW (module semantics)


if __name__ == "__main__":
    # Small shapes consistent with the module's forward.
    N, C_in, H, W = 2, 4, 16, 16
    C_out, KH, KW = 8, 3, 3

    key = jax.random.PRNGKey(0)
    kx, kw_, kb, kg, kbe, km, kv = jax.random.split(key, 7)

    x = jax.random.normal(kx, (N, C_in, H, W), dtype=jnp.float32)
    fan_in = C_in * KH * KW
    w = jax.random.normal(kw_, (C_out, C_in, KH, KW), jnp.float32) / jnp.sqrt(fan_in)
    b = 0.1 * jax.random.normal(kb, (C_out,), jnp.float32)
    gamma = 1.0 + 0.1 * jax.random.normal(kg, (C_out,), jnp.float32)
    beta = 0.1 * jax.random.normal(kbe, (C_out,), jnp.float32)
    running_mean = 0.1 * jax.random.normal(km, (C_out,), jnp.float32)
    running_var = jnp.abs(1.0 + 0.1 * jax.random.normal(kv, (C_out,), jnp.float32))

    y = conv_block_forward(x, w, b, gamma, beta, running_mean, running_var)
    y = jax.block_until_ready(y)
    assert y.shape == (N, C_out, H, W)

    eps = 1e-5
    inv_std = 1.0 / jnp.sqrt(running_var + eps)
    scale = gamma * inv_std
    shift = (b - running_mean) * scale + beta

    # (1) Loose sanity check vs. the exact f32 module semantics (the kernel uses
    #     bf16 conv operands, so allow for bf16 quantization error).
    conv_f32 = lax.conv_general_dilated(
        x, w, window_strides=(1, 1), padding=((1, 1), (1, 1)),
        dimension_numbers=("NCHW", "OIHW", "NCHW"),
        precision=lax.Precision.HIGHEST)
    ref_f32 = jnp.maximum(conv_f32 * scale.reshape(1, C_out, 1, 1)
                          + shift.reshape(1, C_out, 1, 1), 0.0)
    assert jnp.max(jnp.abs(y - ref_f32)) < 8e-2

    # (2) Tight check vs. a reference built from the same bf16-folded operands
    #     (validates the kernel math itself).
    x_q = x.astype(jnp.bfloat16).astype(jnp.float32)
    w_q = (jnp.transpose(w, (2, 3, 1, 0)) * scale[None, None, None, :])
    w_q = w_q.astype(jnp.bfloat16).astype(jnp.float32)
    w_q = jnp.transpose(w_q, (3, 2, 0, 1))                 # back to OIHW
    conv_q = lax.conv_general_dilated(
        x_q, w_q, window_strides=(1, 1), padding=((1, 1), (1, 1)),
        dimension_numbers=("NCHW", "OIHW", "NCHW"),
        preferred_element_type=jnp.float32)
    ref_q = jnp.maximum(conv_q + shift.reshape(1, C_out, 1, 1), 0.0)
    assert jnp.max(jnp.abs(y - ref_q)) < 2e-3

    print("KERNEL_OK")
</pallas_src>

<mosaic_0001>
module attributes {stable_mosaic.version = 11 : i64} {
  func.func @_conv_bn_relu_kernel(%arg0: i32, %arg1: memref<1x18x18x16xbf16, #tpu.memory_space<vmem>>, %arg2: memref<3x3x16x128xbf16, #tpu.memory_space<vmem>>, %arg3: memref<1x128xf32, #tpu.memory_space<vmem>>, %arg4: memref<1x256x128xf32, #tpu.memory_space<vmem>>) attributes {dimension_semantics = [#tpu.dimension_semantics<parallel>], iteration_bounds = array<i64: 2>, scalar_prefetch = 0 : i64, scratch_operands = 0 : i64, tpu.core_type = #tpu.core_type<tc>, window_params = [{transform_indices = @transform_0, window_bounds = array<i64: 1, 18, 18, 16>}, {pipeline_mode = #tpu.pipeline_mode<synchronous>, transform_indices = @transform_1, window_bounds = array<i64: 3, 3, 16, 128>}, {pipeline_mode = #tpu.pipeline_mode<synchronous>, transform_indices = @transform_2, window_bounds = array<i64: 1, 128>}, {transform_indices = @transform_3, window_bounds = array<i64: 1, 256, 128>}]} {
    %c0 = arith.constant 0 : index
    %c0_0 = arith.constant 0 : index
    %c0_1 = arith.constant 0 : index
    %c0_2 = arith.constant 0 : index
    %0 = vector.load %arg1[%c0, %c0_0, %c0_1, %c0_2] : memref<1x18x18x16xbf16, #tpu.memory_space<vmem>>, vector<1x16x16x16xbf16>
    %1 = vector.shape_cast %0 : vector<1x16x16x16xbf16> to vector<16x16x16xbf16>
    %2 = vector.shape_cast %1 : vector<16x16x16xbf16> to vector<256x16xbf16>
    %c0_3 = arith.constant 0 : index
    %c0_4 = arith.constant 0 : index
    %c0_5 = arith.constant 0 : index
    %c0_6 = arith.constant 0 : index
    %3 = vector.load %arg2[%c0_3, %c0_4, %c0_5, %c0_6] : memref<3x3x16x128xbf16, #tpu.memory_space<vmem>>, vector<1x1x16x128xbf16>
    %4 = vector.shape_cast %3 : vector<1x1x16x128xbf16> to vector<16x128xbf16>
    %cst = arith.constant dense<0.000000e+00> : vector<256x128xf32>
    %5 = tpu.matmul %2, %4, %cst {dimension_numbers = #tpu.dot_dimension_numbers<[1], [0], [0], [1], [0, 0, 1, 1], [], []>} : vector<256x16xbf16>, vector<16x128xbf16>, vector<256x128xf32> -> vector<256x128xf32>
    %c0_7 = arith.constant 0 : index
    %c0_8 = arith.constant 0 : index
    %c0_9 = arith.constant 0 : index
    %6 = vector.load %arg4[%c0_7, %c0_8, %c0_9] : memref<1x256x128xf32, #tpu.memory_space<vmem>>, vector<1x256x128xf32>
    %7 = vector.shape_cast %6 : vector<1x256x128xf32> to vector<256x128xf32>
    %8 = vector.shape_cast %5 : vector<256x128xf32> to vector<1x256x128xf32>
    tpu.vector_store %arg4[%c0_7, %c0_8, %c0_9], %8 {strides = array<i32>} : memref<1x256x128xf32, #tpu.memory_space<vmem>>, vector<1x256x128xf32>,
    %c0_10 = arith.constant 0 : index
    %c0_11 = arith.constant 0 : index
    %c1 = arith.constant 1 : index
    %c0_12 = arith.constant 0 : index
    %9 = vector.load %arg1[%c0_10, %c0_11, %c1, %c0_12] : memref<1x18x18x16xbf16, #tpu.memory_space<vmem>>, vector<1x16x16x16xbf16>
    %10 = vector.shape_cast %9 : vector<1x16x16x16xbf16> to vector<16x16x16xbf16>
    %11 = vector.shape_cast %10 : vector<16x16x16xbf16> to vector<256x16xbf16>
    %c0_13 = arith.constant 0 : index
    %c1_14 = arith.constant 1 : index
    %c0_15 = arith.constant 0 : index
    %c0_16 = arith.constant 0 : index
    %12 = vector.load %arg2[%c0_13, %c1_14, %c0_15, %c0_16] : memref<3x3x16x128xbf16, #tpu.memory_space<vmem>>, vector<1x1x16x128xbf16>
    %13 = vector.shape_cast %12 : vector<1x1x16x128xbf16> to vector<16x128xbf16>
    %cst_17 = arith.constant dense<0.000000e+00> : vector<256x128xf32>
    %14 = tpu.matmul %11, %13, %cst_17 {dimension_numbers = #tpu.dot_dimension_numbers<[1], [0], [0], [1], [0, 0, 1, 1], [], []>} : vector<256x16xbf16>, vector<16x128xbf16>, vector<256x128xf32> -> vector<256x128xf32>
    %c0_18 = arith.constant 0 : index
    %c0_19 = arith.constant 0 : index
    %c0_20 = arith.constant 0 : index
    %15 = vector.load %arg4[%c0_18, %c0_19, %c0_20] : memref<1x256x128xf32, #tpu.memory_space<vmem>>, vector<1x256x128xf32>
    %16 = vector.shape_cast %15 : vector<1x256x128xf32> to vector<256x128xf32>
    %17 = arith.addf %16, %14 : vector<256x128xf32>
    %c0_21 = arith.constant 0 : index
    %c0_22 = arith.constant 0 : index
    %c0_23 = arith.constant 0 : index
    %18 = vector.load %arg4[%c0_21, %c0_22, %c0_23] : memref<1x256x128xf32, #tpu.memory_space<vmem>>, vector<1x256x128xf32>
    %19 = vector.shape_cast %18 : vector<1x256x128xf32> to vector<256x128xf32>
    %20 = vector.shape_cast %17 : vector<256x128xf32> to vector<1x256x128xf32>
    tpu.vector_store %arg4[%c0_21, %c0_22, %c0_23], %20 {strides = array<i32>} : memref<1x256x128xf32, #tpu.memory_space<vmem>>, vector<1x256x128xf32>,
    %c0_24 = arith.constant 0 : index
    %c0_25 = arith.constant 0 : index
    %c2 = arith.constant 2 : index
    %c0_26 = arith.constant 0 : index
    %21 = vector.load %arg1[%c0_24, %c0_25, %c2, %c0_26] : memref<1x18x18x16xbf16, #tpu.memory_space<vmem>>, vector<1x16x16x16xbf16>
    %22 = vector.shape_cast %21 : vector<1x16x16x16xbf16> to vector<16x16x16xbf16>
    %23 = vector.shape_cast %22 : vector<16x16x16xbf16> to vector<256x16xbf16>
    %c0_27 = arith.constant 0 : index
    %c2_28 = arith.constant 2 : index
    %c0_29 = arith.constant 0 : index
    %c0_30 = arith.constant 0 : index
    %24 = vector.load %arg2[%c0_27, %c2_28, %c0_29, %c0_30] : memref<3x3x16x128xbf16, #tpu.memory_space<vmem>>, vector<1x1x16x128xbf16>
    %25 = vector.shape_cast %24 : vector<1x1x16x128xbf16> to vector<16x128xbf16>
    %cst_31 = arith.constant dense<0.000000e+00> : vector<256x128xf32>
    %26 = tpu.matmul %23, %25, %cst_31 {dimension_numbers = #tpu.dot_dimension_numbers<[1], [0], [0], [1], [0, 0, 1, 1], [], []>} : vector<256x16xbf16>, vector<16x128xbf16>, vector<256x128xf32> -> vector<256x128xf32>
    %c0_32 = arith.constant 0 : index
    %c0_33 = arith.constant 0 : index
    %c0_34 = arith.constant 0 : index
    %27 = vector.load %arg4[%c0_32, %c0_33, %c0_34] : memref<1x256x128xf32, #tpu.memory_space<vmem>>, vector<1x256x128xf32>
    %28 = vector.shape_cast %27 : vector<1x256x128xf32> to vector<256x128xf32>
    %29 = arith.addf %28, %26 : vector<256x128xf32>
    %c0_35 = arith.constant 0 : index
    %c0_36 = arith.constant 0 : index
    %c0_37 = arith.constant 0 : index
    %30 = vector.load %arg4[%c0_35, %c0_36, %c0_37] : memref<1x256x128xf32, #tpu.memory_space<vmem>>, vector<1x256x128xf32>
    %31 = vector.shape_cast %30 : vector<1x256x128xf32> to vector<256x128xf32>
    %32 = vector.shape_cast %29 : vector<256x128xf32> to vector<1x256x128xf32>
    tpu.vector_store %arg4[%c0_35, %c0_36, %c0_37], %32 {strides = array<i32>} : memref<1x256x128xf32, #tpu.memory_space<vmem>>, vector<1x256x128xf32>,
    %c0_38 = arith.constant 0 : index
    %c1_39 = arith.constant 1 : index
    %c0_40 = arith.constant 0 : index
    %c0_41 = arith.constant 0 : index
    %33 = vector.load %arg1[%c0_38, %c1_39, %c0_40, %c0_41] : memref<1x18x18x16xbf16, #tpu.memory_space<vmem>>, vector<1x16x16x16xbf16>
    %34 = vector.shape_cast %33 : vector<1x16x16x16xbf16> to vector<16x16x16xbf16>
    %35 = vector.shape_cast %34 : vector<16x16x16xbf16> to vector<256x16xbf16>
    %c1_42 = arith.constant 1 : index
    %c0_43 = arith.constant 0 : index
    %c0_44 = arith.constant 0 : index
    %c0_45 = arith.constant 0 : index
    %36 = vector.load %arg2[%c1_42, %c0_43, %c0_44, %c0_45] : memref<3x3x16x128xbf16, #tpu.memory_space<vmem>>, vector<1x1x16x128xbf16>
    %37 = vector.shape_cast %36 : vector<1x1x16x128xbf16> to vector<16x128xbf16>
    %cst_46 = arith.constant dense<0.000000e+00> : vector<256x128xf32>
    %38 = tpu.matmul %35, %37, %cst_46 {dimension_numbers = #tpu.dot_dimension_numbers<[1], [0], [0], [1], [0, 0, 1, 1], [], []>} : vector<256x16xbf16>, vector<16x128xbf16>, vector<256x128xf32> -> vector<256x128xf32>
    %c0_47 = arith.constant 0 : index
    %c0_48 = arith.constant 0 : index
    %c0_49 = arith.constant 0 : index
    %39 = vector.load %arg4[%c0_47, %c0_48, %c0_49] : memref<1x256x128xf32, #tpu.memory_space<vmem>>, vector<1x256x128xf32>
    %40 = vector.shape_cast %39 : vector<1x256x128xf32> to vector<256x128xf32>
    %41 = arith.addf %40, %38 : vector<256x128xf32>
    %c0_50 = arith.constant 0 : index
    %c0_51 = arith.constant 0 : index
    %c0_52 = arith.constant 0 : index
    %42 = vector.load %arg4[%c0_50, %c0_51, %c0_52] : memref<1x256x128xf32, #tpu.memory_space<vmem>>, vector<1x256x128xf32>
    %43 = vector.shape_cast %42 : vector<1x256x128xf32> to vector<256x128xf32>
    %44 = vector.shape_cast %41 : vector<256x128xf32> to vector<1x256x128xf32>
    tpu.vector_store %arg4[%c0_50, %c0_51, %c0_52], %44 {strides = array<i32>} : memref<1x256x128xf32, #tpu.memory_space<vmem>>, vector<1x256x128xf32>,
    %c0_53 = arith.constant 0 : index
    %c1_54 = arith.constant 1 : index
    %c1_55 = arith.constant 1 : index
    %c0_56 = arith.constant 0 : index
    %45 = vector.load %arg1[%c0_53, %c1_54, %c1_55, %c0_56] : memref<1x18x18x16xbf16, #tpu.memory_space<vmem>>, vector<1x16x16x16xbf16>
    %46 = vector.shape_cast %45 : vector<1x16x16x16xbf16> to vector<16x16x16xbf16>
    %47 = vector.shape_cast %46 : vector<16x16x16xbf16> to vector<256x16xbf16>
    %c1_57 = arith.constant 1 : index
    %c1_58 = arith.constant 1 : index
    %c0_59 = arith.constant 0 : index
    %c0_60 = arith.constant 0 : index
    %48 = vector.load %arg2[%c1_57, %c1_58, %c0_59, %c0_60] : memref<3x3x16x128xbf16, #tpu.memory_space<vmem>>, vector<1x1x16x128xbf16>
    %49 = vector.shape_cast %48 : vector<1x1x16x128xbf16> to vector<16x128xbf16>
    %cst_61 = arith.constant dense<0.000000e+00> : vector<256x128xf32>
    %50 = tpu.matmul %47, %49, %cst_61 {dimension_numbers = #tpu.dot_dimension_numbers<[1], [0], [0], [1], [0, 0, 1, 1], [], []>} : vector<256x16xbf16>, vector<16x128xbf16>, vector<256x128xf32> -> vector<256x128xf32>
    %c0_62 = arith.constant 0 : index
    %c0_63 = arith.constant 0 : index
    %c0_64 = arith.constant 0 : index
    %51 = vector.load %arg4[%c0_62, %c0_63, %c0_64] : memref<1x256x128xf32, #tpu.memory_space<vmem>>, vector<1x256x128xf32>
    %52 = vector.shape_cast %51 : vector<1x256x128xf32> to vector<256x128xf32>
    %53 = arith.addf %52, %50 : vector<256x128xf32>
    %c0_65 = arith.constant 0 : index
    %c0_66 = arith.constant 0 : index
    %c0_67 = arith.constant 0 : index
    %54 = vector.load %arg4[%c0_65, %c0_66, %c0_67] : memref<1x256x128xf32, #tpu.memory_space<vmem>>, vector<1x256x128xf32>
    %55 = vector.shape_cast %54 : vector<1x256x128xf32> to vector<256x128xf32>
    %56 = vector.shape_cast %53 : vector<256x128xf32> to vector<1x256x128xf32>
    tpu.vector_store %arg4[%c0_65, %c0_66, %c0_67], %56 {strides = array<i32>} : memref<1x256x128xf32, #tpu.memory_space<vmem>>, vector<1x256x128xf32>,
    %c0_68 = arith.constant 0 : index
    %c1_69 = arith.constant 1 : index
    %c2_70 = arith.constant 2 : index
    %c0_71 = arith.constant 0 : index
    %57 = vector.load %arg1[%c0_68, %c1_69, %c2_70, %c0_71] : memref<1x18x18x16xbf16, #tpu.memory_space<vmem>>, vector<1x16x16x16xbf16>
    %58 = vector.shape_cast %57 : vector<1x16x16x16xbf16> to vector<16x16x16xbf16>
    %59 = vector.shape_cast %58 : vector<16x16x16xbf16> to vector<256x16xbf16>
    %c1_72 = arith.constant 1 : index
    %c2_73 = arith.constant 2 : index
    %c0_74 = arith.constant 0 : index
    %c0_75 = arith.constant 0 : index
    %60 = vector.load %arg2[%c1_72, %c2_73, %c0_74, %c0_75] : memref<3x3x16x128xbf16, #tpu.memory_space<vmem>>, vector<1x1x16x128xbf16>
    %61 = vector.shape_cast %60 : vector<1x1x16x128xbf16> to vector<16x128xbf16>
    %cst_76 = arith.constant dense<0.000000e+00> : vector<256x128xf32>
    %62 = tpu.matmul %59, %61, %cst_76 {dimension_numbers = #tpu.dot_dimension_numbers<[1], [0], [0], [1], [0, 0, 1, 1], [], []>} : vector<256x16xbf16>, vector<16x128xbf16>, vector<256x128xf32> -> vector<256x128xf32>
    %c0_77 = arith.constant 0 : index
    %c0_78 = arith.constant 0 : index
    %c0_79 = arith.constant 0 : index
    %63 = vector.load %arg4[%c0_77, %c0_78, %c0_79] : memref<1x256x128xf32, #tpu.memory_space<vmem>>, vector<1x256x128xf32>
    %64 = vector.shape_cast %63 : vector<1x256x128xf32> to vector<256x128xf32>
    %65 = arith.addf %64, %62 : vector<256x128xf32>
    %c0_80 = arith.constant 0 : index
    %c0_81 = arith.constant 0 : index
    %c0_82 = arith.constant 0 : index
    %66 = vector.load %arg4[%c0_80, %c0_81, %c0_82] : memref<1x256x128xf32, #tpu.memory_space<vmem>>, vector<1x256x128xf32>
    %67 = vector.shape_cast %66 : vector<1x256x128xf32> to vector<256x128xf32>
    %68 = vector.shape_cast %65 : vector<256x128xf32> to vector<1x256x128xf32>
    tpu.vector_store %arg4[%c0_80, %c0_81, %c0_82], %68 {strides = array<i32>} : memref<1x256x128xf32, #tpu.memory_space<vmem>>, vector<1x256x128xf32>,
    %c0_83 = arith.constant 0 : index
    %c2_84 = arith.constant 2 : index
    %c0_85 = arith.constant 0 : index
    %c0_86 = arith.constant 0 : index
    %69 = vector.load %arg1[%c0_83, %c2_84, %c0_85, %c0_86] : memref<1x18x18x16xbf16, #tpu.memory_space<vmem>>, vector<1x16x16x16xbf16>
    %70 = vector.shape_cast %69 : vector<1x16x16x16xbf16> to vector<16x16x16xbf16>
    %71 = vector.shape_cast %70 : vector<16x16x16xbf16> to vector<256x16xbf16>
    %c2_87 = arith.constant 2 : index
    %c0_88 = arith.constant 0 : index
    %c0_89 = arith.constant 0 : index
    %c0_90 = arith.constant 0 : index
    %72 = vector.load %arg2[%c2_87, %c0_88, %c0_89, %c0_90] : memref<3x3x16x128xbf16, #tpu.memory_space<vmem>>, vector<1x1x16x128xbf16>
    %73 = vector.shape_cast %72 : vector<1x1x16x128xbf16> to vector<16x128xbf16>
    %cst_91 = arith.constant dense<0.000000e+00> : vector<256x128xf32>
    %74 = tpu.matmul %71, %73, %cst_91 {dimension_numbers = #tpu.dot_dimension_numbers<[1], [0], [0], [1], [0, 0, 1, 1], [], []>} : vector<256x16xbf16>, vector<16x128xbf16>, vector<256x128xf32> -> vector<256x128xf32>
    %c0_92 = arith.constant 0 : index
    %c0_93 = arith.constant 0 : index
    %c0_94 = arith.constant 0 : index
    %75 = vector.load %arg4[%c0_92, %c0_93, %c0_94] : memref<1x256x128xf32, #tpu.memory_space<vmem>>, vector<1x256x128xf32>
    %76 = vector.shape_cast %75 : vector<1x256x128xf32> to vector<256x128xf32>
    %77 = arith.addf %76, %74 : vector<256x128xf32>
    %c0_95 = arith.constant 0 : index
    %c0_96 = arith.constant 0 : index
    %c0_97 = arith.constant 0 : index
    %78 = vector.load %arg4[%c0_95, %c0_96, %c0_97] : memref<1x256x128xf32, #tpu.memory_space<vmem>>, vector<1x256x128xf32>
    %79 = vector.shape_cast %78 : vector<1x256x128xf32> to vector<256x128xf32>
    %80 = vector.shape_cast %77 : vector<256x128xf32> to vector<1x256x128xf32>
    tpu.vector_store %arg4[%c0_95, %c0_96, %c0_97], %80 {strides = array<i32>} : memref<1x256x128xf32, #tpu.memory_space<vmem>>, vector<1x256x128xf32>,
    %c0_98 = arith.constant 0 : index
    %c2_99 = arith.constant 2 : index
    %c1_100 = arith.constant 1 : index
    %c0_101 = arith.constant 0 : index
    %81 = vector.load %arg1[%c0_98, %c2_99, %c1_100, %c0_101] : memref<1x18x18x16xbf16, #tpu.memory_space<vmem>>, vector<1x16x16x16xbf16>
    %82 = vector.shape_cast %81 : vector<1x16x16x16xbf16> to vector<16x16x16xbf16>
    %83 = vector.shape_cast %82 : vector<16x16x16xbf16> to vector<256x16xbf16>
    %c2_102 = arith.constant 2 : index
    %c1_103 = arith.constant 1 : index
    %c0_104 = arith.constant 0 : index
    %c0_105 = arith.constant 0 : index
    %84 = vector.load %arg2[%c2_102, %c1_103, %c0_104, %c0_105] : memref<3x3x16x128xbf16, #tpu.memory_space<vmem>>, vector<1x1x16x128xbf16>
    %85 = vector.shape_cast %84 : vector<1x1x16x128xbf16> to vector<16x128xbf16>
    %cst_106 = arith.constant dense<0.000000e+00> : vector<256x128xf32>
    %86 = tpu.matmul %83, %85, %cst_106 {dimension_numbers = #tpu.dot_dimension_numbers<[1], [0], [0], [1], [0, 0, 1, 1], [], []>} : vector<256x16xbf16>, vector<16x128xbf16>, vector<256x128xf32> -> vector<256x128xf32>
    %c0_107 = arith.constant 0 : index
    %c0_108 = arith.constant 0 : index
    %c0_109 = arith.constant 0 : index
    %87 = vector.load %arg4[%c0_107, %c0_108, %c0_109] : memref<1x256x128xf32, #tpu.memory_space<vmem>>, vector<1x256x128xf32>
    %88 = vector.shape_cast %87 : vector<1x256x128xf32> to vector<256x128xf32>
    %89 = arith.addf %88, %86 : vector<256x128xf32>
    %c0_110 = arith.constant 0 : index
    %c0_111 = arith.constant 0 : index
    %c0_112 = arith.constant 0 : index
    %90 = vector.load %arg4[%c0_110, %c0_111, %c0_112] : memref<1x256x128xf32, #tpu.memory_space<vmem>>, vector<1x256x128xf32>
    %91 = vector.shape_cast %90 : vector<1x256x128xf32> to vector<256x128xf32>
    %92 = vector.shape_cast %89 : vector<256x128xf32> to vector<1x256x128xf32>
    tpu.vector_store %arg4[%c0_110, %c0_111, %c0_112], %92 {strides = array<i32>} : memref<1x256x128xf32, #tpu.memory_space<vmem>>, vector<1x256x128xf32>,
    %c0_113 = arith.constant 0 : index
    %c2_114 = arith.constant 2 : index
    %c2_115 = arith.constant 2 : index
    %c0_116 = arith.constant 0 : index
    %93 = vector.load %arg1[%c0_113, %c2_114, %c2_115, %c0_116] : memref<1x18x18x16xbf16, #tpu.memory_space<vmem>>, vector<1x16x16x16xbf16>
    %94 = vector.shape_cast %93 : vector<1x16x16x16xbf16> to vector<16x16x16xbf16>
    %95 = vector.shape_cast %94 : vector<16x16x16xbf16> to vector<256x16xbf16>
    %c2_117 = arith.constant 2 : index
    %c2_118 = arith.constant 2 : index
    %c0_119 = arith.constant 0 : index
    %c0_120 = arith.constant 0 : index
    %96 = vector.load %arg2[%c2_117, %c2_118, %c0_119, %c0_120] : memref<3x3x16x128xbf16, #tpu.memory_space<vmem>>, vector<1x1x16x128xbf16>
    %97 = vector.shape_cast %96 : vector<1x1x16x128xbf16> to vector<16x128xbf16>
    %cst_121 = arith.constant dense<0.000000e+00> : vector<256x128xf32>
    %98 = tpu.matmul %95, %97, %cst_121 {dimension_numbers = #tpu.dot_dimension_numbers<[1], [0], [0], [1], [0, 0, 1, 1], [], []>} : vector<256x16xbf16>, vector<16x128xbf16>, vector<256x128xf32> -> vector<256x128xf32>
    %c0_122 = arith.constant 0 : index
    %c0_123 = arith.constant 0 : index
    %c0_124 = arith.constant 0 : index
    %99 = vector.load %arg4[%c0_122, %c0_123, %c0_124] : memref<1x256x128xf32, #tpu.memory_space<vmem>>, vector<1x256x128xf32>
    %100 = vector.shape_cast %99 : vector<1x256x128xf32> to vector<256x128xf32>
    %101 = arith.addf %100, %98 : vector<256x128xf32>
    %c0_125 = arith.constant 0 : index
    %c0_126 = arith.constant 0 : index
    %c0_127 = arith.constant 0 : index
    %102 = vector.load %arg4[%c0_125, %c0_126, %c0_127] : memref<1x256x128xf32, #tpu.memory_space<vmem>>, vector<1x256x128xf32>
    %103 = vector.shape_cast %102 : vector<1x256x128xf32> to vector<256x128xf32>
    %104 = vector.shape_cast %101 : vector<256x128xf32> to vector<1x256x128xf32>
    tpu.vector_store %arg4[%c0_125, %c0_126, %c0_127], %104 {strides = array<i32>} : memref<1x256x128xf32, #tpu.memory_space<vmem>>, vector<1x256x128xf32>,
    %c0_128 = arith.constant 0 : index
    %c0_129 = arith.constant 0 : index
    %c0_130 = arith.constant 0 : index
    %105 = vector.load %arg4[%c0_128, %c0_129, %c0_130] : memref<1x256x128xf32, #tpu.memory_space<vmem>>, vector<1x256x128xf32>
    %106 = vector.shape_cast %105 : vector<1x256x128xf32> to vector<256x128xf32>
    %c0_131 = arith.constant 0 : index
    %c0_132 = arith.constant 0 : index
    %107 = vector.load %arg3[%c0_131, %c0_132] : memref<1x128xf32, #tpu.memory_space<vmem>>, vector<1x128xf32>
    %108 = vector.broadcast %107 : vector<1x128xf32> to vector<256x128xf32>
    %109 = arith.addf %106, %108 : vector<256x128xf32>
    %cst_133 = arith.constant 0.000000e+00 : f32
    %110 = vector.broadcast %cst_133 : f32 to vector<256x128xf32>
    %111 = arith.maximumf %109, %110 : vector<256x128xf32>
    %c0_134 = arith.constant 0 : index
    %c0_135 = arith.constant 0 : index
    %c0_136 = arith.constant 0 : index
    %112 = vector.load %arg4[%c0_134, %c0_135, %c0_136] : memref<1x256x128xf32, #tpu.memory_space<vmem>>, vector<1x256x128xf32>
    %113 = vector.shape_cast %112 : vector<1x256x128xf32> to vector<256x128xf32>
    %114 = vector.shape_cast %111 : vector<256x128xf32> to vector<1x256x128xf32>
    tpu.vector_store %arg4[%c0_134, %c0_135, %c0_136], %114 {strides = array<i32>} : memref<1x256x128xf32, #tpu.memory_space<vmem>>, vector<1x256x128xf32>,
    return
  }
  func.func @transform_0(%arg0: i32) -> (i32, i32, i32, i32) {
    %c0_i32 = arith.constant 0 : i32
    %c0_i32_0 = arith.constant 0 : i32
    %c0_i32_1 = arith.constant 0 : i32
    %c0_i32_2 = arith.constant 0 : i32
    return %arg0, %c0_i32, %c0_i32_0, %c0_i32_1 : i32, i32, i32, i32
  }
  func.func @transform_1(%arg0: i32) -> (i32, i32, i32, i32) {
    %c0_i32 = arith.constant 0 : i32
    %c0_i32_0 = arith.constant 0 : i32
    %c0_i32_1 = arith.constant 0 : i32
    %c0_i32_2 = arith.constant 0 : i32
    %c0_i32_3 = arith.constant 0 : i32
    return %c0_i32, %c0_i32_0, %c0_i32_1, %c0_i32_2 : i32, i32, i32, i32
  }
  func.func @transform_2(%arg0: i32) -> (i32, i32) {
    %c0_i32 = arith.constant 0 : i32
    %c0_i32_0 = arith.constant 0 : i32
    %c0_i32_1 = arith.constant 0 : i32
    return %c0_i32, %c0_i32_0 : i32, i32
  }
  func.func @transform_3(%arg0: i32) -> (i32, i32, i32) {
    %c0_i32 = arith.constant 0 : i32
    %c0_i32_0 = arith.constant 0 : i32
    %c0_i32_1 = arith.constant 0 : i32
    return %arg0, %c0_i32, %c0_i32_0 : i32, i32, i32
  }
}

</mosaic_0001>

<llo_original>
// kernel: tpu_custom_call.1
$region0: #{tpu_custom_call.1}
  #allocation0 [shape = 'u32[]', space=smem, size = 0x4, offset = 0x4, fixed_abs, tag = 'smem constant byte address 0x4 - core index']
  #allocation1 [shape = 'u32[144,128]{1,0:T(1,128)}', space=vmem, size = 0x12000, scoped, tag = 'internal scratch']
  %s0 = inlined_call_operand.vmem [shape: bf16[2,18,18,16], index: 0, kind: input, shape index: {}]
  %s1 = inlined_call_operand.vmem [shape: bf16[3,3,16,128], index: 1, kind: input, shape index: {}]
  %s2 = inlined_call_operand.vmem [shape: f32[1,128], index: 2, kind: input, shape index: {}]
  %s3 = inlined_call_operand.hbm [shape: f32[2,256,128], index: 3, kind: output, shape index: {}]
  %s4 = sld [smem:[#allocation0]]
  $region45: #{tpu_custom_call.1} parent=0
    _
  %s6 = ssub.s32 1, %s4
  %s7 = scalar_select 0, %s6, %s4
  $region1: #{tpu_custom_call.1} parent=0
    #allocation2 [shape = 'u8[262144]{0}', space=vmem, size = 0x40000, scoped, tag = 'output window, operand 0']
    #allocation3 [shape = 's32[2]{0}', space=sflag, size = 0x8, scoped, tag = 'scoped memory for tpu_custom_call.1']
    %8 = vsyncpa [#allocation3], 0
    %s9 = scalar_lea.sflag [#allocation3], 1
    %10 = vsyncpa %s9, 0
    loop: start=0, step=1, limit=4
    $region2: #{tpu_custom_call.1} parent=1 // loop_pre_header
      _
    $region3: #{tpu_custom_call.1} parent=1 // loop_header
      %s12 = sphi 0, %s16
      %p13 = scmp.ge.s32.totalorder %s12, 4
      %s22 = sphi 0, %s24
      %s25 = sphi 0, %s22
      %s26 = sphi 0, %s25
      %s42 = sphi 0, %s26
      %s46 = sphi 0, %s46
      %s48 = sphi 0, %s46
      %s49 = sphi 0, %s48
      %s63 = sphi 0, %s49
      %s67 = sphi 0, %s67
      %s69 = sphi 0, %s67
      %s70 = sphi 0, %s69
      %s84 = sphi 0, %s70
      %s90 = sphi 0, %s92
      %s93 = sphi 0, %s90
      %s94 = sphi 0, %s93
      %s110 = sphi 0, %s94
    $region4: #{tpu_custom_call.1} parent=1 // loop_header_branch
      %15 = sbr.rel (%p13) target = $region8
    $region5: #{tpu_custom_call.1} parent=1 // loop_body
      %s17 = ssub.s32 %s12, 1
      %s18 = ssub.s32 %s12, 2
      %s19 = sadd.s32 %s12, 1
      %s20 = ssub.s32 %s12, %s19
      %p21 = scmp.eq.s32.totalorder %s20, 0
      %s23 = sadd.s32 %s22, 1
      %s24 = scalar_select %p21, %s22, %s23
      %p27 = pneg %p21
      %p28 = scmp.eq.s32.totalorder %s12, 1
      %p29 = por %p27, %p28
      %p30 = scmp.ne.s32.totalorder %s22, %s25
      %p31 = scmp.eq.s32.totalorder %s12, 0
      %p32 = por %p30, %p31
      %p33 = scmp.ne.s32.totalorder %s22, %s25
      %p34 = scmp.eq.s32.totalorder %s17, 1
      %p35 = por %p33, %p34
      %p36 = scmp.ne.s32.totalorder %s25, %s26
      %p37 = scmp.eq.s32.totalorder %s17, 0
      %p38 = por %p36, %p37
      %p39 = scmp.ne.s32.totalorder %s25, %s26
      %p40 = scmp.eq.s32.totalorder %s18, 1
      %p41 = por %p39, %p40
      %p43 = scmp.ne.s32.totalorder %s26, %s42
      %p44 = scmp.eq.s32.totalorder %s18, 0
      %p45 = por %p43, %p44
      %s47 = sadd.s32 %s46, 1
      %p50 = scmp.eq.s32.totalorder %s12, 1
      %p51 = scmp.ne.s32.totalorder %s46, %s48
      %p52 = scmp.eq.s32.totalorder %s12, 0
      %p53 = por %p51, %p52
      %p54 = scmp.ne.s32.totalorder %s46, %s48
      %p55 = scmp.eq.s32.totalorder %s17, 1
      %p56 = por %p54, %p55
      %p57 = scmp.ne.s32.totalorder %s48, %s49
      %p58 = scmp.eq.s32.totalorder %s17, 0
      %p59 = por %p57, %p58
      %p60 = scmp.ne.s32.totalorder %s48, %s49
      %p61 = scmp.eq.s32.totalorder %s18, 1
      %p62 = por %p60, %p61
      %p64 = scmp.ne.s32.totalorder %s49, %s63
      %p65 = scmp.eq.s32.totalorder %s18, 0
      %p66 = por %p64, %p65
      %s68 = sadd.s32 %s67, 1
      %p71 = scmp.eq.s32.totalorder %s12, 1
      %p72 = scmp.ne.s32.totalorder %s67, %s69
      %p73 = scmp.eq.s32.totalorder %s12, 0
      %p74 = por %p72, %p73
      %p75 = scmp.ne.s32.totalorder %s67, %s69
      %p76 = scmp.eq.s32.totalorder %s17, 1
      %p77 = por %p75, %p76
      %p78 = scmp.ne.s32.totalorder %s69, %s70
      %p79 = scmp.eq.s32.totalorder %s17, 0
      %p80 = por %p78, %p79
      %p81 = scmp.ne.s32.totalorder %s69, %s70
      %p82 = scmp.eq.s32.totalorder %s18, 1
      %p83 = por %p81, %p82
      %p85 = scmp.ne.s32.totalorder %s70, %s84
      %p86 = scmp.eq.s32.totalorder %s18, 0
      %p87 = por %p85, %p86
      %s88 = ssub.s32 %s12, %s19
      %p89 = scmp.eq.s32.totalorder %s88, 0
      %s91 = sadd.s32 %s90, 1
      %s92 = scalar_select %p89, %s90, %s91
      %p95 = pneg %p89
      %p96 = scmp.eq.s32.totalorder %s12, 1
      %p97 = por %p95, %p96
      %p98 = scmp.ne.s32.totalorder %s90, %s93
      %p99 = scmp.eq.s32.totalorder %s12, 0
      %p100 = por %p98, %p99
      %p101 = scmp.ne.s32.totalorder %s90, %s93
      %p102 = scmp.eq.s32.totalorder %s17, 1
      %p103 = por %p101, %p102
      %p104 = scmp.ne.s32.totalorder %s93, %s94
      %p105 = scmp.eq.s32.totalorder %s17, 0
      %p106 = por %p104, %p105
      %p107 = scmp.ne.s32.totalorder %s93, %s94
      %p108 = scmp.eq.s32.totalorder %s18, 1
      %p109 = por %p107, %p108
      %p111 = scmp.ne.s32.totalorder %s94, %s110
      %p112 = scmp.eq.s32.totalorder %s18, 0
      %p113 = por %p111, %p112
      %p114 = scmp.le.s32.totalorder 1, %s12
      %p115 = scmp.lt.s32.totalorder %s12, 3
      %p116 = pnand %p114, %p115
      %p117 = pneg %p116
      // Predicated region
      $region9: #{tpu_custom_call.1} parent=5 // pred_check
        _
      $region10: #{tpu_custom_call.1} parent=5 // pred_check_branch
        %119 = sbr.rel (%p116) target = $region12
      $region11: #{tpu_custom_call.1} parent=5 // pred_region
        %s120 = ssub.s32 %s12, 1
        // Predicated region
        $region13: #{tpu_custom_call.1} parent=11 // pred_check
          %p121 = pneg %p59
        $region14: #{tpu_custom_call.1} parent=11 // pred_check_branch
          %123 = sbr.rel (%p121) target = $region16
        $region15: #{tpu_custom_call.1} parent=11 // pred_region
          _
        $region16: #{tpu_custom_call.1} parent=11 // pred_fallthru
          _
        // Predicated region
        $region17: #{tpu_custom_call.1} parent=11 // pred_check
          %p124 = pneg %p80
        $region18: #{tpu_custom_call.1} parent=11 // pred_check_branch
          %126 = sbr.rel (%p124) target = $region20
        $region19: #{tpu_custom_call.1} parent=11 // pred_region
          _
        $region20: #{tpu_custom_call.1} parent=11 // pred_fallthru
          _
      $region12: #{tpu_custom_call.1} parent=5 // pred_fallthru
        _
      %p127 = scmp.lt.s32.totalorder %s12, 2
      // Predicated region
      $region21: #{tpu_custom_call.1} parent=5 // pred_check
        %p128 = pneg %p127
      $region22: #{tpu_custom_call.1} parent=5 // pred_check_branch
        %130 = sbr.rel (%p128) target = $region24
      $region23: #{tpu_custom_call.1} parent=5 // pred_region
        // Predicated region
        $region25: #{tpu_custom_call.1} parent=23 // pred_check
          %p131 = pneg %p32
        $region26: #{tpu_custom_call.1} parent=23 // pred_check_branch
          %133 = sbr.rel (%p131) target = $region28
        $region27: #{tpu_custom_call.1} parent=23 // pred_region
          %p134 = scmp.lt.s32.totalorder %s12, 1
          %s135 = scalar_select %p134, %s12, 1
          %s136 = smul.addr %s135, 54
          %s137 = smul.addr %s136, 4
          %s138 = scalar_lea.vmem %s0, %s137
        $region28: #{tpu_custom_call.1} parent=23 // pred_fallthru
          _
      $region24: #{tpu_custom_call.1} parent=5 // pred_fallthru
        _
      %p139 = scmp.le.s32.totalorder 1, %s12
      %p140 = scmp.lt.s32.totalorder %s12, 3
      %p141 = pnand %p139, %p140
      %p142 = pneg %p141
      // Predicated region
      $region29: #{tpu_custom_call.1} parent=5 // pred_check
        _
      $region30: #{tpu_custom_call.1} parent=5 // pred_check_branch
        %144 = sbr.rel (%p141) target = $region32
      $region31: #{tpu_custom_call.1} parent=5 // pred_region
        %s145 = ssub.s32 %s12, 1
        %p146 = scmp.lt.s32.totalorder %s17, 1
        %s147 = scalar_select %p146, %s17, 1
        %s148 = smul.addr %s147, 54
        %s149 = smul.addr %s148, 4
        %s150 = scalar_lea.vmem %s0, %s149
        %p151 = pneg %p38
        %p152 = pneg %p35
        %p153 = pneg %p59
        %p154 = pneg %p56
        %p155 = pneg %p80
        %p156 = pneg %p77
        %p157 = pneg %p106
        %p158 = pneg %p103
        %s159 = sand.u32 %s93, 1
        %s160 = scalar_lea.sflag [#allocation3], %s159
        %s161 = sand.u32 %s93, 1
        %s162 = smul.addr %s161, 256
        %s163 = scalar_lea.vmem [#allocation2], %s162
        %p164 = scmp.lt.s32.totalorder %s17, 1
        %s165 = scalar_select %p164, %s17, 1
        %s166 = smul.addr %s165, 54
        %s167 = smul.addr %s166, 4
        %s168 = scalar_lea.vmem %s0, %s167
        %v170 = vld [vmem:[%s168] sm:$0xf]
        %v171 = vld [vmem:[%s168 + $0x4] sm:$0xf]
        %v172 = vld [vmem:[%s168 + $0xc] sm:$0xf]
        %v173 = vld [vmem:[%s168 + $0x10] sm:$0xf]
        %v174 = vld [vmem:[%s168 + $0x18] sm:$0xf]
        %v175 = vld [vmem:[%s168 + $0x1c] sm:$0xf]
        %v176 = vld [vmem:[%s168 + $0x24] sm:$0xf]
        %v177 = vld [vmem:[%s168 + $0x28] sm:$0xf]
        %v178 = vld [vmem:[%s168 + $0x30] sm:$0xf]
        %v179 = vld [vmem:[%s168 + $0x34] sm:$0xf]
        %v180 = vld [vmem:[%s168 + $0x3c] sm:$0xf]
        %v181 = vld [vmem:[%s168 + $0x40] sm:$0xf]
        %v182 = vld [vmem:[%s168 + $0x48] sm:$0xf]
        %v183 = vld [vmem:[%s168 + $0x4c] sm:$0xf]
        %v184 = vld [vmem:[%s168 + $0x54] sm:$0xf]
        %v185 = vld [vmem:[%s168 + $0x58] sm:$0xf]
        %v186 = vld [vmem:[%s168 + $0x60] sm:$0xf]
        %v187 = vld [vmem:[%s168 + $0x64] sm:$0xf]
        %v188 = vld [vmem:[%s168 + $0x6c] sm:$0xf]
        %v189 = vld [vmem:[%s168 + $0x70] sm:$0xf]
        %v190 = vld [vmem:[%s168 + $0x78] sm:$0xf]
        %v191 = vld [vmem:[%s168 + $0x7c] sm:$0xf]
        %v192 = vld [vmem:[%s168 + $0x84] sm:$0xf]
        %v193 = vld [vmem:[%s168 + $0x88] sm:$0xf]
        %v194 = vld [vmem:[%s168 + $0x90] sm:$0xf]
        %v195 = vld [vmem:[%s168 + $0x94] sm:$0xf]
        %v196 = vld [vmem:[%s168 + $0x9c] sm:$0xf]
        %v197 = vld [vmem:[%s168 + $0xa0] sm:$0xf]
        %v198 = vld [vmem:[%s168 + $0xa8] sm:$0xf]
        %v199 = vld [vmem:[%s168 + $0xac] sm:$0xf]
        %v200 = vld [vmem:[%s168 + $0xb4] sm:$0xf]
        %v201 = vld [vmem:[%s168 + $0xb8] sm:$0xf]
        %v202 = vld [vmem:[%s1] sm:$0xf]
        %v203 = vld [vmem:[%s1 + $0x4] sm:$0xf]
        %v236 = vunpack.c.l.b16 %v170
        %v237 = vunpack.c.l.b16 %v171
        %v238 = vunpack.c.l.b16 %v172
        %v239 = vunpack.c.l.b16 %v173
        %v240 = vunpack.c.l.b16 %v174
        %v241 = vunpack.c.l.b16 %v175
        %v242 = vunpack.c.l.b16 %v176
        %v243 = vunpack.c.l.b16 %v177
        %v244 = vunpack.c.l.b16 %v178
        %v245 = vunpack.c.l.b16 %v179
        %v246 = vunpack.c.l.b16 %v180
        %v247 = vunpack.c.l.b16 %v181
        %v248 = vunpack.c.l.b16 %v182
        %v249 = vunpack.c.l.b16 %v183
        %v250 = vunpack.c.l.b16 %v184
        %v251 = vunpack.c.l.b16 %v185
        %v252 = vunpack.c.l.b16 %v186
        %v253 = vunpack.c.l.b16 %v187
        %v254 = vunpack.c.l.b16 %v188
        %v255 = vunpack.c.l.b16 %v189
        %v256 = vunpack.c.l.b16 %v190
        %v257 = vunpack.c.l.b16 %v191
        %v258 = vunpack.c.l.b16 %v192
        %v259 = vunpack.c.l.b16 %v193
        %v260 = vunpack.c.l.b16 %v194
        %v261 = vunpack.c.l.b16 %v195
        %v262 = vunpack.c.l.b16 %v196
        %v263 = vunpack.c.l.b16 %v197
        %v264 = vunpack.c.l.b16 %v198
        %v265 = vunpack.c.l.b16 %v199
        %v266 = vunpack.c.l.b16 %v200
        %v267 = vunpack.c.l.b16 %v201
        %v268 = vpack.c.b16 %v237, %v236
        %v269 = vpack.c.b16 %v239, %v238
        %v270 = vpack.c.b16 %v241, %v240
        %v271 = vpack.c.b16 %v243, %v242
        %v272 = vpack.c.b16 %v245, %v244
        %v273 = vpack.c.b16 %v247, %v246
        %v274 = vpack.c.b16 %v249, %v248
        %v275 = vpack.c.b16 %v251, %v250
        %v276 = vpack.c.b16 %v253, %v252
        %v277 = vpack.c.b16 %v255, %v254
        %v278 = vpack.c.b16 %v257, %v256
        %v279 = vpack.c.b16 %v259, %v258
        %v280 = vpack.c.b16 %v261, %v260
        %v281 = vpack.c.b16 %v263, %v262
        %v282 = vpack.c.b16 %v265, %v264
        %v283 = vpack.c.b16 %v267, %v266
        %v286 = vunpack.c.l.b16 %v202
        %v287 = vunpack.c.l.b16 %v203
        %v288 = vpack.c.b16 %v287, %v286
        %vm290 = vcmask 130048
        %v292 = vsel %vm290, %v268, 0
        %v295 = vsel %vm290, %v269, 0
        %v298 = vsel %vm290, %v270, 0
        %v301 = vsel %vm290, %v271, 0
        %v304 = vsel %vm290, %v272, 0
        %v307 = vsel %vm290, %v273, 0
        %v310 = vsel %vm290, %v274, 0
        %v313 = vsel %vm290, %v275, 0
        %v316 = vsel %vm290, %v276, 0
        %v319 = vsel %vm290, %v277, 0
        %v322 = vsel %vm290, %v278, 0
        %v325 = vsel %vm290, %v279, 0
        %v328 = vsel %vm290, %v280, 0
        %v331 = vsel %vm290, %v281, 0
        %v334 = vsel %vm290, %v282, 0
        %v337 = vsel %vm290, %v283, 0
        %339 = vmatprep.subr.bf16.mxu0 0
        %340 = vmatpush1.bf16.msra.mxu0 0
        %341 = vmatprep.subr.bf16.mxu0 0
        %342 = vmatpush1.bf16.msra.mxu0 0
        %343 = vmatprep.subr.bf16.mxu0 0
        %344 = vmatpush1.bf16.msra.mxu0 0
        %345 = vmatprep.subr.bf16.mxu0 0
        %346 = vmatpush1.bf16.msra.mxu0 0
        %347 = vmatprep.subr.bf16.mxu0 0
        %348 = vmatpush1.bf16.msra.mxu0 0
        %349 = vmatprep.subr.bf16.mxu0 0
        %350 = vmatpush1.bf16.msra.mxu0 0
        %351 = vmatprep.subr.bf16.mxu0 0
        %352 = vmatpush1.bf16.msra.mxu0 0
        %353 = vmatprep.subr.bf16.mxu0 0
        %354 = vmatpush1.bf16.msra.mxu0 %v288
        %355 = vmatprep.subr.bf16.mxu0 0
        %356 = vmatpush2.bf16.msra.mxu0 0
        %357 = vmatprep.subr.bf16.mxu0 0
        %358 = vmatpush2.bf16.msra.mxu0 0
        %359 = vmatprep.subr.bf16.mxu0 0
        %360 = vmatpush2.bf16.msra.mxu0 0
        %361 = vmatprep.subr.bf16.mxu0 0
        %362 = vmatpush2.bf16.msra.mxu0 0
        %363 = vmatprep.subr.bf16.mxu0 0
        %364 = vmatpush2.bf16.msra.mxu0 0
        %365 = vmatprep.subr.bf16.mxu0 0
        %366 = vmatpush2.bf16.msra.mxu0 0
        %367 = vmatprep.subr.bf16.mxu0 0
        %368 = vmatpush2.bf16.msra.mxu0 0
        %369 = vmatprep.subr.bf16.mxu0 0
        %370 = vmatpush2.bf16.msra.mxu0 0
        %371 = vmatprep.mubr.bf16.mxu0 0
        %372 = vmatmul.mubr.bf16.gmra.mxu0 %v292
        %v373 = vpop.f32.mrf.mxu0
        %v374 = vadd.f32 0.0, %v373
        %v375 = vpop.f32.mrf.mxu0
        %v376 = vpop.f32.mrf.mxu0
        %v377 = vadd.f32 0.0, %v376
        %v378 = vpop.f32.mrf.mxu0
        %379 = vmatprep.mubr.bf16.mxu0 0
        %380 = vmatmul.mubr.bf16.gmra.mxu0 %v295
        %v381 = vpop.f32.mrf.mxu0
        %v382 = vadd.f32 0.0, %v381
        %v383 = vpop.f32.mrf.mxu0
        %v384 = vpop.f32.mrf.mxu0
        %v385 = vadd.f32 0.0, %v384
        %v386 = vpop.f32.mrf.mxu0
        %387 = vmatprep.mubr.bf16.mxu0 0
        %388 = vmatmul.mubr.bf16.gmra.mxu0 %v298
        %v389 = vpop.f32.mrf.mxu0
        %v390 = vadd.f32 0.0, %v389
        %v391 = vpop.f32.mrf.mxu0
        %v392 = vpop.f32.mrf.mxu0
        %v393 = vadd.f32 0.0, %v392
        %v394 = vpop.f32.mrf.mxu0
        %395 = vmatprep.mubr.bf16.mxu0 0
        %396 = vmatmul.mubr.bf16.gmra.mxu0 %v301
        %v397 = vpop.f32.mrf.mxu0
        %v398 = vadd.f32 0.0, %v397
        %v399 = vpop.f32.mrf.mxu0
        %v400 = vpop.f32.mrf.mxu0
        %v401 = vadd.f32 0.0, %v400
        %v402 = vpop.f32.mrf.mxu0
        %403 = vmatprep.mubr.bf16.mxu0 0
        %404 = vmatmul.mubr.bf16.gmra.mxu0 %v304
        %v405 = vpop.f32.mrf.mxu0
        %v406 = vadd.f32 0.0, %v405
        %v407 = vpop.f32.mrf.mxu0
        %v408 = vpop.f32.mrf.mxu0
        %v409 = vadd.f32 0.0, %v408
        %v410 = vpop.f32.mrf.mxu0
        %411 = vmatprep.mubr.bf16.mxu0 0
        %412 = vmatmul.mubr.bf16.gmra.mxu0 %v307
        %v413 = vpop.f32.mrf.mxu0
        %v414 = vadd.f32 0.0, %v413
        %v415 = vpop.f32.mrf.mxu0
        %v416 = vpop.f32.mrf.mxu0
        %v417 = vadd.f32 0.0, %v416
        %v418 = vpop.f32.mrf.mxu0
        %419 = vmatprep.mubr.bf16.mxu0 0
        %420 = vmatmul.mubr.bf16.gmra.mxu0 %v310
        %v421 = vpop.f32.mrf.mxu0
        %v422 = vadd.f32 0.0, %v421
        %v423 = vpop.f32.mrf.mxu0
        %v424 = vpop.f32.mrf.mxu0
        %v425 = vadd.f32 0.0, %v424
        %v426 = vpop.f32.mrf.mxu0
        %427 = vmatprep.mubr.bf16.mxu0 0
        %428 = vmatmul.mubr.bf16.gmra.mxu0 %v313
        %v429 = vpop.f32.mrf.mxu0
        %v430 = vadd.f32 0.0, %v429
        %v431 = vpop.f32.mrf.mxu0
        %v432 = vpop.f32.mrf.mxu0
        %v433 = vadd.f32 0.0, %v432
        %v434 = vpop.f32.mrf.mxu0
        %435 = vmatprep.mubr.bf16.mxu0 0
        %436 = vmatmul.mubr.bf16.gmra.mxu0 %v316
        %v437 = vpop.f32.mrf.mxu0
        %v438 = vadd.f32 0.0, %v437
        %v439 = vpop.f32.mrf.mxu0
        %v440 = vpop.f32.mrf.mxu0
        %v441 = vadd.f32 0.0, %v440
        %v442 = vpop.f32.mrf.mxu0
        %443 = vmatprep.mubr.bf16.mxu0 0
        %444 = vmatmul.mubr.bf16.gmra.mxu0 %v319
        %v445 = vpop.f32.mrf.mxu0
        %v446 = vadd.f32 0.0, %v445
        %v447 = vpop.f32.mrf.mxu0
        %v448 = vpop.f32.mrf.mxu0
        %v449 = vadd.f32 0.0, %v448
        %v450 = vpop.f32.mrf.mxu0
        %451 = vmatprep.mubr.bf16.mxu0 0
        %452 = vmatmul.mubr.bf16.gmra.mxu0 %v322
        %v453 = vpop.f32.mrf.mxu0
        %v454 = vadd.f32 0.0, %v453
        %v455 = vpop.f32.mrf.mxu0
        %v456 = vpop.f32.mrf.mxu0
        %v457 = vadd.f32 0.0, %v456
        %v458 = vpop.f32.mrf.mxu0
        %459 = vmatprep.mubr.bf16.mxu0 0
        %460 = vmatmul.mubr.bf16.gmra.mxu0 %v325
        %v461 = vpop.f32.mrf.mxu0
        %v462 = vadd.f32 0.0, %v461
        %v463 = vpop.f32.mrf.mxu0
        %v464 = vpop.f32.mrf.mxu0
        %v465 = vadd.f32 0.0, %v464
        %v466 = vpop.f32.mrf.mxu0
        %467 = vmatprep.mubr.bf16.mxu0 0
        %468 = vmatmul.mubr.bf16.gmra.mxu0 %v328
        %v469 = vpop.f32.mrf.mxu0
        %v470 = vadd.f32 0.0, %v469
        %v471 = vpop.f32.mrf.mxu0
        %v472 = vpop.f32.mrf.mxu0
        %v473 = vadd.f32 0.0, %v472
        %v474 = vpop.f32.mrf.mxu0
        %475 = vmatprep.mubr.bf16.mxu0 0
        %476 = vmatmul.mubr.bf16.gmra.mxu0 %v331
        %v477 = vpop.f32.mrf.mxu0
        %v478 = vadd.f32 0.0, %v477
        %v479 = vpop.f32.mrf.mxu0
        %v480 = vpop.f32.mrf.mxu0
        %v481 = vadd.f32 0.0, %v480
        %v482 = vpop.f32.mrf.mxu0
        %483 = vmatprep.mubr.bf16.mxu0 0
        %484 = vmatmul.mubr.bf16.gmra.mxu0 %v334
        %v485 = vpop.f32.mrf.mxu0
        %v486 = vadd.f32 0.0, %v485
        %v487 = vpop.f32.mrf.mxu0
        %v488 = vpop.f32.mrf.mxu0
        %v489 = vadd.f32 0.0, %v488
        %v490 = vpop.f32.mrf.mxu0
        %491 = vmatprep.mubr.bf16.mxu0 0
        %492 = vmatmul.mubr.bf16.gmra.mxu0 %v337
        %v493 = vpop.f32.mrf.mxu0
        %v494 = vadd.f32 0.0, %v493
        %v495 = vpop.f32.mrf.mxu0
        %v496 = vpop.f32.mrf.mxu0
        %v497 = vadd.f32 0.0, %v496
        %v498 = vpop.f32.mrf.mxu0
        %499 = vdwg.mxu0
        %500 = vst [vmem:[%s163] sm:$0xff] %v374
        %501 = vst [vmem:[%s163 + $0x8] sm:$0xff] %v377
        %502 = vst [vmem:[%s163 + $0x10] sm:$0xff] %v382
        %503 = vst [vmem:[%s163 + $0x18] sm:$0xff] %v385
        %504 = vst [vmem:[%s163 + $0x20] sm:$0xff] %v390
        %505 = vst [vmem:[%s163 + $0x28] sm:$0xff] %v393
        %506 = vst [vmem:[%s163 + $0x30] sm:$0xff] %v398
        %507 = vst [vmem:[%s163 + $0x38] sm:$0xff] %v401
        %508 = vst [vmem:[%s163 + $0x40] sm:$0xff] %v406
        %509 = vst [vmem:[%s163 + $0x48] sm:$0xff] %v409
        %510 = vst [vmem:[%s163 + $0x50] sm:$0xff] %v414
        %511 = vst [vmem:[%s163 + $0x58] sm:$0xff] %v417
        %512 = vst [vmem:[%s163 + $0x60] sm:$0xff] %v422
        %513 = vst [vmem:[%s163 + $0x68] sm:$0xff] %v425
        %514 = vst [vmem:[%s163 + $0x70] sm:$0xff] %v430
        %515 = vst [vmem:[%s163 + $0x78] sm:$0xff] %v433
        %516 = vst [vmem:[%s163 + $0x80] sm:$0xff] %v438
        %517 = vst [vmem:[%s163 + $0x88] sm:$0xff] %v441
        %518 = vst [vmem:[%s163 + $0x90] sm:$0xff] %v446
        %519 = vst [vmem:[%s163 + $0x98] sm:$0xff] %v449
        %520 = vst [vmem:[%s163 + $0xa0] sm:$0xff] %v454
        %521 = vst [vmem:[%s163 + $0xa8] sm:$0xff] %v457
        %522 = vst [vmem:[%s163 + $0xb0] sm:$0xff] %v462
        %523 = vst [vmem:[%s163 + $0xb8] sm:$0xff] %v465
        %524 = vst [vmem:[%s163 + $0xc0] sm:$0xff] %v470
        %525 = vst [vmem:[%s163 + $0xc8] sm:$0xff] %v473
        %526 = vst [vmem:[%s163 + $0xd0] sm:$0xff] %v478
        %527 = vst [vmem:[%s163 + $0xd8] sm:$0xff] %v481
        %528 = vst [vmem:[%s163 + $0xe0] sm:$0xff] %v486
        %529 = vst [vmem:[%s163 + $0xe8] sm:$0xff] %v489
        %530 = vst [vmem:[%s163 + $0xf0] sm:$0xff] %v494
        %531 = vst [vmem:[%s163 + $0xf8] sm:$0xff] %v497
        %v532 = vld [vmem:[%s168] sm:$0xf]
        %v533 = vld [vmem:[%s168 + $0x4] sm:$0xf]
        %v534 = vld [vmem:[%s168 + $0x8] sm:$0x1]
        %v535 = vld [vmem:[%s168 + $0xc] sm:$0xf]
        %v536 = vld [vmem:[%s168 + $0x10] sm:$0xf]
        %v537 = vld [vmem:[%s168 + $0x14] sm:$0x1]
        %v538 = vld [vmem:[%s168 + $0x18] sm:$0xf]
        %v539 = vld [vmem:[%s168 + $0x1c] sm:$0xf]
        %v540 = vld [vmem:[%s168 + $0x20] sm:$0x1]
        %v541 = vld [vmem:[%s168 + $0x24] sm:$0xf]
        %v542 = vld [vmem:[%s168 + $0x28] sm:$0xf]
        %v543 = vld [vmem:[%s168 + $0x2c] sm:$0x1]
        %v544 = vld [vmem:[%s168 + $0x30] sm:$0xf]
        %v545 = vld [vmem:[%s168 + $0x34] sm:$0xf]
        %v546 = vld [vmem:[%s168 + $0x38] sm:$0x1]
        %v547 = vld [vmem:[%s168 + $0x3c] sm:$0xf]
        %v548 = vld [vmem:[%s168 + $0x40] sm:$0xf]
        %v549 = vld [vmem:[%s168 + $0x44] sm:$0x1]
        %v550 = vld [vmem:[%s168 + $0x48] sm:$0xf]
        %v551 = vld [vmem:[%s168 + $0x4c] sm:$0xf]
        %v552 = vld [vmem:[%s168 + $0x50] sm:$0x1]
        %v553 = vld [vmem:[%s168 + $0x54] sm:$0xf]
        %v554 = vld [vmem:[%s168 + $0x58] sm:$0xf]
        %v555 = vld [vmem:[%s168 + $0x5c] sm:$0x1]
        %v556 = vld [vmem:[%s168 + $0x60] sm:$0xf]
        %v557 = vld [vmem:[%s168 + $0x64] sm:$0xf]
        %v558 = vld [vmem:[%s168 + $0x68] sm:$0x1]
        %v559 = vld [vmem:[%s168 + $0x6c] sm:$0xf]
        %v560 = vld [vmem:[%s168 + $0x70] sm:$0xf]
        %v561 = vld [vmem:[%s168 + $0x74] sm:$0x1]
        %v562 = vld [vmem:[%s168 + $0x78] sm:$0xf]
        %v563 = vld [vmem:[%s168 + $0x7c] sm:$0xf]
        %v564 = vld [vmem:[%s168 + $0x80] sm:$0x1]
        %v565 = vld [vmem:[%s168 + $0x84] sm:$0xf]
        %v566 = vld [vmem:[%s168 + $0x88] sm:$0xf]
        %v567 = vld [vmem:[%s168 + $0x8c] sm:$0x1]
        %v568 = vld [vmem:[%s168 + $0x90] sm:$0xf]
        %v569 = vld [vmem:[%s168 + $0x94] sm:$0xf]
        %v570 = vld [vmem:[%s168 + $0x98] sm:$0x1]
        %v571 = vld [vmem:[%s168 + $0x9c] sm:$0xf]
        %v572 = vld [vmem:[%s168 + $0xa0] sm:$0xf]
        %v573 = vld [vmem:[%s168 + $0xa4] sm:$0x1]
        %v574 = vld [vmem:[%s168 + $0xa8] sm:$0xf]
        %v575 = vld [vmem:[%s168 + $0xac] sm:$0xf]
        %v576 = vld [vmem:[%s168 + $0xb0] sm:$0x1]
        %v577 = vld [vmem:[%s168 + $0xb4] sm:$0xf]
        %v578 = vld [vmem:[%s168 + $0xb8] sm:$0xf]
        %v579 = vld [vmem:[%s168 + $0xbc] sm:$0x1]
        %vm580 = vsmask.f32 3328
        %vm581 = vsmask.f32 7440
        %vm582 = vmor %vm580, %vm581
        %v584 = vshrl.u32 %v532, 16
        %v586 = vrot.slane %v584, 4
        %v587 = vshll.u32 %v532, 16
        %v589 = vrot.slane %v587, 5
        %v590 = vor.u32 %v586, %v589
        %v591 = vrot.slane %v590, 4
        %v593 = vshll.u32 %v533, 16
        %v595 = vrot.slane %v593, 5
        %v596 = vsel %vm582, %v591, %v595
        %v597 = vshrl.u32 %v533, 16
        %v599 = vrot.slane %v597, 4
        %v600 = vor.u32 %v599, %v595
        %v601 = vrot.slane %v600, 4
        %v603 = vshll.u32 %v534, 16
        %v605 = vrot.slane %v603, 5
        %v606 = vsel %vm582, %v601, %v605
        %v608 = vshrl.u32 %v535, 16
        %v610 = vrot.slane %v608, 4
        %v611 = vshll.u32 %v535, 16
        %v613 = vrot.slane %v611, 5
        %v614 = vor.u32 %v610, %v613
        %v615 = vrot.slane %v614, 4
        %v617 = vshll.u32 %v536, 16
        %v619 = vrot.slane %v617, 5
        %v620 = vsel %vm582, %v615, %v619
        %v621 = vshrl.u32 %v536, 16
        %v623 = vrot.slane %v621, 4
        %v624 = vor.u32 %v623, %v619
        %v625 = vrot.slane %v624, 4
        %v627 = vshll.u32 %v537, 16
        %v629 = vrot.slane %v627, 5
        %v630 = vsel %vm582, %v625, %v629
        %v632 = vshrl.u32 %v538, 16
        %v634 = vrot.slane %v632, 4
        %v635 = vshll.u32 %v538, 16
        %v637 = vrot.slane %v635, 5
        %v638 = vor.u32 %v634, %v637
        %v639 = vrot.slane %v638, 4
        %v641 = vshll.u32 %v539, 16
        %v643 = vrot.slane %v641, 5
        %v644 = vsel %vm582, %v639, %v643
        %v645 = vshrl.u32 %v539, 16
        %v647 = vrot.slane %v645, 4
        %v648 = vor.u32 %v647, %v643
        %v649 = vrot.slane %v648, 4
        %v651 = vshll.u32 %v540, 16
        %v653 = vrot.slane %v651, 5
        %v654 = vsel %vm582, %v649, %v653
        %v656 = vshrl.u32 %v541, 16
        %v658 = vrot.slane %v656, 4
        %v659 = vshll.u32 %v541, 16
        %v661 = vrot.slane %v659, 5
        %v662 = vor.u32 %v658, %v661
        %v663 = vrot.slane %v662, 4
        %v665 = vshll.u32 %v542, 16
        %v667 = vrot.slane %v665, 5
        %v668 = vsel %vm582, %v663, %v667
        %v669 = vshrl.u32 %v542, 16
        %v671 = vrot.slane %v669, 4
        %v672 = vor.u32 %v671, %v667
        %v673 = vrot.slane %v672, 4
        %v675 = vshll.u32 %v543, 16
        %v677 = vrot.slane %v675, 5
        %v678 = vsel %vm582, %v673, %v677
        %v680 = vshrl.u32 %v544, 16
        %v682 = vrot.slane %v680, 4
        %v683 = vshll.u32 %v544, 16
        %v685 = vrot.slane %v683, 5
        %v686 = vor.u32 %v682, %v685
        %v687 = vrot.slane %v686, 4
        %v689 = vshll.u32 %v545, 16
        %v691 = vrot.slane %v689, 5
        %v692 = vsel %vm582, %v687, %v691
        %v693 = vshrl.u32 %v545, 16
        %v695 = vrot.slane %v693, 4
        %v696 = vor.u32 %v695, %v691
        %v697 = vrot.slane %v696, 4
        %v699 = vshll.u32 %v546, 16
        %v701 = vrot.slane %v699, 5
        %v702 = vsel %vm582, %v697, %v701
        %v704 = vshrl.u32 %v547, 16
        %v706 = vrot.slane %v704, 4
        %v707 = vshll.u32 %v547, 16
        %v709 = vrot.slane %v707, 5
        %v710 = vor.u32 %v706, %v709
        %v711 = vrot.slane %v710, 4
        %v713 = vshll.u32 %v548, 16
        %v715 = vrot.slane %v713, 5
        %v716 = vsel %vm582, %v711, %v715
        %v717 = vshrl.u32 %v548, 16
        %v719 = vrot.slane %v717, 4
        %v720 = vor.u32 %v719, %v715
        %v721 = vrot.slane %v720, 4
        %v723 = vshll.u32 %v549, 16
        %v725 = vrot.slane %v723, 5
        %v726 = vsel %vm582, %v721, %v725
        %v728 = vshrl.u32 %v550, 16
        %v730 = vrot.slane %v728, 4
        %v731 = vshll.u32 %v550, 16
        %v733 = vrot.slane %v731, 5
        %v734 = vor.u32 %v730, %v733
        %v735 = vrot.slane %v734, 4
        %v737 = vshll.u32 %v551, 16
        %v739 = vrot.slane %v737, 5
        %v740 = vsel %vm582, %v735, %v739
        %v741 = vshrl.u32 %v551, 16
        %v743 = vrot.slane %v741, 4
        %v744 = vor.u32 %v743, %v739
        %v745 = vrot.slane %v744, 4
        %v747 = vshll.u32 %v552, 16
        %v749 = vrot.slane %v747, 5
        %v750 = vsel %vm582, %v745, %v749
        %v752 = vshrl.u32 %v553, 16
        %v754 = vrot.slane %v752, 4
        %v755 = vshll.u32 %v553, 16
        %v757 = vrot.slane %v755, 5
        %v758 = vor.u32 %v754, %v757
        %v759 = vrot.slane %v758, 4
        %v761 = vshll.u32 %v554, 16
        %v763 = vrot.slane %v761, 5
        %v764 = vsel %vm582, %v759, %v763
        %v765 = vshrl.u32 %v554, 16
        %v767 = vrot.slane %v765, 4
        %v768 = vor.u32 %v767, %v763
        %v769 = vrot.slane %v768, 4
        %v771 = vshll.u32 %v555, 16
        %v773 = vrot.slane %v771, 5
        %v774 = vsel %vm582, %v769, %v773
        %v776 = vshrl.u32 %v556, 16
        %v778 = vrot.slane %v776, 4
        %v779 = vshll.u32 %v556, 16
        %v781 = vrot.slane %v779, 5
        %v782 = vor.u32 %v778, %v781
        %v783 = vrot.slane %v782, 4
        %v785 = vshll.u32 %v557, 16
        %v787 = vrot.slane %v785, 5
        %v788 = vsel %vm582, %v783, %v787
        %v789 = vshrl.u32 %v557, 16
        %v791 = vrot.slane %v789, 4
        %v792 = vor.u32 %v791, %v787
        %v793 = vrot.slane %v792, 4
        %v795 = vshll.u32 %v558, 16
        %v797 = vrot.slane %v795, 5
        %v798 = vsel %vm582, %v793, %v797
        %v800 = vshrl.u32 %v559, 16
        %v802 = vrot.slane %v800, 4
        %v803 = vshll.u32 %v559, 16
        %v805 = vrot.slane %v803, 5
        %v806 = vor.u32 %v802, %v805
        %v807 = vrot.slane %v806, 4
        %v809 = vshll.u32 %v560, 16
        %v811 = vrot.slane %v809, 5
        %v812 = vsel %vm582, %v807, %v811
        %v813 = vshrl.u32 %v560, 16
        %v815 = vrot.slane %v813, 4
        %v816 = vor.u32 %v815, %v811
        %v817 = vrot.slane %v816, 4
        %v819 = vshll.u32 %v561, 16
        %v821 = vrot.slane %v819, 5
        %v822 = vsel %vm582, %v817, %v821
        %v824 = vshrl.u32 %v562, 16
        %v826 = vrot.slane %v824, 4
        %v827 = vshll.u32 %v562, 16
        %v829 = vrot.slane %v827, 5
        %v830 = vor.u32 %v826, %v829
        %v831 = vrot.slane %v830, 4
        %v833 = vshll.u32 %v563, 16
        %v835 = vrot.slane %v833, 5
        %v836 = vsel %vm582, %v831, %v835
        %v837 = vshrl.u32 %v563, 16
        %v839 = vrot.slane %v837, 4
        %v840 = vor.u32 %v839, %v835
        %v841 = vrot.slane %v840, 4
        %v843 = vshll.u32 %v564, 16
        %v845 = vrot.slane %v843, 5
        %v846 = vsel %vm582, %v841, %v845
        %v848 = vshrl.u32 %v565, 16
        %v850 = vrot.slane %v848, 4
        %v851 = vshll.u32 %v565, 16
        %v853 = vrot.slane %v851, 5
        %v854 = vor.u32 %v850, %v853
        %v855 = vrot.slane %v854, 4
        %v857 = vshll.u32 %v566, 16
        %v859 = vrot.slane %v857, 5
        %v860 = vsel %vm582, %v855, %v859
        %v861 = vshrl.u32 %v566, 16
        %v863 = vrot.slane %v861, 4
        %v864 = vor.u32 %v863, %v859
        %v865 = vrot.slane %v864, 4
        %v867 = vshll.u32 %v567, 16
        %v869 = vrot.slane %v867, 5
        %v870 = vsel %vm582, %v865, %v869
        %v872 = vshrl.u32 %v568, 16
        %v874 = vrot.slane %v872, 4
        %v875 = vshll.u32 %v568, 16
        %v877 = vrot.slane %v875, 5
        %v878 = vor.u32 %v874, %v877
        %v879 = vrot.slane %v878, 4
        %v881 = vshll.u32 %v569, 16
        %v883 = vrot.slane %v881, 5
        %v884 = vsel %vm582, %v879, %v883
        %v885 = vshrl.u32 %v569, 16
        %v887 = vrot.slane %v885, 4
        %v888 = vor.u32 %v887, %v883
        %v889 = vrot.slane %v888, 4
        %v891 = vshll.u32 %v570, 16
        %v893 = vrot.slane %v891, 5
        %v894 = vsel %vm582, %v889, %v893
        %v896 = vshrl.u32 %v571, 16
        %v898 = vrot.slane %v896, 4
        %v899 = vshll.u32 %v571, 16
        %v901 = vrot.slane %v899, 5
        %v902 = vor.u32 %v898, %v901
        %v903 = vrot.slane %v902, 4
        %v905 = vshll.u32 %v572, 16
        %v907 = vrot.slane %v905, 5
        %v908 = vsel %vm582, %v903, %v907
        %v909 = vshrl.u32 %v572, 16
        %v911 = vrot.slane %v909, 4
        %v912 = vor.u32 %v911, %v907
        %v913 = vrot.slane %v912, 4
        %v915 = vshll.u32 %v573, 16
        %v917 = vrot.slane %v915, 5
        %v918 = vsel %vm582, %v913, %v917
        %v920 = vshrl.u32 %v574, 16
        %v922 = vrot.slane %v920, 4
        %v923 = vshll.u32 %v574, 16
        %v925 = vrot.slane %v923, 5
        %v926 = vor.u32 %v922, %v925
        %v927 = vrot.slane %v926, 4
        %v929 = vshll.u32 %v575, 16
        %v931 = vrot.slane %v929, 5
        %v932 = vsel %vm582, %v927, %v931
        %v933 = vshrl.u32 %v575, 16
        %v935 = vrot.slane %v933, 4
        %v936 = vor.u32 %v935, %v931
        %v937 = vrot.slane %v936, 4
        %v939 = vshll.u32 %v576, 16
        %v941 = vrot.slane %v939, 5
        %v942 = vsel %vm582, %v937, %v941
        %v944 = vshrl.u32 %v577, 16
        %v946 = vrot.slane %v944, 4
        %v947 = vshll.u32 %v577, 16
        %v949 = vrot.slane %v947, 5
        %v950 = vor.u32 %v946, %v949
        %v951 = vrot.slane %v950, 4
        %v953 = vshll.u32 %v578, 16
        %v955 = vrot.slane %v953, 5
        %v956 = vsel %vm582, %v951, %v955
        %v957 = vshrl.u32 %v578, 16
        %v959 = vrot.slane %v957, 4
        %v960 = vor.u32 %v959, %v955
        %v961 = vrot.slane %v960, 4
        %v963 = vshll.u32 %v579, 16
        %v965 = vrot.slane %v963, 5
        %v966 = vsel %vm582, %v961, %v965
        %s967 = scalar_lea.vmem %s1, 8
        %v968 = vld [vmem:[%s967] sm:$0xf]
        %v969 = vld [vmem:[%s967 + $0x4] sm:$0xf]
        %v970 = vunpack.c.l.b16 %v596
        %v971 = vunpack.c.l.b16 %v606
        %v972 = vunpack.c.l.b16 %v620
        %v973 = vunpack.c.l.b16 %v630
        %v974 = vunpack.c.l.b16 %v644
        %v975 = vunpack.c.l.b16 %v654
        %v976 = vunpack.c.l.b16 %v668
        %v977 = vunpack.c.l.b16 %v678
        %v978 = vunpack.c.l.b16 %v692
        %v979 = vunpack.c.l.b16 %v702
        %v980 = vunpack.c.l.b16 %v716
        %v981 = vunpack.c.l.b16 %v726
        %v982 = vunpack.c.l.b16 %v740
        %v983 = vunpack.c.l.b16 %v750
        %v984 = vunpack.c.l.b16 %v764
        %v985 = vunpack.c.l.b16 %v774
        %v986 = vunpack.c.l.b16 %v788
        %v987 = vunpack.c.l.b16 %v798
        %v988 = vunpack.c.l.b16 %v812
        %v989 = vunpack.c.l.b16 %v822
        %v990 = vunpack.c.l.b16 %v836
        %v991 = vunpack.c.l.b16 %v846
        %v992 = vunpack.c.l.b16 %v860
        %v993 = vunpack.c.l.b16 %v870
        %v994 = vunpack.c.l.b16 %v884
        %v995 = vunpack.c.l.b16 %v894
        %v996 = vunpack.c.l.b16 %v908
        %v997 = vunpack.c.l.b16 %v918
        %v998 = vunpack.c.l.b16 %v932
        %v999 = vunpack.c.l.b16 %v942
        %v1000 = vunpack.c.l.b16 %v956
        %v1001 = vunpack.c.l.b16 %v966
        %v1002 = vpack.c.b16 %v971, %v970
        %v1003 = vpack.c.b16 %v973, %v972
        %v1004 = vpack.c.b16 %v975, %v974
        %v1005 = vpack.c.b16 %v977, %v976
        %v1006 = vpack.c.b16 %v979, %v978
        %v1007 = vpack.c.b16 %v981, %v980
        %v1008 = vpack.c.b16 %v983, %v982
        %v1009 = vpack.c.b16 %v985, %v984
        %v1010 = vpack.c.b16 %v987, %v986
        %v1011 = vpack.c.b16 %v989, %v988
        %v1012 = vpack.c.b16 %v991, %v990
        %v1013 = vpack.c.b16 %v993, %v992
        %v1014 = vpack.c.b16 %v995, %v994
        %v1015 = vpack.c.b16 %v997, %v996
        %v1016 = vpack.c.b16 %v999, %v998
        %v1017 = vpack.c.b16 %v1001, %v1000
        %v1020 = vunpack.c.l.b16 %v968
        %v1021 = vunpack.c.l.b16 %v969
        %v1022 = vpack.c.b16 %v1021, %v1020
        %v1025 = vsel %vm290, %v1002, 0
        %v1028 = vsel %vm290, %v1003, 0
        %v1031 = vsel %vm290, %v1004, 0
        %v1034 = vsel %vm290, %v1005, 0
        %v1037 = vsel %vm290, %v1006, 0
        %v1040 = vsel %vm290, %v1007, 0
        %v1043 = vsel %vm290, %v1008, 0
        %v1046 = vsel %vm290, %v1009, 0
        %v1049 = vsel %vm290, %v1010, 0
        %v1052 = vsel %vm290, %v1011, 0
        %v1055 = vsel %vm290, %v1012, 0
        %v1058 = vsel %vm290, %v1013, 0
        %v1061 = vsel %vm290, %v1014, 0
        %v1064 = vsel %vm290, %v1015, 0
        %v1067 = vsel %vm290, %v1016, 0
        %v1070 = vsel %vm290, %v1017, 0
        %1072 = vmatprep.subr.bf16.mxu0 0
        %1073 = vmatpush1.bf16.msra.mxu0 0
        %1074 = vmatprep.subr.bf16.mxu0 0
        %1075 = vmatpush1.bf16.msra.mxu0 0
        %1076 = vmatprep.subr.bf16.mxu0 0
        %1077 = vmatpush1.bf16.msra.mxu0 0
        %1078 = vmatprep.subr.bf16.mxu0 0
        %1079 = vmatpush1.bf16.msra.mxu0 0
        %1080 = vmatprep.subr.bf16.mxu0 0
        %1081 = vmatpush1.bf16.msra.mxu0 0
        %1082 = vmatprep.subr.bf16.mxu0 0
        %1083 = vmatpush1.bf16.msra.mxu0 0
        %1084 = vmatprep.subr.bf16.mxu0 0
        %1085 = vmatpush1.bf16.msra.mxu0 0
        %1086 = vmatprep.subr.bf16.mxu0 0
        %1087 = vmatpush1.bf16.msra.mxu0 %v1022
        %1088 = vmatprep.subr.bf16.mxu0 0
        %1089 = vmatpush2.bf16.msra.mxu0 0
        %1090 = vmatprep.subr.bf16.mxu0 0
        %1091 = vmatpush2.bf16.msra.mxu0 0
        %1092 = vmatprep.subr.bf16.mxu0 0
        %1093 = vmatpush2.bf16.msra.mxu0 0
        %1094 = vmatprep.subr.bf16.mxu0 0
        %1095 = vmatpush2.bf16.msra.mxu0 0
        %1096 = vmatprep.subr.bf16.mxu0 0
        %1097 = vmatpush2.bf16.msra.mxu0 0
        %1098 = vmatprep.subr.bf16.mxu0 0
        %1099 = vmatpush2.bf16.msra.mxu0 0
        %1100 = vmatprep.subr.bf16.mxu0 0
        %1101 = vmatpush2.bf16.msra.mxu0 0
        %1102 = vmatprep.subr.bf16.mxu0 0
        %1103 = vmatpush2.bf16.msra.mxu0 0
        %1104 = vmatprep.mubr.bf16.mxu0 0
        %1105 = vmatmul.mubr.bf16.gmra.mxu0 %v1025
        %v1106 = vpop.f32.mrf.mxu0
        %v1107 = vadd.f32 0.0, %v1106
        %v1108 = vpop.f32.mrf.mxu0
        %v1109 = vpop.f32.mrf.mxu0
        %v1110 = vadd.f32 0.0, %v1109
        %v1111 = vpop.f32.mrf.mxu0
        %1112 = vmatprep.mubr.bf16.mxu0 0
        %1113 = vmatmul.mubr.bf16.gmra.mxu0 %v1028
        %v1114 = vpop.f32.mrf.mxu0
        %v1115 = vadd.f32 0.0, %v1114
        %v1116 = vpop.f32.mrf.mxu0
        %v1117 = vpop.f32.mrf.mxu0
        %v1118 = vadd.f32 0.0, %v1117
        %v1119 = vpop.f32.mrf.mxu0
        %1120 = vmatprep.mubr.bf16.mxu0 0
        %1121 = vmatmul.mubr.bf16.gmra.mxu0 %v1031
        %v1122 = vpop.f32.mrf.mxu0
        %v1123 = vadd.f32 0.0, %v1122
        %v1124 = vpop.f32.mrf.mxu0
        %v1125 = vpop.f32.mrf.mxu0
        %v1126 = vadd.f32 0.0, %v1125
        %v1127 = vpop.f32.mrf.mxu0
        %1128 = vmatprep.mubr.bf16.mxu0 0
        %1129 = vmatmul.mubr.bf16.gmra.mxu0 %v1034
        %v1130 = vpop.f32.mrf.mxu0
        %v1131 = vadd.f32 0.0, %v1130
        %v1132 = vpop.f32.mrf.mxu0
        %v1133 = vpop.f32.mrf.mxu0
        %v1134 = vadd.f32 0.0, %v1133
        %v1135 = vpop.f32.mrf.mxu0
        %1136 = vmatprep.mubr.bf16.mxu0 0
        %1137 = vmatmul.mubr.bf16.gmra.mxu0 %v1037
        %v1138 = vpop.f32.mrf.mxu0
        %v1139 = vadd.f32 0.0, %v1138
        %v1140 = vpop.f32.mrf.mxu0
        %v1141 = vpop.f32.mrf.mxu0
        %v1142 = vadd.f32 0.0, %v1141
        %v1143 = vpop.f32.mrf.mxu0
        %1144 = vmatprep.mubr.bf16.mxu0 0
        %1145 = vmatmul.mubr.bf16.gmra.mxu0 %v1040
        %v1146 = vpop.f32.mrf.mxu0
        %v1147 = vadd.f32 0.0, %v1146
        %v1148 = vpop.f32.mrf.mxu0
        %v1149 = vpop.f32.mrf.mxu0
        %v1150 = vadd.f32 0.0, %v1149
        %v1151 = vpop.f32.mrf.mxu0
        %1152 = vmatprep.mubr.bf16.mxu0 0
        %1153 = vmatmul.mubr.bf16.gmra.mxu0 %v1043
        %v1154 = vpop.f32.mrf.mxu0
        %v1155 = vadd.f32 0.0, %v1154
        %v1156 = vpop.f32.mrf.mxu0
        %v1157 = vpop.f32.mrf.mxu0
        %v1158 = vadd.f32 0.0, %v1157
        %v1159 = vpop.f32.mrf.mxu0
        %1160 = vmatprep.mubr.bf16.mxu0 0
        %1161 = vmatmul.mubr.bf16.gmra.mxu0 %v1046
        %v1162 = vpop.f32.mrf.mxu0
        %v1163 = vadd.f32 0.0, %v1162
        %v1164 = vpop.f32.mrf.mxu0
        %v1165 = vpop.f32.mrf.mxu0
        %v1166 = vadd.f32 0.0, %v1165
        %v1167 = vpop.f32.mrf.mxu0
        %1168 = vmatprep.mubr.bf16.mxu0 0
        %1169 = vmatmul.mubr.bf16.gmra.mxu0 %v1049
        %v1170 = vpop.f32.mrf.mxu0
        %v1171 = vadd.f32 0.0, %v1170
        %v1172 = vpop.f32.mrf.mxu0
        %v1173 = vpop.f32.mrf.mxu0
        %v1174 = vadd.f32 0.0, %v1173
        %v1175 = vpop.f32.mrf.mxu0
        %1176 = vmatprep.mubr.bf16.mxu0 0
        %1177 = vmatmul.mubr.bf16.gmra.mxu0 %v1052
        %v1178 = vpop.f32.mrf.mxu0
        %v1179 = vadd.f32 0.0, %v1178
        %v1180 = vpop.f32.mrf.mxu0
        %v1181 = vpop.f32.mrf.mxu0
        %v1182 = vadd.f32 0.0, %v1181
        %v1183 = vpop.f32.mrf.mxu0
        %1184 = vmatprep.mubr.bf16.mxu0 0
        %1185 = vmatmul.mubr.bf16.gmra.mxu0 %v1055
        %v1186 = vpop.f32.mrf.mxu0
        %v1187 = vadd.f32 0.0, %v1186
        %v1188 = vpop.f32.mrf.mxu0
        %v1189 = vpop.f32.mrf.mxu0
        %v1190 = vadd.f32 0.0, %v1189
        %v1191 = vpop.f32.mrf.mxu0
        %1192 = vmatprep.mubr.bf16.mxu0 0
        %1193 = vmatmul.mubr.bf16.gmra.mxu0 %v1058
        %v1194 = vpop.f32.mrf.mxu0
        %v1195 = vadd.f32 0.0, %v1194
        %v1196 = vpop.f32.mrf.mxu0
        %v1197 = vpop.f32.mrf.mxu0
        %v1198 = vadd.f32 0.0, %v1197
        %v1199 = vpop.f32.mrf.mxu0
        %1200 = vmatprep.mubr.bf16.mxu0 0
        %1201 = vmatmul.mubr.bf16.gmra.mxu0 %v1061
        %v1202 = vpop.f32.mrf.mxu0
        %v1203 = vadd.f32 0.0, %v1202
        %v1204 = vpop.f32.mrf.mxu0
        %v1205 = vpop.f32.mrf.mxu0
        %v1206 = vadd.f32 0.0, %v1205
        %v1207 = vpop.f32.mrf.mxu0
        %1208 = vmatprep.mubr.bf16.mxu0 0
        %1209 = vmatmul.mubr.bf16.gmra.mxu0 %v1064
        %v1210 = vpop.f32.mrf.mxu0
        %v1211 = vadd.f32 0.0, %v1210
        %v1212 = vpop.f32.mrf.mxu0
        %v1213 = vpop.f32.mrf.mxu0
        %v1214 = vadd.f32 0.0, %v1213
        %v1215 = vpop.f32.mrf.mxu0
        %1216 = vmatprep.mubr.bf16.mxu0 0
        %1217 = vmatmul.mubr.bf16.gmra.mxu0 %v1067
        %v1218 = vpop.f32.mrf.mxu0
        %v1219 = vadd.f32 0.0, %v1218
        %v1220 = vpop.f32.mrf.mxu0
        %v1221 = vpop.f32.mrf.mxu0
        %v1222 = vadd.f32 0.0, %v1221
        %v1223 = vpop.f32.mrf.mxu0
        %1224 = vmatprep.mubr.bf16.mxu0 0
        %1225 = vmatmul.mubr.bf16.gmra.mxu0 %v1070
        %v1226 = vpop.f32.mrf.mxu0
        %v1227 = vadd.f32 0.0, %v1226
        %v1228 = vpop.f32.mrf.mxu0
        %v1229 = vpop.f32.mrf.mxu0
        %v1230 = vadd.f32 0.0, %v1229
        %v1231 = vpop.f32.mrf.mxu0
        %1232 = vdwg.mxu0
        %v1233 = vld [vmem:[%s163] sm:$0xff]
        %v1234 = vld [vmem:[%s163 + $0x8] sm:$0xff]
        %v1235 = vld [vmem:[%s163 + $0x10] sm:$0xff]
        %v1236 = vld [vmem:[%s163 + $0x18] sm:$0xff]
        %v1237 = vld [vmem:[%s163 + $0x20] sm:$0xff]
        %v1238 = vld [vmem:[%s163 + $0x28] sm:$0xff]
        %v1239 = vld [vmem:[%s163 + $0x30] sm:$0xff]
        %v1240 = vld [vmem:[%s163 + $0x38] sm:$0xff]
        %v1241 = vld [vmem:[%s163 + $0x40] sm:$0xff]
        %v1242 = vld [vmem:[%s163 + $0x48] sm:$0xff]
        %v1243 = vld [vmem:[%s163 + $0x50] sm:$0xff]
        %v1244 = vld [vmem:[%s163 + $0x58] sm:$0xff]
        %v1245 = vld [vmem:[%s163 + $0x60] sm:$0xff]
        %v1246 = vld [vmem:[%s163 + $0x68] sm:$0xff]
        %v1247 = vld [vmem:[%s163 + $0x70] sm:$0xff]
        %v1248 = vld [vmem:[%s163 + $0x78] sm:$0xff]
        %v1249 = vld [vmem:[%s163 + $0x80] sm:$0xff]
        %v1250 = vld [vmem:[%s163 + $0x88] sm:$0xff]
        %v1251 = vld [vmem:[%s163 + $0x90] sm:$0xff]
        %v1252 = vld [vmem:[%s163 + $0x98] sm:$0xff]
        %v1253 = vld [vmem:[%s163 + $0xa0] sm:$0xff]
        %v1254 = vld [vmem:[%s163 + $0xa8] sm:$0xff]
        %v1255 = vld [vmem:[%s163 + $0xb0] sm:$0xff]
        %v1256 = vld [vmem:[%s163 + $0xb8] sm:$0xff]
        %v1257 = vld [vmem:[%s163 + $0xc0] sm:$0xff]
        %v1258 = vld [vmem:[%s163 + $0xc8] sm:$0xff]
        %v1259 = vld [vmem:[%s163 + $0xd0] sm:$0xff]
        %v1260 = vld [vmem:[%s163 + $0xd8] sm:$0xff]
        %v1261 = vld [vmem:[%s163 + $0xe0] sm:$0xff]
        %v1262 = vld [vmem:[%s163 + $0xe8] sm:$0xff]
        %v1263 = vld [vmem:[%s163 + $0xf0] sm:$0xff]
        %v1264 = vld [vmem:[%s163 + $0xf8] sm:$0xff]
        %v1265 = vadd.f32 %v1233, %v1107
        %v1266 = vadd.f32 %v1234, %v1110
        %v1267 = vadd.f32 %v1235, %v1115
        %v1268 = vadd.f32 %v1236, %v1118
        %v1269 = vadd.f32 %v1237, %v1123
        %v1270 = vadd.f32 %v1238, %v1126
        %v1271 = vadd.f32 %v1239, %v1131
        %v1272 = vadd.f32 %v1240, %v1134
        %v1273 = vadd.f32 %v1241, %v1139
        %v1274 = vadd.f32 %v1242, %v1142
        %v1275 = vadd.f32 %v1243, %v1147
        %v1276 = vadd.f32 %v1244, %v1150
        %v1277 = vadd.f32 %v1245, %v1155
        %v1278 = vadd.f32 %v1246, %v1158
        %v1279 = vadd.f32 %v1247, %v1163
        %v1280 = vadd.f32 %v1248, %v1166
        %v1281 = vadd.f32 %v1249, %v1171
        %v1282 = vadd.f32 %v1250, %v1174
        %v1283 = vadd.f32 %v1251, %v1179
        %v1284 = vadd.f32 %v1252, %v1182
        %v1285 = vadd.f32 %v1253, %v1187
        %v1286 = vadd.f32 %v1254, %v1190
        %v1287 = vadd.f32 %v1255, %v1195
        %v1288 = vadd.f32 %v1256, %v1198
        %v1289 = vadd.f32 %v1257, %v1203
        %v1290 = vadd.f32 %v1258, %v1206
        %v1291 = vadd.f32 %v1259, %v1211
        %v1292 = vadd.f32 %v1260, %v1214
        %v1293 = vadd.f32 %v1261, %v1219
        %v1294 = vadd.f32 %v1262, %v1222
        %v1295 = vadd.f32 %v1263, %v1227
        %v1296 = vadd.f32 %v1264, %v1230
        %1297 = vst [vmem:[%s163] sm:$0xff] %v1265
        %1298 = vst [vmem:[%s163 + $0x8] sm:$0xff] %v1266
        %1299 = vst [vmem:[%s163 + $0x10] sm:$0xff] %v1267
        %1300 = vst [vmem:[%s163 + $0x18] sm:$0xff] %v1268
        %1301 = vst [vmem:[%s163 + $0x20] sm:$0xff] %v1269
        %1302 = vst [vmem:[%s163 + $0x28] sm:$0xff] %v1270
        %1303 = vst [vmem:[%s163 + $0x30] sm:$0xff] %v1271
        %1304 = vst [vmem:[%s163 + $0x38] sm:$0xff] %v1272
        %1305 = vst [vmem:[%s163 + $0x40] sm:$0xff] %v1273
        %1306 = vst [vmem:[%s163 + $0x48] sm:$0xff] %v1274
        %1307 = vst [vmem:[%s163 + $0x50] sm:$0xff] %v1275
        %1308 = vst [vmem:[%s163 + $0x58] sm:$0xff] %v1276
        %1309 = vst [vmem:[%s163 + $0x60] sm:$0xff] %v1277
        %1310 = vst [vmem:[%s163 + $0x68] sm:$0xff] %v1278
        %1311 = vst [vmem:[%s163 + $0x70] sm:$0xff] %v1279
        %1312 = vst [vmem:[%s163 + $0x78] sm:$0xff] %v1280
        %1313 = vst [vmem:[%s163 + $0x80] sm:$0xff] %v1281
        %1314 = vst [vmem:[%s163 + $0x88] sm:$0xff] %v1282
        %1315 = vst [vmem:[%s163 + $0x90] sm:$0xff] %v1283
        %1316 = vst [vmem:[%s163 + $0x98] sm:$0xff] %v1284
        %1317 = vst [vmem:[%s163 + $0xa0] sm:$0xff] %v1285
        %1318 = vst [vmem:[%s163 + $0xa8] sm:$0xff] %v1286
        %1319 = vst [vmem:[%s163 + $0xb0] sm:$0xff] %v1287
        %1320 = vst [vmem:[%s163 + $0xb8] sm:$0xff] %v1288
        %1321 = vst [vmem:[%s163 + $0xc0] sm:$0xff] %v1289
        %1322 = vst [vmem:[%s163 + $0xc8] sm:$0xff] %v1290
        %1323 = vst [vmem:[%s163 + $0xd0] sm:$0xff] %v1291
        %1324 = vst [vmem:[%s163 + $0xd8] sm:$0xff] %v1292
        %1325 = vst [vmem:[%s163 + $0xe0] sm:$0xff] %v1293
        %1326 = vst [vmem:[%s163 + $0xe8] sm:$0xff] %v1294
        %1327 = vst [vmem:[%s163 + $0xf0] sm:$0xff] %v1295
        %1328 = vst [vmem:[%s163 + $0xf8] sm:$0xff] %v1296
        %v1329 = vld [vmem:[%s168] sm:$0xe]
        %v1330 = vld [vmem:[%s168 + $0x4] sm:$0xf]
        %v1331 = vld [vmem:[%s168 + $0x8] sm:$0x1]
        %v1332 = vld [vmem:[%s168 + $0xc] sm:$0xe]
        %v1333 = vld [vmem:[%s168 + $0x10] sm:$0xf]
        %v1334 = vld [vmem:[%s168 + $0x14] sm:$0x1]
        %v1335 = vld [vmem:[%s168 + $0x18] sm:$0xe]
        %v1336 = vld [vmem:[%s168 + $0x1c] sm:$0xf]
        %v1337 = vld [vmem:[%s168 + $0x20] sm:$0x1]
        %v1338 = vld [vmem:[%s168 + $0x24] sm:$0xe]
        %v1339 = vld [vmem:[%s168 + $0x28] sm:$0xf]
        %v1340 = vld [vmem:[%s168 + $0x2c] sm:$0x1]
        %v1341 = vld [vmem:[%s168 + $0x30] sm:$0xe]
        %v1342 = vld [vmem:[%s168 + $0x34] sm:$0xf]
        %v1343 = vld [vmem:[%s168 + $0x38] sm:$0x1]
        %v1344 = vld [vmem:[%s168 + $0x3c] sm:$0xe]
        %v1345 = vld [vmem:[%s168 + $0x40] sm:$0xf]
        %v1346 = vld [vmem:[%s168 + $0x44] sm:$0x1]
        %v1347 = vld [vmem:[%s168 + $0x48] sm:$0xe]
        %v1348 = vld [vmem:[%s168 + $0x4c] sm:$0xf]
        %v1349 = vld [vmem:[%s168 + $0x50] sm:$0x1]
        %v1350 = vld [vmem:[%s168 + $0x54] sm:$0xe]
        %v1351 = vld [vmem:[%s168 + $0x58] sm:$0xf]
        %v1352 = vld [vmem:[%s168 + $0x5c] sm:$0x1]
        %v1353 = vld [vmem:[%s168 + $0x60] sm:$0xe]
        %v1354 = vld [vmem:[%s168 + $0x64] sm:$0xf]
        %v1355 = vld [vmem:[%s168 + $0x68] sm:$0x1]
        %v1356 = vld [vmem:[%s168 + $0x6c] sm:$0xe]
        %v1357 = vld [vmem:[%s168 + $0x70] sm:$0xf]
        %v1358 = vld [vmem:[%s168 + $0x74] sm:$0x1]
        %v1359 = vld [vmem:[%s168 + $0x78] sm:$0xe]
        %v1360 = vld [vmem:[%s168 + $0x7c] sm:$0xf]
        %v1361 = vld [vmem:[%s168 + $0x80] sm:$0x1]
        %v1362 = vld [vmem:[%s168 + $0x84] sm:$0xe]
        %v1363 = vld [vmem:[%s168 + $0x88] sm:$0xf]
        %v1364 = vld [vmem:[%s168 + $0x8c] sm:$0x1]
        %v1365 = vld [vmem:[%s168 + $0x90] sm:$0xe]
        %v1366 = vld [vmem:[%s168 + $0x94] sm:$0xf]
        %v1367 = vld [vmem:[%s168 + $0x98] sm:$0x1]
        %v1368 = vld [vmem:[%s168 + $0x9c] sm:$0xe]
        %v1369 = vld [vmem:[%s168 + $0xa0] sm:$0xf]
        %v1370 = vld [vmem:[%s168 + $0xa4] sm:$0x1]
        %v1371 = vld [vmem:[%s168 + $0xa8] sm:$0xe]
        %v1372 = vld [vmem:[%s168 + $0xac] sm:$0xf]
        %v1373 = vld [vmem:[%s168 + $0xb0] sm:$0x1]
        %v1374 = vld [vmem:[%s168 + $0xb4] sm:$0xe]
        %v1375 = vld [vmem:[%s168 + $0xb8] sm:$0xf]
        %v1376 = vld [vmem:[%s168 + $0xbc] sm:$0x1]
        %vm1425 = vcmask 1042432
        %vm1426 = vcmask 1046532
        %vm1427 = vmor %vm1425, %vm1426
        %v1428 = vrot.slane %v1329, 5
        %v1429 = vrot.slane %v1428, 4
        %v1430 = vrot.slane %v1330, 5
        %v1431 = vsel %vm1427, %v1429, %v1430
        %v1432 = vrot.slane %v1430, 4
        %v1433 = vrot.slane %v1331, 5
        %v1434 = vsel %vm1427, %v1432, %v1433
        %v1435 = vrot.slane %v1332, 5
        %v1436 = vrot.slane %v1435, 4
        %v1437 = vrot.slane %v1333, 5
        %v1438 = vsel %vm1427, %v1436, %v1437
        %v1439 = vrot.slane %v1437, 4
        %v1440 = vrot.slane %v1334, 5
        %v1441 = vsel %vm1427, %v1439, %v1440
        %v1442 = vrot.slane %v1335, 5
        %v1443 = vrot.slane %v1442, 4
        %v1444 = vrot.slane %v1336, 5
        %v1445 = vsel %vm1427, %v1443, %v1444
        %v1446 = vrot.slane %v1444, 4
        %v1447 = vrot.slane %v1337, 5
        %v1448 = vsel %vm1427, %v1446, %v1447
        %v1449 = vrot.slane %v1338, 5
        %v1450 = vrot.slane %v1449, 4
        %v1451 = vrot.slane %v1339, 5
        %v1452 = vsel %vm1427, %v1450, %v1451
        %v1453 = vrot.slane %v1451, 4
        %v1454 = vrot.slane %v1340, 5
        %v1455 = vsel %vm1427, %v1453, %v1454
        %v1456 = vrot.slane %v1341, 5
        %v1457 = vrot.slane %v1456, 4
        %v1458 = vrot.slane %v1342, 5
        %v1459 = vsel %vm1427, %v1457, %v1458
        %v1460 = vrot.slane %v1458, 4
        %v1461 = vrot.slane %v1343, 5
        %v1462 = vsel %vm1427, %v1460, %v1461
        %v1463 = vrot.slane %v1344, 5
        %v1464 = vrot.slane %v1463, 4
        %v1465 = vrot.slane %v1345, 5
        %v1466 = vsel %vm1427, %v1464, %v1465
        %v1467 = vrot.slane %v1465, 4
        %v1468 = vrot.slane %v1346, 5
        %v1469 = vsel %vm1427, %v1467, %v1468
        %v1470 = vrot.slane %v1347, 5
        %v1471 = vrot.slane %v1470, 4
        %v1472 = vrot.slane %v1348, 5
        %v1473 = vsel %vm1427, %v1471, %v1472
        %v1474 = vrot.slane %v1472, 4
        %v1475 = vrot.slane %v1349, 5
        %v1476 = vsel %vm1427, %v1474, %v1475
        %v1477 = vrot.slane %v1350, 5
        %v1478 = vrot.slane %v1477, 4
        %v1479 = vrot.slane %v1351, 5
        %v1480 = vsel %vm1427, %v1478, %v1479
        %v1481 = vrot.slane %v1479, 4
        %v1482 = vrot.slane %v1352, 5
        %v1483 = vsel %vm1427, %v1481, %v1482
        %v1484 = vrot.slane %v1353, 5
        %v1485 = vrot.slane %v1484, 4
        %v1486 = vrot.slane %v1354, 5
        %v1487 = vsel %vm1427, %v1485, %v1486
        %v1488 = vrot.slane %v1486, 4
        %v1489 = vrot.slane %v1355, 5
        %v1490 = vsel %vm1427, %v1488, %v1489
        %v1491 = vrot.slane %v1356, 5
        %v1492 = vrot.slane %v1491, 4
        %v1493 = vrot.slane %v1357, 5
        %v1494 = vsel %vm1427, %v1492, %v1493
        %v1495 = vrot.slane %v1493, 4
        %v1496 = vrot.slane %v1358, 5
        %v1497 = vsel %vm1427, %v1495, %v1496
        %v1498 = vrot.slane %v1359, 5
        %v1499 = vrot.slane %v1498, 4
        %v1500 = vrot.slane %v1360, 5
        %v1501 = vsel %vm1427, %v1499, %v1500
        %v1502 = vrot.slane %v1500, 4
        %v1503 = vrot.slane %v1361, 5
        %v1504 = vsel %vm1427, %v1502, %v1503
        %v1505 = vrot.slane %v1362, 5
        %v1506 = vrot.slane %v1505, 4
        %v1507 = vrot.slane %v1363, 5
        %v1508 = vsel %vm1427, %v1506, %v1507
        %v1509 = vrot.slane %v1507, 4
        %v1510 = vrot.slane %v1364, 5
        %v1511 = vsel %vm1427, %v1509, %v1510
        %v1512 = vrot.slane %v1365, 5
        %v1513 = vrot.slane %v1512, 4
        %v1514 = vrot.slane %v1366, 5
        %v1515 = vsel %vm1427, %v1513, %v1514
        %v1516 = vrot.slane %v1514, 4
        %v1517 = vrot.slane %v1367, 5
        %v1518 = vsel %vm1427, %v1516, %v1517
        %v1519 = vrot.slane %v1368, 5
        %v1520 = vrot.slane %v1519, 4
        %v1521 = vrot.slane %v1369, 5
        %v1522 = vsel %vm1427, %v1520, %v1521
        %v1523 = vrot.slane %v1521, 4
        %v1524 = vrot.slane %v1370, 5
        %v1525 = vsel %vm1427, %v1523, %v1524
        %v1526 = vrot.slane %v1371, 5
        %v1527 = vrot.slane %v1526, 4
        %v1528 = vrot.slane %v1372, 5
        %v1529 = vsel %vm1427, %v1527, %v1528
        %v1530 = vrot.slane %v1528, 4
        %v1531 = vrot.slane %v1373, 5
        %v1532 = vsel %vm1427, %v1530, %v1531
        %v1533 = vrot.slane %v1374, 5
        %v1534 = vrot.slane %v1533, 4
        %v1535 = vrot.slane %v1375, 5
        %v1536 = vsel %vm1427, %v1534, %v1535
        %v1537 = vrot.slane %v1535, 4
        %v1538 = vrot.slane %v1376, 5
        %v1539 = vsel %vm1427, %v1537, %v1538
        %s1540 = scalar_lea.vmem %s1, 16
        %v1541 = vld [vmem:[%s1540] sm:$0xf]
        %v1542 = vld [vmem:[%s1540 + $0x4] sm:$0xf]
        %v1543 = vunpack.c.l.b16 %v1431
        %v1544 = vunpack.c.l.b16 %v1434
        %v1545 = vunpack.c.l.b16 %v1438
        %v1546 = vunpack.c.l.b16 %v1441
        %v1547 = vunpack.c.l.b16 %v1445
        %v1548 = vunpack.c.l.b16 %v1448
        %v1549 = vunpack.c.l.b16 %v1452
        %v1550 = vunpack.c.l.b16 %v1455
        %v1551 = vunpack.c.l.b16 %v1459
        %v1552 = vunpack.c.l.b16 %v1462
        %v1553 = vunpack.c.l.b16 %v1466
        %v1554 = vunpack.c.l.b16 %v1469
        %v1555 = vunpack.c.l.b16 %v1473
        %v1556 = vunpack.c.l.b16 %v1476
        %v1557 = vunpack.c.l.b16 %v1480
        %v1558 = vunpack.c.l.b16 %v1483
        %v1559 = vunpack.c.l.b16 %v1487
        %v1560 = vunpack.c.l.b16 %v1490
        %v1561 = vunpack.c.l.b16 %v1494
        %v1562 = vunpack.c.l.b16 %v1497
        %v1563 = vunpack.c.l.b16 %v1501
        %v1564 = vunpack.c.l.b16 %v1504
        %v1565 = vunpack.c.l.b16 %v1508
        %v1566 = vunpack.c.l.b16 %v1511
        %v1567 = vunpack.c.l.b16 %v1515
        %v1568 = vunpack.c.l.b16 %v1518
        %v1569 = vunpack.c.l.b16 %v1522
        %v1570 = vunpack.c.l.b16 %v1525
        %v1571 = vunpack.c.l.b16 %v1529
        %v1572 = vunpack.c.l.b16 %v1532
        %v1573 = vunpack.c.l.b16 %v1536
        %v1574 = vunpack.c.l.b16 %v1539
        %v1575 = vpack.c.b16 %v1544, %v1543
        %v1576 = vpack.c.b16 %v1546, %v1545
        %v1577 = vpack.c.b16 %v1548, %v1547
        %v1578 = vpack.c.b16 %v1550, %v1549
        %v1579 = vpack.c.b16 %v1552, %v1551
        %v1580 = vpack.c.b16 %v1554, %v1553
        %v1581 = vpack.c.b16 %v1556, %v1555
        %v1582 = vpack.c.b16 %v1558, %v1557
        %v1583 = vpack.c.b16 %v1560, %v1559
        %v1584 = vpack.c.b16 %v1562, %v1561
        %v1585 = vpack.c.b16 %v1564, %v1563
        %v1586 = vpack.c.b16 %v1566, %v1565
        %v1587 = vpack.c.b16 %v1568, %v1567
        %v1588 = vpack.c.b16 %v1570, %v1569
        %v1589 = vpack.c.b16 %v1572, %v1571
        %v1590 = vpack.c.b16 %v1574, %v1573
        %v1593 = vunpack.c.l.b16 %v1541
        %v1594 = vunpack.c.l.b16 %v1542
        %v1595 = vpack.c.b16 %v1594, %v1593
        %v1598 = vsel %vm290, %v1575, 0
        %v1601 = vsel %vm290, %v1576, 0
        %v1604 = vsel %vm290, %v1577, 0
        %v1607 = vsel %vm290, %v1578, 0
        %v1610 = vsel %vm290, %v1579, 0
        %v1613 = vsel %vm290, %v1580, 0
        %v1616 = vsel %vm290, %v1581, 0
        %v1619 = vsel %vm290, %v1582, 0
        %v1622 = vsel %vm290, %v1583, 0
        %v1625 = vsel %vm290, %v1584, 0
        %v1628 = vsel %vm290, %v1585, 0
        %v1631 = vsel %vm290, %v1586, 0
        %v1634 = vsel %vm290, %v1587, 0
        %v1637 = vsel %vm290, %v1588, 0
        %v1640 = vsel %vm290, %v1589, 0
        %v1643 = vsel %vm290, %v1590, 0
        %1645 = vmatprep.subr.bf16.mxu0 0
        %1646 = vmatpush1.bf16.msra.mxu0 0
        %1647 = vmatprep.subr.bf16.mxu0 0
        %1648 = vmatpush1.bf16.msra.mxu0 0
        %1649 = vmatprep.subr.bf16.mxu0 0
        %1650 = vmatpush1.bf16.msra.mxu0 0
        %1651 = vmatprep.subr.bf16.mxu0 0
        %1652 = vmatpush1.bf16.msra.mxu0 0
        %1653 = vmatprep.subr.bf16.mxu0 0
        %1654 = vmatpush1.bf16.msra.mxu0 0
        %1655 = vmatprep.subr.bf16.mxu0 0
        %1656 = vmatpush1.bf16.msra.mxu0 0
        %1657 = vmatprep.subr.bf16.mxu0 0
        %1658 = vmatpush1.bf16.msra.mxu0 0
        %1659 = vmatprep.subr.bf16.mxu0 0
        %1660 = vmatpush1.bf16.msra.mxu0 %v1595
        %1661 = vmatprep.subr.bf16.mxu0 0
        %1662 = vmatpush2.bf16.msra.mxu0 0
        %1663 = vmatprep.subr.bf16.mxu0 0
        %1664 = vmatpush2.bf16.msra.mxu0 0
        %1665 = vmatprep.subr.bf16.mxu0 0
        %1666 = vmatpush2.bf16.msra.mxu0 0
        %1667 = vmatprep.subr.bf16.mxu0 0
        %1668 = vmatpush2.bf16.msra.mxu0 0
        %1669 = vmatprep.subr.bf16.mxu0 0
        %1670 = vmatpush2.bf16.msra.mxu0 0
        %1671 = vmatprep.subr.bf16.mxu0 0
        %1672 = vmatpush2.bf16.msra.mxu0 0
        %1673 = vmatprep.subr.bf16.mxu0 0
        %1674 = vmatpush2.bf16.msra.mxu0 0
        %1675 = vmatprep.subr.bf16.mxu0 0
        %1676 = vmatpush2.bf16.msra.mxu0 0
        %1677 = vmatprep.mubr.bf16.mxu0 0
        %1678 = vmatmul.mubr.bf16.gmra.mxu0 %v1598
        %v1679 = vpop.f32.mrf.mxu0
        %v1680 = vadd.f32 0.0, %v1679
        %v1681 = vpop.f32.mrf.mxu0
        %v1682 = vpop.f32.mrf.mxu0
        %v1683 = vadd.f32 0.0, %v1682
        %v1684 = vpop.f32.mrf.mxu0
        %1685 = vmatprep.mubr.bf16.mxu0 0
        %1686 = vmatmul.mubr.bf16.gmra.mxu0 %v1601
        %v1687 = vpop.f32.mrf.mxu0
        %v1688 = vadd.f32 0.0, %v1687
        %v1689 = vpop.f32.mrf.mxu0
        %v1690 = vpop.f32.mrf.mxu0
        %v1691 = vadd.f32 0.0, %v1690
        %v1692 = vpop.f32.mrf.mxu0
        %1693 = vmatprep.mubr.bf16.mxu0 0
        %1694 = vmatmul.mubr.bf16.gmra.mxu0 %v1604
        %v1695 = vpop.f32.mrf.mxu0
        %v1696 = vadd.f32 0.0, %v1695
        %v1697 = vpop.f32.mrf.mxu0
        %v1698 = vpop.f32.mrf.mxu0
        %v1699 = vadd.f32 0.0, %v1698
        %v1700 = vpop.f32.mrf.mxu0
        %1701 = vmatprep.mubr.bf16.mxu0 0
        %1702 = vmatmul.mubr.bf16.gmra.mxu0 %v1607
        %v1703 = vpop.f32.mrf.mxu0
        %v1704 = vadd.f32 0.0, %v1703
        %v1705 = vpop.f32.mrf.mxu0
        %v1706 = vpop.f32.mrf.mxu0
        %v1707 = vadd.f32 0.0, %v1706
        %v1708 = vpop.f32.mrf.mxu0
        %1709 = vmatprep.mubr.bf16.mxu0 0
        %1710 = vmatmul.mubr.bf16.gmra.mxu0 %v1610
        %v1711 = vpop.f32.mrf.mxu0
        %v1712 = vadd.f32 0.0, %v1711
        %v1713 = vpop.f32.mrf.mxu0
        %v1714 = vpop.f32.mrf.mxu0
        %v1715 = vadd.f32 0.0, %v1714
        %v1716 = vpop.f32.mrf.mxu0
        %1717 = vmatprep.mubr.bf16.mxu0 0
        %1718 = vmatmul.mubr.bf16.gmra.mxu0 %v1613
        %v1719 = vpop.f32.mrf.mxu0
        %v1720 = vadd.f32 0.0, %v1719
        %v1721 = vpop.f32.mrf.mxu0
        %v1722 = vpop.f32.mrf.mxu0
        %v1723 = vadd.f32 0.0, %v1722
        %v1724 = vpop.f32.mrf.mxu0
        %1725 = vmatprep.mubr.bf16.mxu0 0
        %1726 = vmatmul.mubr.bf16.gmra.mxu0 %v1616
        %v1727 = vpop.f32.mrf.mxu0
        %v1728 = vadd.f32 0.0, %v1727
        %v1729 = vpop.f32.mrf.mxu0
        %v1730 = vpop.f32.mrf.mxu0
        %v1731 = vadd.f32 0.0, %v1730
        %v1732 = vpop.f32.mrf.mxu0
        %1733 = vmatprep.mubr.bf16.mxu0 0
        %1734 = vmatmul.mubr.bf16.gmra.mxu0 %v1619
        %v1735 = vpop.f32.mrf.mxu0
        %v1736 = vadd.f32 0.0, %v1735
        %v1737 = vpop.f32.mrf.mxu0
        %v1738 = vpop.f32.mrf.mxu0
        %v1739 = vadd.f32 0.0, %v1738
        %v1740 = vpop.f32.mrf.mxu0
        %1741 = vmatprep.mubr.bf16.mxu0 0
        %1742 = vmatmul.mubr.bf16.gmra.mxu0 %v1622
        %v1743 = vpop.f32.mrf.mxu0
        %v1744 = vadd.f32 0.0, %v1743
        %v1745 = vpop.f32.mrf.mxu0
        %v1746 = vpop.f32.mrf.mxu0
        %v1747 = vadd.f32 0.0, %v1746
        %v1748 = vpop.f32.mrf.mxu0
        %1749 = vmatprep.mubr.bf16.mxu0 0
        %1750 = vmatmul.mubr.bf16.gmra.mxu0 %v1625
        %v1751 = vpop.f32.mrf.mxu0
        %v1752 = vadd.f32 0.0, %v1751
        %v1753 = vpop.f32.mrf.mxu0
        %v1754 = vpop.f32.mrf.mxu0
        %v1755 = vadd.f32 0.0, %v1754
        %v1756 = vpop.f32.mrf.mxu0
        %1757 = vmatprep.mubr.bf16.mxu0 0
        %1758 = vmatmul.mubr.bf16.gmra.mxu0 %v1628
        %v1759 = vpop.f32.mrf.mxu0
        %v1760 = vadd.f32 0.0, %v1759
        %v1761 = vpop.f32.mrf.mxu0
        %v1762 = vpop.f32.mrf.mxu0
        %v1763 = vadd.f32 0.0, %v1762
        %v1764 = vpop.f32.mrf.mxu0
        %1765 = vmatprep.mubr.bf16.mxu0 0
        %1766 = vmatmul.mubr.bf16.gmra.mxu0 %v1631
        %v1767 = vpop.f32.mrf.mxu0
        %v1768 = vadd.f32 0.0, %v1767
        %v1769 = vpop.f32.mrf.mxu0
        %v1770 = vpop.f32.mrf.mxu0
        %v1771 = vadd.f32 0.0, %v1770
        %v1772 = vpop.f32.mrf.mxu0
        %1773 = vmatprep.mubr.bf16.mxu0 0
        %1774 = vmatmul.mubr.bf16.gmra.mxu0 %v1634
        %v1775 = vpop.f32.mrf.mxu0
        %v1776 = vadd.f32 0.0, %v1775
        %v1777 = vpop.f32.mrf.mxu0
        %v1778 = vpop.f32.mrf.mxu0
        %v1779 = vadd.f32 0.0, %v1778
        %v1780 = vpop.f32.mrf.mxu0
        %1781 = vmatprep.mubr.bf16.mxu0 0
        %1782 = vmatmul.mubr.bf16.gmra.mxu0 %v1637
        %v1783 = vpop.f32.mrf.mxu0
        %v1784 = vadd.f32 0.0, %v1783
        %v1785 = vpop.f32.mrf.mxu0
        %v1786 = vpop.f32.mrf.mxu0
        %v1787 = vadd.f32 0.0, %v1786
        %v1788 = vpop.f32.mrf.mxu0
        %1789 = vmatprep.mubr.bf16.mxu0 0
        %1790 = vmatmul.mubr.bf16.gmra.mxu0 %v1640
        %v1791 = vpop.f32.mrf.mxu0
        %v1792 = vadd.f32 0.0, %v1791
        %v1793 = vpop.f32.mrf.mxu0
        %v1794 = vpop.f32.mrf.mxu0
        %v1795 = vadd.f32 0.0, %v1794
        %v1796 = vpop.f32.mrf.mxu0
        %1797 = vmatprep.mubr.bf16.mxu0 0
        %1798 = vmatmul.mubr.bf16.gmra.mxu0 %v1643
        %v1799 = vpop.f32.mrf.mxu0
        %v1800 = vadd.f32 0.0, %v1799
        %v1801 = vpop.f32.mrf.mxu0
        %v1802 = vpop.f32.mrf.mxu0
        %v1803 = vadd.f32 0.0, %v1802
        %v1804 = vpop.f32.mrf.mxu0
        %1805 = vdwg.mxu0
        %v1806 = vld [vmem:[%s163] sm:$0xff]
        %v1807 = vld [vmem:[%s163 + $0x8] sm:$0xff]
        %v1808 = vld [vmem:[%s163 + $0x10] sm:$0xff]
        %v1809 = vld [vmem:[%s163 + $0x18] sm:$0xff]
        %v1810 = vld [vmem:[%s163 + $0x20] sm:$0xff]
        %v1811 = vld [vmem:[%s163 + $0x28] sm:$0xff]
        %v1812 = vld [vmem:[%s163 + $0x30] sm:$0xff]
        %v1813 = vld [vmem:[%s163 + $0x38] sm:$0xff]
        %v1814 = vld [vmem:[%s163 + $0x40] sm:$0xff]
        %v1815 = vld [vmem:[%s163 + $0x48] sm:$0xff]
        %v1816 = vld [vmem:[%s163 + $0x50] sm:$0xff]
        %v1817 = vld [vmem:[%s163 + $0x58] sm:$0xff]
        %v1818 = vld [vmem:[%s163 + $0x60] sm:$0xff]
        %v1819 = vld [vmem:[%s163 + $0x68] sm:$0xff]
        %v1820 = vld [vmem:[%s163 + $0x70] sm:$0xff]
        %v1821 = vld [vmem:[%s163 + $0x78] sm:$0xff]
        %v1822 = vld [vmem:[%s163 + $0x80] sm:$0xff]
        %v1823 = vld [vmem:[%s163 + $0x88] sm:$0xff]
        %v1824 = vld [vmem:[%s163 + $0x90] sm:$0xff]
        %v1825 = vld [vmem:[%s163 + $0x98] sm:$0xff]
        %v1826 = vld [vmem:[%s163 + $0xa0] sm:$0xff]
        %v1827 = vld [vmem:[%s163 + $0xa8] sm:$0xff]
        %v1828 = vld [vmem:[%s163 + $0xb0] sm:$0xff]
        %v1829 = vld [vmem:[%s163 + $0xb8] sm:$0xff]
        %v1830 = vld [vmem:[%s163 + $0xc0] sm:$0xff]
        %v1831 = vld [vmem:[%s163 + $0xc8] sm:$0xff]
        %v1832 = vld [vmem:[%s163 + $0xd0] sm:$0xff]
        %v1833 = vld [vmem:[%s163 + $0xd8] sm:$0xff]
        %v1834 = vld [vmem:[%s163 + $0xe0] sm:$0xff]
        %v1835 = vld [vmem:[%s163 + $0xe8] sm:$0xff]
        %v1836 = vld [vmem:[%s163 + $0xf0] sm:$0xff]
        %v1837 = vld [vmem:[%s163 + $0xf8] sm:$0xff]
        %v1838 = vadd.f32 %v1806, %v1680
        %v1839 = vadd.f32 %v1807, %v1683
        %v1840 = vadd.f32 %v1808, %v1688
        %v1841 = vadd.f32 %v1809, %v1691
        %v1842 = vadd.f32 %v1810, %v1696
        %v1843 = vadd.f32 %v1811, %v1699
        %v1844 = vadd.f32 %v1812, %v1704
        %v1845 = vadd.f32 %v1813, %v1707
        %v1846 = vadd.f32 %v1814, %v1712
        %v1847 = vadd.f32 %v1815, %v1715
        %v1848 = vadd.f32 %v1816, %v1720
        %v1849 = vadd.f32 %v1817, %v1723
        %v1850 = vadd.f32 %v1818, %v1728
        %v1851 = vadd.f32 %v1819, %v1731
        %v1852 = vadd.f32 %v1820, %v1736
        %v1853 = vadd.f32 %v1821, %v1739
        %v1854 = vadd.f32 %v1822, %v1744
        %v1855 = vadd.f32 %v1823, %v1747
        %v1856 = vadd.f32 %v1824, %v1752
        %v1857 = vadd.f32 %v1825, %v1755
        %v1858 = vadd.f32 %v1826, %v1760
        %v1859 = vadd.f32 %v1827, %v1763
        %v1860 = vadd.f32 %v1828, %v1768
        %v1861 = vadd.f32 %v1829, %v1771
        %v1862 = vadd.f32 %v1830, %v1776
        %v1863 = vadd.f32 %v1831, %v1779
        %v1864 = vadd.f32 %v1832, %v1784
        %v1865 = vadd.f32 %v1833, %v1787
        %v1866 = vadd.f32 %v1834, %v1792
        %v1867 = vadd.f32 %v1835, %v1795
        %v1868 = vadd.f32 %v1836, %v1800
        %v1869 = vadd.f32 %v1837, %v1803
        %1870 = vst [vmem:[%s163] sm:$0xff] %v1838
        %1871 = vst [vmem:[%s163 + $0x8] sm:$0xff] %v1839
        %1872 = vst [vmem:[%s163 + $0x10] sm:$0xff] %v1840
        %1873 = vst [vmem:[%s163 + $0x18] sm:$0xff] %v1841
        %1874 = vst [vmem:[%s163 + $0x20] sm:$0xff] %v1842
        %1875 = vst [vmem:[%s163 + $0x28] sm:$0xff] %v1843
        %1876 = vst [vmem:[%s163 + $0x30] sm:$0xff] %v1844
        %1877 = vst [vmem:[%s163 + $0x38] sm:$0xff] %v1845
        %1878 = vst [vmem:[%s163 + $0x40] sm:$0xff] %v1846
        %1879 = vst [vmem:[%s163 + $0x48] sm:$0xff] %v1847
        %1880 = vst [vmem:[%s163 + $0x50] sm:$0xff] %v1848
        %1881 = vst [vmem:[%s163 + $0x58] sm:$0xff] %v1849
        %1882 = vst [vmem:[%s163 + $0x60] sm:$0xff] %v1850
        %1883 = vst [vmem:[%s163 + $0x68] sm:$0xff] %v1851
        %1884 = vst [vmem:[%s163 + $0x70] sm:$0xff] %v1852
        %1885 = vst [vmem:[%s163 + $0x78] sm:$0xff] %v1853
        %1886 = vst [vmem:[%s163 + $0x80] sm:$0xff] %v1854
        %1887 = vst [vmem:[%s163 + $0x88] sm:$0xff] %v1855
        %1888 = vst [vmem:[%s163 + $0x90] sm:$0xff] %v1856
        %1889 = vst [vmem:[%s163 + $0x98] sm:$0xff] %v1857
        %1890 = vst [vmem:[%s163 + $0xa0] sm:$0xff] %v1858
        %1891 = vst [vmem:[%s163 + $0xa8] sm:$0xff] %v1859
        %1892 = vst [vmem:[%s163 + $0xb0] sm:$0xff] %v1860
        %1893 = vst [vmem:[%s163 + $0xb8] sm:$0xff] %v1861
        %1894 = vst [vmem:[%s163 + $0xc0] sm:$0xff] %v1862
        %1895 = vst [vmem:[%s163 + $0xc8] sm:$0xff] %v1863
        %1896 = vst [vmem:[%s163 + $0xd0] sm:$0xff] %v1864
        %1897 = vst [vmem:[%s163 + $0xd8] sm:$0xff] %v1865
        %1898 = vst [vmem:[%s163 + $0xe0] sm:$0xff] %v1866
        %1899 = vst [vmem:[%s163 + $0xe8] sm:$0xff] %v1867
        %1900 = vst [vmem:[%s163 + $0xf0] sm:$0xff] %v1868
        %1901 = vst [vmem:[%s163 + $0xf8] sm:$0xff] %v1869
        %s1902 = scalar_lea.vmem %s168, 12
        %v1903 = vld [vmem:[%s1902] sm:$0xf]
        %v1904 = vld [vmem:[%s1902 + $0x4] sm:$0xf]
        %v1905 = vld [vmem:[%s1902 + $0xc] sm:$0xf]
        %v1906 = vld [vmem:[%s1902 + $0x10] sm:$0xf]
        %v1907 = vld [vmem:[%s1902 + $0x18] sm:$0xf]
        %v1908 = vld [vmem:[%s1902 + $0x1c] sm:$0xf]
        %v1909 = vld [vmem:[%s1902 + $0x24] sm:$0xf]
        %v1910 = vld [vmem:[%s1902 + $0x28] sm:$0xf]
        %v1911 = vld [vmem:[%s1902 + $0x30] sm:$0xf]
        %v1912 = vld [vmem:[%s1902 + $0x34] sm:$0xf]
        %v1913 = vld [vmem:[%s1902 + $0x3c] sm:$0xf]
        %v1914 = vld [vmem:[%s1902 + $0x40] sm:$0xf]
        %v1915 = vld [vmem:[%s1902 + $0x48] sm:$0xf]
        %v1916 = vld [vmem:[%s1902 + $0x4c] sm:$0xf]
        %v1917 = vld [vmem:[%s1902 + $0x54] sm:$0xf]
        %v1918 = vld [vmem:[%s1902 + $0x58] sm:$0xf]
        %v1919 = vld [vmem:[%s1902 + $0x60] sm:$0xf]
        %v1920 = vld [vmem:[%s1902 + $0x64] sm:$0xf]
        %v1921 = vld [vmem:[%s1902 + $0x6c] sm:$0xf]
        %v1922 = vld [vmem:[%s1902 + $0x70] sm:$0xf]
        %v1923 = vld [vmem:[%s1902 + $0x78] sm:$0xf]
        %v1924 = vld [vmem:[%s1902 + $0x7c] sm:$0xf]
        %v1925 = vld [vmem:[%s1902 + $0x84] sm:$0xf]
        %v1926 = vld [vmem:[%s1902 + $0x88] sm:$0xf]
        %v1927 = vld [vmem:[%s1902 + $0x90] sm:$0xf]
        %v1928 = vld [vmem:[%s1902 + $0x94] sm:$0xf]
        %v1929 = vld [vmem:[%s1902 + $0x9c] sm:$0xf]
        %v1930 = vld [vmem:[%s1902 + $0xa0] sm:$0xf]
        %v1931 = vld [vmem:[%s1902 + $0xa8] sm:$0xf]
        %v1932 = vld [vmem:[%s1902 + $0xac] sm:$0xf]
        %v1933 = vld [vmem:[%s1902 + $0xb4] sm:$0xf]
        %v1934 = vld [vmem:[%s1902 + $0xb8] sm:$0xf]
        %s1935 = scalar_lea.vmem %s1, 24
        %v1936 = vld [vmem:[%s1935] sm:$0xf]
        %v1937 = vld [vmem:[%s1935 + $0x4] sm:$0xf]
        %v1970 = vunpack.c.l.b16 %v1903
        %v1971 = vunpack.c.l.b16 %v1904
        %v1972 = vunpack.c.l.b16 %v1905
        %v1973 = vunpack.c.l.b16 %v1906
        %v1974 = vunpack.c.l.b16 %v1907
        %v1975 = vunpack.c.l.b16 %v1908
        %v1976 = vunpack.c.l.b16 %v1909
        %v1977 = vunpack.c.l.b16 %v1910
        %v1978 = vunpack.c.l.b16 %v1911
        %v1979 = vunpack.c.l.b16 %v1912
        %v1980 = vunpack.c.l.b16 %v1913
        %v1981 = vunpack.c.l.b16 %v1914
        %v1982 = vunpack.c.l.b16 %v1915
        %v1983 = vunpack.c.l.b16 %v1916
        %v1984 = vunpack.c.l.b16 %v1917
        %v1985 = vunpack.c.l.b16 %v1918
        %v1986 = vunpack.c.l.b16 %v1919
        %v1987 = vunpack.c.l.b16 %v1920
        %v1988 = vunpack.c.l.b16 %v1921
        %v1989 = vunpack.c.l.b16 %v1922
        %v1990 = vunpack.c.l.b16 %v1923
        %v1991 = vunpack.c.l.b16 %v1924
        %v1992 = vunpack.c.l.b16 %v1925
        %v1993 = vunpack.c.l.b16 %v1926
        %v1994 = vunpack.c.l.b16 %v1927
        %v1995 = vunpack.c.l.b16 %v1928
        %v1996 = vunpack.c.l.b16 %v1929
        %v1997 = vunpack.c.l.b16 %v1930
        %v1998 = vunpack.c.l.b16 %v1931
        %v1999 = vunpack.c.l.b16 %v1932
        %v2000 = vunpack.c.l.b16 %v1933
        %v2001 = vunpack.c.l.b16 %v1934
        %v2002 = vpack.c.b16 %v1971, %v1970
        %v2003 = vpack.c.b16 %v1973, %v1972
        %v2004 = vpack.c.b16 %v1975, %v1974
        %v2005 = vpack.c.b16 %v1977, %v1976
        %v2006 = vpack.c.b16 %v1979, %v1978
        %v2007 = vpack.c.b16 %v1981, %v1980
        %v2008 = vpack.c.b16 %v1983, %v1982
        %v2009 = vpack.c.b16 %v1985, %v1984
        %v2010 = vpack.c.b16 %v1987, %v1986
        %v2011 = vpack.c.b16 %v1989, %v1988
        %v2012 = vpack.c.b16 %v1991, %v1990
        %v2013 = vpack.c.b16 %v1993, %v1992
        %v2014 = vpack.c.b16 %v1995, %v1994
        %v2015 = vpack.c.b16 %v1997, %v1996
        %v2016 = vpack.c.b16 %v1999, %v1998
        %v2017 = vpack.c.b16 %v2001, %v2000
        %v2020 = vunpack.c.l.b16 %v1936
        %v2021 = vunpack.c.l.b16 %v1937
        %v2022 = vpack.c.b16 %v2021, %v2020
        %v2025 = vsel %vm290, %v2002, 0
        %v2028 = vsel %vm290, %v2003, 0
        %v2031 = vsel %vm290, %v2004, 0
        %v2034 = vsel %vm290, %v2005, 0
        %v2037 = vsel %vm290, %v2006, 0
        %v2040 = vsel %vm290, %v2007, 0
        %v2043 = vsel %vm290, %v2008, 0
        %v2046 = vsel %vm290, %v2009, 0
        %v2049 = vsel %vm290, %v2010, 0
        %v2052 = vsel %vm290, %v2011, 0
        %v2055 = vsel %vm290, %v2012, 0
        %v2058 = vsel %vm290, %v2013, 0
        %v2061 = vsel %vm290, %v2014, 0
        %v2064 = vsel %vm290, %v2015, 0
        %v2067 = vsel %vm290, %v2016, 0
        %v2070 = vsel %vm290, %v2017, 0
        %2072 = vmatprep.subr.bf16.mxu0 0
        %2073 = vmatpush1.bf16.msra.mxu0 0
        %2074 = vmatprep.subr.bf16.mxu0 0
        %2075 = vmatpush1.bf16.msra.mxu0 0
        %2076 = vmatprep.subr.bf16.mxu0 0
        %2077 = vmatpush1.bf16.msra.mxu0 0
        %2078 = vmatprep.subr.bf16.mxu0 0
        %2079 = vmatpush1.bf16.msra.mxu0 0
        %2080 = vmatprep.subr.bf16.mxu0 0
        %2081 = vmatpush1.bf16.msra.mxu0 0
        %2082 = vmatprep.subr.bf16.mxu0 0
        %2083 = vmatpush1.bf16.msra.mxu0 0
        %2084 = vmatprep.subr.bf16.mxu0 0
        %2085 = vmatpush1.bf16.msra.mxu0 0
        %2086 = vmatprep.subr.bf16.mxu0 0
        %2087 = vmatpush1.bf16.msra.mxu0 %v2022
        %2088 = vmatprep.subr.bf16.mxu0 0
        %2089 = vmatpush2.bf16.msra.mxu0 0
        %2090 = vmatprep.subr.bf16.mxu0 0
        %2091 = vmatpush2.bf16.msra.mxu0 0
        %2092 = vmatprep.subr.bf16.mxu0 0
        %2093 = vmatpush2.bf16.msra.mxu0 0
        %2094 = vmatprep.subr.bf16.mxu0 0
        %2095 = vmatpush2.bf16.msra.mxu0 0
        %2096 = vmatprep.subr.bf16.mxu0 0
        %2097 = vmatpush2.bf16.msra.mxu0 0
        %2098 = vmatprep.subr.bf16.mxu0 0
        %2099 = vmatpush2.bf16.msra.mxu0 0
        %2100 = vmatprep.subr.bf16.mxu0 0
        %2101 = vmatpush2.bf16.msra.mxu0 0
        %2102 = vmatprep.subr.bf16.mxu0 0
        %2103 = vmatpush2.bf16.msra.mxu0 0
        %2104 = vmatprep.mubr.bf16.mxu0 0
        %2105 = vmatmul.mubr.bf16.gmra.mxu0 %v2025
        %v2106 = vpop.f32.mrf.mxu0
        %v2107 = vadd.f32 0.0, %v2106
        %v2108 = vpop.f32.mrf.mxu0
        %v2109 = vpop.f32.mrf.mxu0
        %v2110 = vadd.f32 0.0, %v2109
        %v2111 = vpop.f32.mrf.mxu0
        %2112 = vmatprep.mubr.bf16.mxu0 0
        %2113 = vmatmul.mubr.bf16.gmra.mxu0 %v2028
        %v2114 = vpop.f32.mrf.mxu0
        %v2115 = vadd.f32 0.0, %v2114
        %v2116 = vpop.f32.mrf.mxu0
        %v2117 = vpop.f32.mrf.mxu0
        %v2118 = vadd.f32 0.0, %v2117
        %v2119 = vpop.f32.mrf.mxu0
        %2120 = vmatprep.mubr.bf16.mxu0 0
        %2121 = vmatmul.mubr.bf16.gmra.mxu0 %v2031
        %v2122 = vpop.f32.mrf.mxu0
        %v2123 = vadd.f32 0.0, %v2122
        %v2124 = vpop.f32.mrf.mxu0
        %v2125 = vpop.f32.mrf.mxu0
        %v2126 = vadd.f32 0.0, %v2125
        %v2127 = vpop.f32.mrf.mxu0
        %2128 = vmatprep.mubr.bf16.mxu0 0
        %2129 = vmatmul.mubr.bf16.gmra.mxu0 %v2034
        %v2130 = vpop.f32.mrf.mxu0
        %v2131 = vadd.f32 0.0, %v2130
        %v2132 = vpop.f32.mrf.mxu0
        %v2133 = vpop.f32.mrf.mxu0
        %v2134 = vadd.f32 0.0, %v2133
        %v2135 = vpop.f32.mrf.mxu0
        %2136 = vmatprep.mubr.bf16.mxu0 0
        %2137 = vmatmul.mubr.bf16.gmra.mxu0 %v2037
        %v2138 = vpop.f32.mrf.mxu0
        %v2139 = vadd.f32 0.0, %v2138
        %v2140 = vpop.f32.mrf.mxu0
        %v2141 = vpop.f32.mrf.mxu0
        %v2142 = vadd.f32 0.0, %v2141
        %v2143 = vpop.f32.mrf.mxu0
        %2144 = vmatprep.mubr.bf16.mxu0 0
        %2145 = vmatmul.mubr.bf16.gmra.mxu0 %v2040
        %v2146 = vpop.f32.mrf.mxu0
        %v2147 = vadd.f32 0.0, %v2146
        %v2148 = vpop.f32.mrf.mxu0
        %v2149 = vpop.f32.mrf.mxu0
        %v2150 = vadd.f32 0.0, %v2149
        %v2151 = vpop.f32.mrf.mxu0
        %2152 = vmatprep.mubr.bf16.mxu0 0
        %2153 = vmatmul.mubr.bf16.gmra.mxu0 %v2043
        %v2154 = vpop.f32.mrf.mxu0
        %v2155 = vadd.f32 0.0, %v2154
        %v2156 = vpop.f32.mrf.mxu0
        %v2157 = vpop.f32.mrf.mxu0
        %v2158 = vadd.f32 0.0, %v2157
        %v2159 = vpop.f32.mrf.mxu0
        %2160 = vmatprep.mubr.bf16.mxu0 0
        %2161 = vmatmul.mubr.bf16.gmra.mxu0 %v2046
        %v2162 = vpop.f32.mrf.mxu0
        %v2163 = vadd.f32 0.0, %v2162
        %v2164 = vpop.f32.mrf.mxu0
        %v2165 = vpop.f32.mrf.mxu0
        %v2166 = vadd.f32 0.0, %v2165
        %v2167 = vpop.f32.mrf.mxu0
        %2168 = vmatprep.mubr.bf16.mxu0 0
        %2169 = vmatmul.mubr.bf16.gmra.mxu0 %v2049
        %v2170 = vpop.f32.mrf.mxu0
        %v2171 = vadd.f32 0.0, %v2170
        %v2172 = vpop.f32.mrf.mxu0
        %v2173 = vpop.f32.mrf.mxu0
        %v2174 = vadd.f32 0.0, %v2173
        %v2175 = vpop.f32.mrf.mxu0
        %2176 = vmatprep.mubr.bf16.mxu0 0
        %2177 = vmatmul.mubr.bf16.gmra.mxu0 %v2052
        %v2178 = vpop.f32.mrf.mxu0
        %v2179 = vadd.f32 0.0, %v2178
        %v2180 = vpop.f32.mrf.mxu0
        %v2181 = vpop.f32.mrf.mxu0
        %v2182 = vadd.f32 0.0, %v2181
        %v2183 = vpop.f32.mrf.mxu0
        %2184 = vmatprep.mubr.bf16.mxu0 0
        %2185 = vmatmul.mubr.bf16.gmra.mxu0 %v2055
        %v2186 = vpop.f32.mrf.mxu0
        %v2187 = vadd.f32 0.0, %v2186
        %v2188 = vpop.f32.mrf.mxu0
        %v2189 = vpop.f32.mrf.mxu0
        %v2190 = vadd.f32 0.0, %v2189
        %v2191 = vpop.f32.mrf.mxu0
        %2192 = vmatprep.mubr.bf16.mxu0 0
        %2193 = vmatmul.mubr.bf16.gmra.mxu0 %v2058
        %v2194 = vpop.f32.mrf.mxu0
        %v2195 = vadd.f32 0.0, %v2194
        %v2196 = vpop.f32.mrf.mxu0
        %v2197 = vpop.f32.mrf.mxu0
        %v2198 = vadd.f32 0.0, %v2197
        %v2199 = vpop.f32.mrf.mxu0
        %2200 = vmatprep.mubr.bf16.mxu0 0
        %2201 = vmatmul.mubr.bf16.gmra.mxu0 %v2061
        %v2202 = vpop.f32.mrf.mxu0
        %v2203 = vadd.f32 0.0, %v2202
        %v2204 = vpop.f32.mrf.mxu0
        %v2205 = vpop.f32.mrf.mxu0
        %v2206 = vadd.f32 0.0, %v2205
        %v2207 = vpop.f32.mrf.mxu0
        %2208 = vmatprep.mubr.bf16.mxu0 0
        %2209 = vmatmul.mubr.bf16.gmra.mxu0 %v2064
        %v2210 = vpop.f32.mrf.mxu0
        %v2211 = vadd.f32 0.0, %v2210
        %v2212 = vpop.f32.mrf.mxu0
        %v2213 = vpop.f32.mrf.mxu0
        %v2214 = vadd.f32 0.0, %v2213
        %v2215 = vpop.f32.mrf.mxu0
        %2216 = vmatprep.mubr.bf16.mxu0 0
        %2217 = vmatmul.mubr.bf16.gmra.mxu0 %v2067
        %v2218 = vpop.f32.mrf.mxu0
        %v2219 = vadd.f32 0.0, %v2218
        %v2220 = vpop.f32.mrf.mxu0
        %v2221 = vpop.f32.mrf.mxu0
        %v2222 = vadd.f32 0.0, %v2221
        %v2223 = vpop.f32.mrf.mxu0
        %2224 = vmatprep.mubr.bf16.mxu0 0
        %2225 = vmatmul.mubr.bf16.gmra.mxu0 %v2070
        %v2226 = vpop.f32.mrf.mxu0
        %v2227 = vadd.f32 0.0, %v2226
        %v2228 = vpop.f32.mrf.mxu0
        %v2229 = vpop.f32.mrf.mxu0
        %v2230 = vadd.f32 0.0, %v2229
        %v2231 = vpop.f32.mrf.mxu0
        %2232 = vdwg.mxu0
        %v2233 = vld [vmem:[%s163] sm:$0xff]
        %v2234 = vld [vmem:[%s163 + $0x8] sm:$0xff]
        %v2235 = vld [vmem:[%s163 + $0x10] sm:$0xff]
        %v2236 = vld [vmem:[%s163 + $0x18] sm:$0xff]
        %v2237 = vld [vmem:[%s163 + $0x20] sm:$0xff]
        %v2238 = vld [vmem:[%s163 + $0x28] sm:$0xff]
        %v2239 = vld [vmem:[%s163 + $0x30] sm:$0xff]
        %v2240 = vld [vmem:[%s163 + $0x38] sm:$0xff]
        %v2241 = vld [vmem:[%s163 + $0x40] sm:$0xff]
        %v2242 = vld [vmem:[%s163 + $0x48] sm:$0xff]
        %v2243 = vld [vmem:[%s163 + $0x50] sm:$0xff]
        %v2244 = vld [vmem:[%s163 + $0x58] sm:$0xff]
        %v2245 = vld [vmem:[%s163 + $0x60] sm:$0xff]
        %v2246 = vld [vmem:[%s163 + $0x68] sm:$0xff]
        %v2247 = vld [vmem:[%s163 + $0x70] sm:$0xff]
        %v2248 = vld [vmem:[%s163 + $0x78] sm:$0xff]
        %v2249 = vld [vmem:[%s163 + $0x80] sm:$0xff]
        %v2250 = vld [vmem:[%s163 + $0x88] sm:$0xff]
        %v2251 = vld [vmem:[%s163 + $0x90] sm:$0xff]
        %v2252 = vld [vmem:[%s163 + $0x98] sm:$0xff]
        %v2253 = vld [vmem:[%s163 + $0xa0] sm:$0xff]
        %v2254 = vld [vmem:[%s163 + $0xa8] sm:$0xff]
        %v2255 = vld [vmem:[%s163 + $0xb0] sm:$0xff]
        %v2256 = vld [vmem:[%s163 + $0xb8] sm:$0xff]
        %v2257 = vld [vmem:[%s163 + $0xc0] sm:$0xff]
        %v2258 = vld [vmem:[%s163 + $0xc8] sm:$0xff]
        %v2259 = vld [vmem:[%s163 + $0xd0] sm:$0xff]
        %v2260 = vld [vmem:[%s163 + $0xd8] sm:$0xff]
        %v2261 = vld [vmem:[%s163 + $0xe0] sm:$0xff]
        %v2262 = vld [vmem:[%s163 + $0xe8] sm:$0xff]
        %v2263 = vld [vmem:[%s163 + $0xf0] sm:$0xff]
        %v2264 = vld [vmem:[%s163 + $0xf8] sm:$0xff]
        %v2265 = vadd.f32 %v2233, %v2107
        %v2266 = vadd.f32 %v2234, %v2110
        %v2267 = vadd.f32 %v2235, %v2115
        %v2268 = vadd.f32 %v2236, %v2118
        %v2269 = vadd.f32 %v2237, %v2123
        %v2270 = vadd.f32 %v2238, %v2126
        %v2271 = vadd.f32 %v2239, %v2131
        %v2272 = vadd.f32 %v2240, %v2134
        %v2273 = vadd.f32 %v2241, %v2139
        %v2274 = vadd.f32 %v2242, %v2142
        %v2275 = vadd.f32 %v2243, %v2147
        %v2276 = vadd.f32 %v2244, %v2150
        %v2277 = vadd.f32 %v2245, %v2155
        %v2278 = vadd.f32 %v2246, %v2158
        %v2279 = vadd.f32 %v2247, %v2163
        %v2280 = vadd.f32 %v2248, %v2166
        %v2281 = vadd.f32 %v2249, %v2171
        %v2282 = vadd.f32 %v2250, %v2174
        %v2283 = vadd.f32 %v2251, %v2179
        %v2284 = vadd.f32 %v2252, %v2182
        %v2285 = vadd.f32 %v2253, %v2187
        %v2286 = vadd.f32 %v2254, %v2190
        %v2287 = vadd.f32 %v2255, %v2195
        %v2288 = vadd.f32 %v2256, %v2198
        %v2289 = vadd.f32 %v2257, %v2203
        %v2290 = vadd.f32 %v2258, %v2206
        %v2291 = vadd.f32 %v2259, %v2211
        %v2292 = vadd.f32 %v2260, %v2214
        %v2293 = vadd.f32 %v2261, %v2219
        %v2294 = vadd.f32 %v2262, %v2222
        %v2295 = vadd.f32 %v2263, %v2227
        %v2296 = vadd.f32 %v2264, %v2230
        %2297 = vst [vmem:[%s163] sm:$0xff] %v2265
        %2298 = vst [vmem:[%s163 + $0x8] sm:$0xff] %v2266
        %2299 = vst [vmem:[%s163 + $0x10] sm:$0xff] %v2267
        %2300 = vst [vmem:[%s163 + $0x18] sm:$0xff] %v2268
        %2301 = vst [vmem:[%s163 + $0x20] sm:$0xff] %v2269
        %2302 = vst [vmem:[%s163 + $0x28] sm:$0xff] %v2270
        %2303 = vst [vmem:[%s163 + $0x30] sm:$0xff] %v2271
        %2304 = vst [vmem:[%s163 + $0x38] sm:$0xff] %v2272
        %2305 = vst [vmem:[%s163 + $0x40] sm:$0xff] %v2273
        %2306 = vst [vmem:[%s163 + $0x48] sm:$0xff] %v2274
        %2307 = vst [vmem:[%s163 + $0x50] sm:$0xff] %v2275
        %2308 = vst [vmem:[%s163 + $0x58] sm:$0xff] %v2276
        %2309 = vst [vmem:[%s163 + $0x60] sm:$0xff] %v2277
        %2310 = vst [vmem:[%s163 + $0x68] sm:$0xff] %v2278
        %2311 = vst [vmem:[%s163 + $0x70] sm:$0xff] %v2279
        %2312 = vst [vmem:[%s163 + $0x78] sm:$0xff] %v2280
        %2313 = vst [vmem:[%s163 + $0x80] sm:$0xff] %v2281
        %2314 = vst [vmem:[%s163 + $0x88] sm:$0xff] %v2282
        %2315 = vst [vmem:[%s163 + $0x90] sm:$0xff] %v2283
        %2316 = vst [vmem:[%s163 + $0x98] sm:$0xff] %v2284
        %2317 = vst [vmem:[%s163 + $0xa0] sm:$0xff] %v2285
        %2318 = vst [vmem:[%s163 + $0xa8] sm:$0xff] %v2286
        %2319 = vst [vmem:[%s163 + $0xb0] sm:$0xff] %v2287
        %2320 = vst [vmem:[%s163 + $0xb8] sm:$0xff] %v2288
        %2321 = vst [vmem:[%s163 + $0xc0] sm:$0xff] %v2289
        %2322 = vst [vmem:[%s163 + $0xc8] sm:$0xff] %v2290
        %2323 = vst [vmem:[%s163 + $0xd0] sm:$0xff] %v2291
        %2324 = vst [vmem:[%s163 + $0xd8] sm:$0xff] %v2292
        %2325 = vst [vmem:[%s163 + $0xe0] sm:$0xff] %v2293
        %2326 = vst [vmem:[%s163 + $0xe8] sm:$0xff] %v2294
        %2327 = vst [vmem:[%s163 + $0xf0] sm:$0xff] %v2295
        %2328 = vst [vmem:[%s163 + $0xf8] sm:$0xff] %v2296
        %v2329 = vld [vmem:[%s1902] sm:$0xf]
        %v2330 = vld [vmem:[%s1902 + $0x4] sm:$0xf]
        %v2331 = vld [vmem:[%s1902 + $0x8] sm:$0x1]
        %v2332 = vld [vmem:[%s1902 + $0xc] sm:$0xf]
        %v2333 = vld [vmem:[%s1902 + $0x10] sm:$0xf]
        %v2334 = vld [vmem:[%s1902 + $0x14] sm:$0x1]
        %v2335 = vld [vmem:[%s1902 + $0x18] sm:$0xf]
        %v2336 = vld [vmem:[%s1902 + $0x1c] sm:$0xf]
        %v2337 = vld [vmem:[%s1902 + $0x20] sm:$0x1]
        %v2338 = vld [vmem:[%s1902 + $0x24] sm:$0xf]
        %v2339 = vld [vmem:[%s1902 + $0x28] sm:$0xf]
        %v2340 = vld [vmem:[%s1902 + $0x2c] sm:$0x1]
        %v2341 = vld [vmem:[%s1902 + $0x30] sm:$0xf]
        %v2342 = vld [vmem:[%s1902 + $0x34] sm:$0xf]
        %v2343 = vld [vmem:[%s1902 + $0x38] sm:$0x1]
        %v2344 = vld [vmem:[%s1902 + $0x3c] sm:$0xf]
        %v2345 = vld [vmem:[%s1902 + $0x40] sm:$0xf]
        %v2346 = vld [vmem:[%s1902 + $0x44] sm:$0x1]
        %v2347 = vld [vmem:[%s1902 + $0x48] sm:$0xf]
        %v2348 = vld [vmem:[%s1902 + $0x4c] sm:$0xf]
        %v2349 = vld [vmem:[%s1902 + $0x50] sm:$0x1]
        %v2350 = vld [vmem:[%s1902 + $0x54] sm:$0xf]
        %v2351 = vld [vmem:[%s1902 + $0x58] sm:$0xf]
        %v2352 = vld [vmem:[%s1902 + $0x5c] sm:$0x1]
        %v2353 = vld [vmem:[%s1902 + $0x60] sm:$0xf]
        %v2354 = vld [vmem:[%s1902 + $0x64] sm:$0xf]
        %v2355 = vld [vmem:[%s1902 + $0x68] sm:$0x1]
        %v2356 = vld [vmem:[%s1902 + $0x6c] sm:$0xf]
        %v2357 = vld [vmem:[%s1902 + $0x70] sm:$0xf]
        %v2358 = vld [vmem:[%s1902 + $0x74] sm:$0x1]
        %v2359 = vld [vmem:[%s1902 + $0x78] sm:$0xf]
        %v2360 = vld [vmem:[%s1902 + $0x7c] sm:$0xf]
        %v2361 = vld [vmem:[%s1902 + $0x80] sm:$0x1]
        %v2362 = vld [vmem:[%s1902 + $0x84] sm:$0xf]
        %v2363 = vld [vmem:[%s1902 + $0x88] sm:$0xf]
        %v2364 = vld [vmem:[%s1902 + $0x8c] sm:$0x1]
        %v2365 = vld [vmem:[%s1902 + $0x90] sm:$0xf]
        %v2366 = vld [vmem:[%s1902 + $0x94] sm:$0xf]
        %v2367 = vld [vmem:[%s1902 + $0x98] sm:$0x1]
        %v2368 = vld [vmem:[%s1902 + $0x9c] sm:$0xf]
        %v2369 = vld [vmem:[%s1902 + $0xa0] sm:$0xf]
        %v2370 = vld [vmem:[%s1902 + $0xa4] sm:$0x1]
        %v2371 = vld [vmem:[%s1902 + $0xa8] sm:$0xf]
        %v2372 = vld [vmem:[%s1902 + $0xac] sm:$0xf]
        %v2373 = vld [vmem:[%s1902 + $0xb0] sm:$0x1]
        %v2374 = vld [vmem:[%s1902 + $0xb4] sm:$0xf]
        %v2375 = vld [vmem:[%s1902 + $0xb8] sm:$0xf]
        %v2376 = vld [vmem:[%s1902 + $0xbc] sm:$0x1]
        %v2378 = vshrl.u32 %v2329, 16
        %v2380 = vrot.slane %v2378, 4
        %v2381 = vshll.u32 %v2329, 16
        %v2383 = vrot.slane %v2381, 5
        %v2384 = vor.u32 %v2380, %v2383
        %v2385 = vrot.slane %v2384, 4
        %v2387 = vshll.u32 %v2330, 16
        %v2389 = vrot.slane %v2387, 5
        %v2390 = vsel %vm582, %v2385, %v2389
        %v2391 = vshrl.u32 %v2330, 16
        %v2393 = vrot.slane %v2391, 4
        %v2394 = vor.u32 %v2393, %v2389
        %v2395 = vrot.slane %v2394, 4
        %v2397 = vshll.u32 %v2331, 16
        %v2399 = vrot.slane %v2397, 5
        %v2400 = vsel %vm582, %v2395, %v2399
        %v2402 = vshrl.u32 %v2332, 16
        %v2404 = vrot.slane %v2402, 4
        %v2405 = vshll.u32 %v2332, 16
        %v2407 = vrot.slane %v2405, 5
        %v2408 = vor.u32 %v2404, %v2407
        %v2409 = vrot.slane %v2408, 4
        %v2411 = vshll.u32 %v2333, 16
        %v2413 = vrot.slane %v2411, 5
        %v2414 = vsel %vm582, %v2409, %v2413
        %v2415 = vshrl.u32 %v2333, 16
        %v2417 = vrot.slane %v2415, 4
        %v2418 = vor.u32 %v2417, %v2413
        %v2419 = vrot.slane %v2418, 4
        %v2421 = vshll.u32 %v2334, 16
        %v2423 = vrot.slane %v2421, 5
        %v2424 = vsel %vm582, %v2419, %v2423
        %v2426 = vshrl.u32 %v2335, 16
        %v2428 = vrot.slane %v2426, 4
        %v2429 = vshll.u32 %v2335, 16
        %v2431 = vrot.slane %v2429, 5
        %v2432 = vor.u32 %v2428, %v2431
        %v2433 = vrot.slane %v2432, 4
        %v2435 = vshll.u32 %v2336, 16
        %v2437 = vrot.slane %v2435, 5
        %v2438 = vsel %vm582, %v2433, %v2437
        %v2439 = vshrl.u32 %v2336, 16
        %v2441 = vrot.slane %v2439, 4
        %v2442 = vor.u32 %v2441, %v2437
        %v2443 = vrot.slane %v2442, 4
        %v2445 = vshll.u32 %v2337, 16
        %v2447 = vrot.slane %v2445, 5
        %v2448 = vsel %vm582, %v2443, %v2447
        %v2450 = vshrl.u32 %v2338, 16
        %v2452 = vrot.slane %v2450, 4
        %v2453 = vshll.u32 %v2338, 16
        %v2455 = vrot.slane %v2453, 5
        %v2456 = vor.u32 %v2452, %v2455
        %v2457 = vrot.slane %v2456, 4
        %v2459 = vshll.u32 %v2339, 16
        %v2461 = vrot.slane %v2459, 5
        %v2462 = vsel %vm582, %v2457, %v2461
        %v2463 = vshrl.u32 %v2339, 16
        %v2465 = vrot.slane %v2463, 4
        %v2466 = vor.u32 %v2465, %v2461
        %v2467 = vrot.slane %v2466, 4
        %v2469 = vshll.u32 %v2340, 16
        %v2471 = vrot.slane %v2469, 5
        %v2472 = vsel %vm582, %v2467, %v2471
        %v2474 = vshrl.u32 %v2341, 16
        %v2476 = vrot.slane %v2474, 4
        %v2477 = vshll.u32 %v2341, 16
        %v2479 = vrot.slane %v2477, 5
        %v2480 = vor.u32 %v2476, %v2479
        %v2481 = vrot.slane %v2480, 4
        %v2483 = vshll.u32 %v2342, 16
        %v2485 = vrot.slane %v2483, 5
        %v2486 = vsel %vm582, %v2481, %v2485
        %v2487 = vshrl.u32 %v2342, 16
        %v2489 = vrot.slane %v2487, 4
        %v2490 = vor.u32 %v2489, %v2485
        %v2491 = vrot.slane %v2490, 4
        %v2493 = vshll.u32 %v2343, 16
        %v2495 = vrot.slane %v2493, 5
        %v2496 = vsel %vm582, %v2491, %v2495
        %v2498 = vshrl.u32 %v2344, 16
        %v2500 = vrot.slane %v2498, 4
        %v2501 = vshll.u32 %v2344, 16
        %v2503 = vrot.slane %v2501, 5
        %v2504 = vor.u32 %v2500, %v2503
        %v2505 = vrot.slane %v2504, 4
        %v2507 = vshll.u32 %v2345, 16
        %v2509 = vrot.slane %v2507, 5
        %v2510 = vsel %vm582, %v2505, %v2509
        %v2511 = vshrl.u32 %v2345, 16
        %v2513 = vrot.slane %v2511, 4
        %v2514 = vor.u32 %v2513, %v2509
        %v2515 = vrot.slane %v2514, 4
        %v2517 = vshll.u32 %v2346, 16
        %v2519 = vrot.slane %v2517, 5
        %v2520 = vsel %vm582, %v2515, %v2519
        %v2522 = vshrl.u32 %v2347, 16
        %v2524 = vrot.slane %v2522, 4
        %v2525 = vshll.u32 %v2347, 16
        %v2527 = vrot.slane %v2525, 5
        %v2528 = vor.u32 %v2524, %v2527
        %v2529 = vrot.slane %v2528, 4
        %v2531 = vshll.u32 %v2348, 16
        %v2533 = vrot.slane %v2531, 5
        %v2534 = vsel %vm582, %v2529, %v2533
        %v2535 = vshrl.u32 %v2348, 16
        %v2537 = vrot.slane %v2535, 4
        %v2538 = vor.u32 %v2537, %v2533
        %v2539 = vrot.slane %v2538, 4
        %v2541 = vshll.u32 %v2349, 16
        %v2543 = vrot.slane %v2541, 5
        %v2544 = vsel %vm582, %v2539, %v2543
        %v2546 = vshrl.u32 %v2350, 16
        %v2548 = vrot.slane %v2546, 4
        %v2549 = vshll.u32 %v2350, 16
        %v2551 = vrot.slane %v2549, 5
        %v2552 = vor.u32 %v2548, %v2551
        %v2553 = vrot.slane %v2552, 4
        %v2555 = vshll.u32 %v2351, 16
        %v2557 = vrot.slane %v2555, 5
        %v2558 = vsel %vm582, %v2553, %v2557
        %v2559 = vshrl.u32 %v2351, 16
        %v2561 = vrot.slane %v2559, 4
        %v2562 = vor.u32 %v2561, %v2557
        %v2563 = vrot.slane %v2562, 4
        %v2565 = vshll.u32 %v2352, 16
        %v2567 = vrot.slane %v2565, 5
        %v2568 = vsel %vm582, %v2563, %v2567
        %v2570 = vshrl.u32 %v2353, 16
        %v2572 = vrot.slane %v2570, 4
        %v2573 = vshll.u32 %v2353, 16
        %v2575 = vrot.slane %v2573, 5
        %v2576 = vor.u32 %v2572, %v2575
        %v2577 = vrot.slane %v2576, 4
        %v2579 = vshll.u32 %v2354, 16
        %v2581 = vrot.slane %v2579, 5
        %v2582 = vsel %vm582, %v2577, %v2581
        %v2583 = vshrl.u32 %v2354, 16
        %v2585 = vrot.slane %v2583, 4
        %v2586 = vor.u32 %v2585, %v2581
        %v2587 = vrot.slane %v2586, 4
        %v2589 = vshll.u32 %v2355, 16
        %v2591 = vrot.slane %v2589, 5
        %v2592 = vsel %vm582, %v2587, %v2591
        %v2594 = vshrl.u32 %v2356, 16
        %v2596 = vrot.slane %v2594, 4
        %v2597 = vshll.u32 %v2356, 16
        %v2599 = vrot.slane %v2597, 5
        %v2600 = vor.u32 %v2596, %v2599
        %v2601 = vrot.slane %v2600, 4
        %v2603 = vshll.u32 %v2357, 16
        %v2605 = vrot.slane %v2603, 5
        %v2606 = vsel %vm582, %v2601, %v2605
        %v2607 = vshrl.u32 %v2357, 16
        %v2609 = vrot.slane %v2607, 4
        %v2610 = vor.u32 %v2609, %v2605
        %v2611 = vrot.slane %v2610, 4
        %v2613 = vshll.u32 %v2358, 16
        %v2615 = vrot.slane %v2613, 5
        %v2616 = vsel %vm582, %v2611, %v2615
        %v2618 = vshrl.u32 %v2359, 16
        %v2620 = vrot.slane %v2618, 4
        %v2621 = vshll.u32 %v2359, 16
        %v2623 = vrot.slane %v2621, 5
        %v2624 = vor.u32 %v2620, %v2623
        %v2625 = vrot.slane %v2624, 4
        %v2627 = vshll.u32 %v2360, 16
        %v2629 = vrot.slane %v2627, 5
        %v2630 = vsel %vm582, %v2625, %v2629
        %v2631 = vshrl.u32 %v2360, 16
        %v2633 = vrot.slane %v2631, 4
        %v2634 = vor.u32 %v2633, %v2629
        %v2635 = vrot.slane %v2634, 4
        %v2637 = vshll.u32 %v2361, 16
        %v2639 = vrot.slane %v2637, 5
        %v2640 = vsel %vm582, %v2635, %v2639
        %v2642 = vshrl.u32 %v2362, 16
        %v2644 = vrot.slane %v2642, 4
        %v2645 = vshll.u32 %v2362, 16
        %v2647 = vrot.slane %v2645, 5
        %v2648 = vor.u32 %v2644, %v2647
        %v2649 = vrot.slane %v2648, 4
        %v2651 = vshll.u32 %v2363, 16
        %v2653 = vrot.slane %v2651, 5
        %v2654 = vsel %vm582, %v2649, %v2653
        %v2655 = vshrl.u32 %v2363, 16
        %v2657 = vrot.slane %v2655, 4
        %v2658 = vor.u32 %v2657, %v2653
        %v2659 = vrot.slane %v2658, 4
        %v2661 = vshll.u32 %v2364, 16
        %v2663 = vrot.slane %v2661, 5
        %v2664 = vsel %vm582, %v2659, %v2663
        %v2666 = vshrl.u32 %v2365, 16
        %v2668 = vrot.slane %v2666, 4
        %v2669 = vshll.u32 %v2365, 16
        %v2671 = vrot.slane %v2669, 5
        %v2672 = vor.u32 %v2668, %v2671
        %v2673 = vrot.slane %v2672, 4
        %v2675 = vshll.u32 %v2366, 16
        %v2677 = vrot.slane %v2675, 5
        %v2678 = vsel %vm582, %v2673, %v2677
        %v2679 = vshrl.u32 %v2366, 16
        %v2681 = vrot.slane %v2679, 4
        %v2682 = vor.u32 %v2681, %v2677
        %v2683 = vrot.slane %v2682, 4
        %v2685 = vshll.u32 %v2367, 16
        %v2687 = vrot.slane %v2685, 5
        %v2688 = vsel %vm582, %v2683, %v2687
        %v2690 = vshrl.u32 %v2368, 16
        %v2692 = vrot.slane %v2690, 4
        %v2693 = vshll.u32 %v2368, 16
        %v2695 = vrot.slane %v2693, 5
        %v2696 = vor.u32 %v2692, %v2695
        %v2697 = vrot.slane %v2696, 4
        %v2699 = vshll.u32 %v2369, 16
        %v2701 = vrot.slane %v2699, 5
        %v2702 = vsel %vm582, %v2697, %v2701
        %v2703 = vshrl.u32 %v2369, 16
        %v2705 = vrot.slane %v2703, 4
        %v2706 = vor.u32 %v2705, %v2701
        %v2707 = vrot.slane %v2706, 4
        %v2709 = vshll.u32 %v2370, 16
        %v2711 = vrot.slane %v2709, 5
        %v2712 = vsel %vm582, %v2707, %v2711
        %v2714 = vshrl.u32 %v2371, 16
        %v2716 = vrot.slane %v2714, 4
        %v2717 = vshll.u32 %v2371, 16
        %v2719 = vrot.slane %v2717, 5
        %v2720 = vor.u32 %v2716, %v2719
        %v2721 = vrot.slane %v2720, 4
        %v2723 = vshll.u32 %v2372, 16
        %v2725 = vrot.slane %v2723, 5
        %v2726 = vsel %vm582, %v2721, %v2725
        %v2727 = vshrl.u32 %v2372, 16
        %v2729 = vrot.slane %v2727, 4
        %v2730 = vor.u32 %v2729, %v2725
        %v2731 = vrot.slane %v2730, 4
        %v2733 = vshll.u32 %v2373, 16
        %v2735 = vrot.slane %v2733, 5
        %v2736 = vsel %vm582, %v2731, %v2735
        %v2738 = vshrl.u32 %v2374, 16
        %v2740 = vrot.slane %v2738, 4
        %v2741 = vshll.u32 %v2374, 16
        %v2743 = vrot.slane %v2741, 5
        %v2744 = vor.u32 %v2740, %v2743
        %v2745 = vrot.slane %v2744, 4
        %v2747 = vshll.u32 %v2375, 16
        %v2749 = vrot.slane %v2747, 5
        %v2750 = vsel %vm582, %v2745, %v2749
        %v2751 = vshrl.u32 %v2375, 16
        %v2753 = vrot.slane %v2751, 4
        %v2754 = vor.u32 %v2753, %v2749
        %v2755 = vrot.slane %v2754, 4
        %v2757 = vshll.u32 %v2376, 16
        %v2759 = vrot.slane %v2757, 5
        %v2760 = vsel %vm582, %v2755, %v2759
        %s2761 = scalar_lea.vmem %s1, 32
        %v2762 = vld [vmem:[%s2761] sm:$0xf]
        %v2763 = vld [vmem:[%s2761 + $0x4] sm:$0xf]
        %v2764 = vunpack.c.l.b16 %v2390
        %v2765 = vunpack.c.l.b16 %v2400
        %v2766 = vunpack.c.l.b16 %v2414
        %v2767 = vunpack.c.l.b16 %v2424
        %v2768 = vunpack.c.l.b16 %v2438
        %v2769 = vunpack.c.l.b16 %v2448
        %v2770 = vunpack.c.l.b16 %v2462
        %v2771 = vunpack.c.l.b16 %v2472
        %v2772 = vunpack.c.l.b16 %v2486
        %v2773 = vunpack.c.l.b16 %v2496
        %v2774 = vunpack.c.l.b16 %v2510
        %v2775 = vunpack.c.l.b16 %v2520
        %v2776 = vunpack.c.l.b16 %v2534
        %v2777 = vunpack.c.l.b16 %v2544
        %v2778 = vunpack.c.l.b16 %v2558
        %v2779 = vunpack.c.l.b16 %v2568
        %v2780 = vunpack.c.l.b16 %v2582
        %v2781 = vunpack.c.l.b16 %v2592
        %v2782 = vunpack.c.l.b16 %v2606
        %v2783 = vunpack.c.l.b16 %v2616
        %v2784 = vunpack.c.l.b16 %v2630
        %v2785 = vunpack.c.l.b16 %v2640
        %v2786 = vunpack.c.l.b16 %v2654
        %v2787 = vunpack.c.l.b16 %v2664
        %v2788 = vunpack.c.l.b16 %v2678
        %v2789 = vunpack.c.l.b16 %v2688
        %v2790 = vunpack.c.l.b16 %v2702
        %v2791 = vunpack.c.l.b16 %v2712
        %v2792 = vunpack.c.l.b16 %v2726
        %v2793 = vunpack.c.l.b16 %v2736
        %v2794 = vunpack.c.l.b16 %v2750
        %v2795 = vunpack.c.l.b16 %v2760
        %v2796 = vpack.c.b16 %v2765, %v2764
        %v2797 = vpack.c.b16 %v2767, %v2766
        %v2798 = vpack.c.b16 %v2769, %v2768
        %v2799 = vpack.c.b16 %v2771, %v2770
        %v2800 = vpack.c.b16 %v2773, %v2772
        %v2801 = vpack.c.b16 %v2775, %v2774
        %v2802 = vpack.c.b16 %v2777, %v2776
        %v2803 = vpack.c.b16 %v2779, %v2778
        %v2804 = vpack.c.b16 %v2781, %v2780
        %v2805 = vpack.c.b16 %v2783, %v2782
        %v2806 = vpack.c.b16 %v2785, %v2784
        %v2807 = vpack.c.b16 %v2787, %v2786
        %v2808 = vpack.c.b16 %v2789, %v2788
        %v2809 = vpack.c.b16 %v2791, %v2790
        %v2810 = vpack.c.b16 %v2793, %v2792
        %v2811 = vpack.c.b16 %v2795, %v2794
        %v2814 = vunpack.c.l.b16 %v2762
        %v2815 = vunpack.c.l.b16 %v2763
        %v2816 = vpack.c.b16 %v2815, %v2814
        %v2819 = vsel %vm290, %v2796, 0
        %v2822 = vsel %vm290, %v2797, 0
        %v2825 = vsel %vm290, %v2798, 0
        %v2828 = vsel %vm290, %v2799, 0
        %v2831 = vsel %vm290, %v2800, 0
        %v2834 = vsel %vm290, %v2801, 0
        %v2837 = vsel %vm290, %v2802, 0
        %v2840 = vsel %vm290, %v2803, 0
        %v2843 = vsel %vm290, %v2804, 0
        %v2846 = vsel %vm290, %v2805, 0
        %v2849 = vsel %vm290, %v2806, 0
        %v2852 = vsel %vm290, %v2807, 0
        %v2855 = vsel %vm290, %v2808, 0
        %v2858 = vsel %vm290, %v2809, 0
        %v2861 = vsel %vm290, %v2810, 0
        %v2864 = vsel %vm290, %v2811, 0
        %2866 = vmatprep.subr.bf16.mxu0 0
        %2867 = vmatpush1.bf16.msra.mxu0 0
        %2868 = vmatprep.subr.bf16.mxu0 0
        %2869 = vmatpush1.bf16.msra.mxu0 0
        %2870 = vmatprep.subr.bf16.mxu0 0
        %2871 = vmatpush1.bf16.msra.mxu0 0
        %2872 = vmatprep.subr.bf16.mxu0 0
        %2873 = vmatpush1.bf16.msra.mxu0 0
        %2874 = vmatprep.subr.bf16.mxu0 0
        %2875 = vmatpush1.bf16.msra.mxu0 0
        %2876 = vmatprep.subr.bf16.mxu0 0
        %2877 = vmatpush1.bf16.msra.mxu0 0
        %2878 = vmatprep.subr.bf16.mxu0 0
        %2879 = vmatpush1.bf16.msra.mxu0 0
        %2880 = vmatprep.subr.bf16.mxu0 0
        %2881 = vmatpush1.bf16.msra.mxu0 %v2816
        %2882 = vmatprep.subr.bf16.mxu0 0
        %2883 = vmatpush2.bf16.msra.mxu0 0
        %2884 = vmatprep.subr.bf16.mxu0 0
        %2885 = vmatpush2.bf16.msra.mxu0 0
        %2886 = vmatprep.subr.bf16.mxu0 0
        %2887 = vmatpush2.bf16.msra.mxu0 0
        %2888 = vmatprep.subr.bf16.mxu0 0
        %2889 = vmatpush2.bf16.msra.mxu0 0
        %2890 = vmatprep.subr.bf16.mxu0 0
        %2891 = vmatpush2.bf16.msra.mxu0 0
        %2892 = vmatprep.subr.bf16.mxu0 0
        %2893 = vmatpush2.bf16.msra.mxu0 0
        %2894 = vmatprep.subr.bf16.mxu0 0
        %2895 = vmatpush2.bf16.msra.mxu0 0
        %2896 = vmatprep.subr.bf16.mxu0 0
        %2897 = vmatpush2.bf16.msra.mxu0 0
        %2898 = vmatprep.mubr.bf16.mxu0 0
        %2899 = vmatmul.mubr.bf16.gmra.mxu0 %v2819
        %v2900 = vpop.f32.mrf.mxu0
        %v2901 = vadd.f32 0.0, %v2900
        %v2902 = vpop.f32.mrf.mxu0
        %v2903 = vpop.f32.mrf.mxu0
        %v2904 = vadd.f32 0.0, %v2903
        %v2905 = vpop.f32.mrf.mxu0
        %2906 = vmatprep.mubr.bf16.mxu0 0
        %2907 = vmatmul.mubr.bf16.gmra.mxu0 %v2822
        %v2908 = vpop.f32.mrf.mxu0
        %v2909 = vadd.f32 0.0, %v2908
        %v2910 = vpop.f32.mrf.mxu0
        %v2911 = vpop.f32.mrf.mxu0
        %v2912 = vadd.f32 0.0, %v2911
        %v2913 = vpop.f32.mrf.mxu0
        %2914 = vmatprep.mubr.bf16.mxu0 0
        %2915 = vmatmul.mubr.bf16.gmra.mxu0 %v2825
        %v2916 = vpop.f32.mrf.mxu0
        %v2917 = vadd.f32 0.0, %v2916
        %v2918 = vpop.f32.mrf.mxu0
        %v2919 = vpop.f32.mrf.mxu0
        %v2920 = vadd.f32 0.0, %v2919
        %v2921 = vpop.f32.mrf.mxu0
        %2922 = vmatprep.mubr.bf16.mxu0 0
        %2923 = vmatmul.mubr.bf16.gmra.mxu0 %v2828
        %v2924 = vpop.f32.mrf.mxu0
        %v2925 = vadd.f32 0.0, %v2924
        %v2926 = vpop.f32.mrf.mxu0
        %v2927 = vpop.f32.mrf.mxu0
        %v2928 = vadd.f32 0.0, %v2927
        %v2929 = vpop.f32.mrf.mxu0
        %2930 = vmatprep.mubr.bf16.mxu0 0
        %2931 = vmatmul.mubr.bf16.gmra.mxu0 %v2831
        %v2932 = vpop.f32.mrf.mxu0
        %v2933 = vadd.f32 0.0, %v2932
        %v2934 = vpop.f32.mrf.mxu0
        %v2935 = vpop.f32.mrf.mxu0
        %v2936 = vadd.f32 0.0, %v2935
        %v2937 = vpop.f32.mrf.mxu0
        %2938 = vmatprep.mubr.bf16.mxu0 0
        %2939 = vmatmul.mubr.bf16.gmra.mxu0 %v2834
        %v2940 = vpop.f32.mrf.mxu0
        %v2941 = vadd.f32 0.0, %v2940
        %v2942 = vpop.f32.mrf.mxu0
        %v2943 = vpop.f32.mrf.mxu0
        %v2944 = vadd.f32 0.0, %v2943
        %v2945 = vpop.f32.mrf.mxu0
        %2946 = vmatprep.mubr.bf16.mxu0 0
        %2947 = vmatmul.mubr.bf16.gmra.mxu0 %v2837
        %v2948 = vpop.f32.mrf.mxu0
        %v2949 = vadd.f32 0.0, %v2948
        %v2950 = vpop.f32.mrf.mxu0
        %v2951 = vpop.f32.mrf.mxu0
        %v2952 = vadd.f32 0.0, %v2951
        %v2953 = vpop.f32.mrf.mxu0
        %2954 = vmatprep.mubr.bf16.mxu0 0
        %2955 = vmatmul.mubr.bf16.gmra.mxu0 %v2840
        %v2956 = vpop.f32.mrf.mxu0
        %v2957 = vadd.f32 0.0, %v2956
        %v2958 = vpop.f32.mrf.mxu0
        %v2959 = vpop.f32.mrf.mxu0
        %v2960 = vadd.f32 0.0, %v2959
        %v2961 = vpop.f32.mrf.mxu0
        %2962 = vmatprep.mubr.bf16.mxu0 0
        %2963 = vmatmul.mubr.bf16.gmra.mxu0 %v2843
        %v2964 = vpop.f32.mrf.mxu0
        %v2965 = vadd.f32 0.0, %v2964
        %v2966 = vpop.f32.mrf.mxu0
        %v2967 = vpop.f32.mrf.mxu0
        %v2968 = vadd.f32 0.0, %v2967
        %v2969 = vpop.f32.mrf.mxu0
        %2970 = vmatprep.mubr.bf16.mxu0 0
        %2971 = vmatmul.mubr.bf16.gmra.mxu0 %v2846
        %v2972 = vpop.f32.mrf.mxu0
        %v2973 = vadd.f32 0.0, %v2972
        %v2974 = vpop.f32.mrf.mxu0
        %v2975 = vpop.f32.mrf.mxu0
        %v2976 = vadd.f32 0.0, %v2975
        %v2977 = vpop.f32.mrf.mxu0
        %2978 = vmatprep.mubr.bf16.mxu0 0
        %2979 = vmatmul.mubr.bf16.gmra.mxu0 %v2849
        %v2980 = vpop.f32.mrf.mxu0
        %v2981 = vadd.f32 0.0, %v2980
        %v2982 = vpop.f32.mrf.mxu0
        %v2983 = vpop.f32.mrf.mxu0
        %v2984 = vadd.f32 0.0, %v2983
        %v2985 = vpop.f32.mrf.mxu0
        %2986 = vmatprep.mubr.bf16.mxu0 0
        %2987 = vmatmul.mubr.bf16.gmra.mxu0 %v2852
        %v2988 = vpop.f32.mrf.mxu0
        %v2989 = vadd.f32 0.0, %v2988
        %v2990 = vpop.f32.mrf.mxu0
        %v2991 = vpop.f32.mrf.mxu0
        %v2992 = vadd.f32 0.0, %v2991
        %v2993 = vpop.f32.mrf.mxu0
        %2994 = vmatprep.mubr.bf16.mxu0 0
        %2995 = vmatmul.mubr.bf16.gmra.mxu0 %v2855
        %v2996 = vpop.f32.mrf.mxu0
        %v2997 = vadd.f32 0.0, %v2996
        %v2998 = vpop.f32.mrf.mxu0
        %v2999 = vpop.f32.mrf.mxu0
        %v3000 = vadd.f32 0.0, %v2999
        %v3001 = vpop.f32.mrf.mxu0
        %3002 = vmatprep.mubr.bf16.mxu0 0
        %3003 = vmatmul.mubr.bf16.gmra.mxu0 %v2858
        %v3004 = vpop.f32.mrf.mxu0
        %v3005 = vadd.f32 0.0, %v3004
        %v3006 = vpop.f32.mrf.mxu0
        %v3007 = vpop.f32.mrf.mxu0
        %v3008 = vadd.f32 0.0, %v3007
        %v3009 = vpop.f32.mrf.mxu0
        %3010 = vmatprep.mubr.bf16.mxu0 0
        %3011 = vmatmul.mubr.bf16.gmra.mxu0 %v2861
        %v3012 = vpop.f32.mrf.mxu0
        %v3013 = vadd.f32 0.0, %v3012
        %v3014 = vpop.f32.mrf.mxu0
        %v3015 = vpop.f32.mrf.mxu0
        %v3016 = vadd.f32 0.0, %v3015
        %v3017 = vpop.f32.mrf.mxu0
        %3018 = vmatprep.mubr.bf16.mxu0 0
        %3019 = vmatmul.mubr.bf16.gmra.mxu0 %v2864
        %v3020 = vpop.f32.mrf.mxu0
        %v3021 = vadd.f32 0.0, %v3020
        %v3022 = vpop.f32.mrf.mxu0
        %v3023 = vpop.f32.mrf.mxu0
        %v3024 = vadd.f32 0.0, %v3023
        %v3025 = vpop.f32.mrf.mxu0
        %3026 = vdwg.mxu0
        %v3027 = vld [vmem:[%s163] sm:$0xff]
        %v3028 = vld [vmem:[%s163 + $0x8] sm:$0xff]
        %v3029 = vld [vmem:[%s163 + $0x10] sm:$0xff]
        %v3030 = vld [vmem:[%s163 + $0x18] sm:$0xff]
        %v3031 = vld [vmem:[%s163 + $0x20] sm:$0xff]
        %v3032 = vld [vmem:[%s163 + $0x28] sm:$0xff]
        %v3033 = vld [vmem:[%s163 + $0x30] sm:$0xff]
        %v3034 = vld [vmem:[%s163 + $0x38] sm:$0xff]
        %v3035 = vld [vmem:[%s163 + $0x40] sm:$0xff]
        %v3036 = vld [vmem:[%s163 + $0x48] sm:$0xff]
        %v3037 = vld [vmem:[%s163 + $0x50] sm:$0xff]
        %v3038 = vld [vmem:[%s163 + $0x58] sm:$0xff]
        %v3039 = vld [vmem:[%s163 + $0x60] sm:$0xff]
        %v3040 = vld [vmem:[%s163 + $0x68] sm:$0xff]
        %v3041 = vld [vmem:[%s163 + $0x70] sm:$0xff]
        %v3042 = vld [vmem:[%s163 + $0x78] sm:$0xff]
        %v3043 = vld [vmem:[%s163 + $0x80] sm:$0xff]
        %v3044 = vld [vmem:[%s163 + $0x88] sm:$0xff]
        %v3045 = vld [vmem:[%s163 + $0x90] sm:$0xff]
        %v3046 = vld [vmem:[%s163 + $0x98] sm:$0xff]
        %v3047 = vld [vmem:[%s163 + $0xa0] sm:$0xff]
        %v3048 = vld [vmem:[%s163 + $0xa8] sm:$0xff]
        %v3049 = vld [vmem:[%s163 + $0xb0] sm:$0xff]
        %v3050 = vld [vmem:[%s163 + $0xb8] sm:$0xff]
        %v3051 = vld [vmem:[%s163 + $0xc0] sm:$0xff]
        %v3052 = vld [vmem:[%s163 + $0xc8] sm:$0xff]
        %v3053 = vld [vmem:[%s163 + $0xd0] sm:$0xff]
        %v3054 = vld [vmem:[%s163 + $0xd8] sm:$0xff]
        %v3055 = vld [vmem:[%s163 + $0xe0] sm:$0xff]
        %v3056 = vld [vmem:[%s163 + $0xe8] sm:$0xff]
        %v3057 = vld [vmem:[%s163 + $0xf0] sm:$0xff]
        %v3058 = vld [vmem:[%s163 + $0xf8] sm:$0xff]
        %v3059 = vadd.f32 %v3027, %v2901
        %v3060 = vadd.f32 %v3028, %v2904
        %v3061 = vadd.f32 %v3029, %v2909
        %v3062 = vadd.f32 %v3030, %v2912
        %v3063 = vadd.f32 %v3031, %v2917
        %v3064 = vadd.f32 %v3032, %v2920
        %v3065 = vadd.f32 %v3033, %v2925
        %v3066 = vadd.f32 %v3034, %v2928
        %v3067 = vadd.f32 %v3035, %v2933
        %v3068 = vadd.f32 %v3036, %v2936
        %v3069 = vadd.f32 %v3037, %v2941
        %v3070 = vadd.f32 %v3038, %v2944
        %v3071 = vadd.f32 %v3039, %v2949
        %v3072 = vadd.f32 %v3040, %v2952
        %v3073 = vadd.f32 %v3041, %v2957
        %v3074 = vadd.f32 %v3042, %v2960
        %v3075 = vadd.f32 %v3043, %v2965
        %v3076 = vadd.f32 %v3044, %v2968
        %v3077 = vadd.f32 %v3045, %v2973
        %v3078 = vadd.f32 %v3046, %v2976
        %v3079 = vadd.f32 %v3047, %v2981
        %v3080 = vadd.f32 %v3048, %v2984
        %v3081 = vadd.f32 %v3049, %v2989
        %v3082 = vadd.f32 %v3050, %v2992
        %v3083 = vadd.f32 %v3051, %v2997
        %v3084 = vadd.f32 %v3052, %v3000
        %v3085 = vadd.f32 %v3053, %v3005
        %v3086 = vadd.f32 %v3054, %v3008
        %v3087 = vadd.f32 %v3055, %v3013
        %v3088 = vadd.f32 %v3056, %v3016
        %v3089 = vadd.f32 %v3057, %v3021
        %v3090 = vadd.f32 %v3058, %v3024
        %3091 = vst [vmem:[%s163] sm:$0xff] %v3059
        %3092 = vst [vmem:[%s163 + $0x8] sm:$0xff] %v3060
        %3093 = vst [vmem:[%s163 + $0x10] sm:$0xff] %v3061
        %3094 = vst [vmem:[%s163 + $0x18] sm:$0xff] %v3062
        %3095 = vst [vmem:[%s163 + $0x20] sm:$0xff] %v3063
        %3096 = vst [vmem:[%s163 + $0x28] sm:$0xff] %v3064
        %3097 = vst [vmem:[%s163 + $0x30] sm:$0xff] %v3065
        %3098 = vst [vmem:[%s163 + $0x38] sm:$0xff] %v3066
        %3099 = vst [vmem:[%s163 + $0x40] sm:$0xff] %v3067
        %3100 = vst [vmem:[%s163 + $0x48] sm:$0xff] %v3068
        %3101 = vst [vmem:[%s163 + $0x50] sm:$0xff] %v3069
        %3102 = vst [vmem:[%s163 + $0x58] sm:$0xff] %v3070
        %3103 = vst [vmem:[%s163 + $0x60] sm:$0xff] %v3071
        %3104 = vst [vmem:[%s163 + $0x68] sm:$0xff] %v3072
        %3105 = vst [vmem:[%s163 + $0x70] sm:$0xff] %v3073
        %3106 = vst [vmem:[%s163 + $0x78] sm:$0xff] %v3074
        %3107 = vst [vmem:[%s163 + $0x80] sm:$0xff] %v3075
        %3108 = vst [vmem:[%s163 + $0x88] sm:$0xff] %v3076
        %3109 = vst [vmem:[%s163 + $0x90] sm:$0xff] %v3077
        %3110 = vst [vmem:[%s163 + $0x98] sm:$0xff] %v3078
        %3111 = vst [vmem:[%s163 + $0xa0] sm:$0xff] %v3079
        %3112 = vst [vmem:[%s163 + $0xa8] sm:$0xff] %v3080
        %3113 = vst [vmem:[%s163 + $0xb0] sm:$0xff] %v3081
        %3114 = vst [vmem:[%s163 + $0xb8] sm:$0xff] %v3082
        %3115 = vst [vmem:[%s163 + $0xc0] sm:$0xff] %v3083
        %3116 = vst [vmem:[%s163 + $0xc8] sm:$0xff] %v3084
        %3117 = vst [vmem:[%s163 + $0xd0] sm:$0xff] %v3085
        %3118 = vst [vmem:[%s163 + $0xd8] sm:$0xff] %v3086
        %3119 = vst [vmem:[%s163 + $0xe0] sm:$0xff] %v3087
        %3120 = vst [vmem:[%s163 + $0xe8] sm:$0xff] %v3088
        %3121 = vst [vmem:[%s163 + $0xf0] sm:$0xff] %v3089
        %3122 = vst [vmem:[%s163 + $0xf8] sm:$0xff] %v3090
        %v3123 = vld [vmem:[%s1902] sm:$0xe]
        %v3124 = vld [vmem:[%s1902 + $0x4] sm:$0xf]
        %v3125 = vld [vmem:[%s1902 + $0x8] sm:$0x1]
        %v3126 = vld [vmem:[%s1902 + $0xc] sm:$0xe]
        %v3127 = vld [vmem:[%s1902 + $0x10] sm:$0xf]
        %v3128 = vld [vmem:[%s1902 + $0x14] sm:$0x1]
        %v3129 = vld [vmem:[%s1902 + $0x18] sm:$0xe]
        %v3130 = vld [vmem:[%s1902 + $0x1c] sm:$0xf]
        %v3131 = vld [vmem:[%s1902 + $0x20] sm:$0x1]
        %v3132 = vld [vmem:[%s1902 + $0x24] sm:$0xe]
        %v3133 = vld [vmem:[%s1902 + $0x28] sm:$0xf]
        %v3134 = vld [vmem:[%s1902 + $0x2c] sm:$0x1]
        %v3135 = vld [vmem:[%s1902 + $0x30] sm:$0xe]
        %v3136 = vld [vmem:[%s1902 + $0x34] sm:$0xf]
        %v3137 = vld [vmem:[%s1902 + $0x38] sm:$0x1]
        %v3138 = vld [vmem:[%s1902 + $0x3c] sm:$0xe]
        %v3139 = vld [vmem:[%s1902 + $0x40] sm:$0xf]
        %v3140 = vld [vmem:[%s1902 + $0x44] sm:$0x1]
        %v3141 = vld [vmem:[%s1902 + $0x48] sm:$0xe]
        %v3142 = vld [vmem:[%s1902 + $0x4c] sm:$0xf]
        %v3143 = vld [vmem:[%s1902 + $0x50] sm:$0x1]
        %v3144 = vld [vmem:[%s1902 + $0x54] sm:$0xe]
        %v3145 = vld [vmem:[%s1902 + $0x58] sm:$0xf]
        %v3146 = vld [vmem:[%s1902 + $0x5c] sm:$0x1]
        %v3147 = vld [vmem:[%s1902 + $0x60] sm:$0xe]
        %v3148 = vld [vmem:[%s1902 + $0x64] sm:$0xf]
        %v3149 = vld [vmem:[%s1902 + $0x68] sm:$0x1]
        %v3150 = vld [vmem:[%s1902 + $0x6c] sm:$0xe]
        %v3151 = vld [vmem:[%s1902 + $0x70] sm:$0xf]
        %v3152 = vld [vmem:[%s1902 + $0x74] sm:$0x1]
        %v3153 = vld [vmem:[%s1902 + $0x78] sm:$0xe]
        %v3154 = vld [vmem:[%s1902 + $0x7c] sm:$0xf]
        %v3155 = vld [vmem:[%s1902 + $0x80] sm:$0x1]
        %v3156 = vld [vmem:[%s1902 + $0x84] sm:$0xe]
        %v3157 = vld [vmem:[%s1902 + $0x88] sm:$0xf]
        %v3158 = vld [vmem:[%s1902 + $0x8c] sm:$0x1]
        %v3159 = vld [vmem:[%s1902 + $0x90] sm:$0xe]
        %v3160 = vld [vmem:[%s1902 + $0x94] sm:$0xf]
        %v3161 = vld [vmem:[%s1902 + $0x98] sm:$0x1]
        %v3162 = vld [vmem:[%s1902 + $0x9c] sm:$0xe]
        %v3163 = vld [vmem:[%s1902 + $0xa0] sm:$0xf]
        %v3164 = vld [vmem:[%s1902 + $0xa4] sm:$0x1]
        %v3165 = vld [vmem:[%s1902 + $0xa8] sm:$0xe]
        %v3166 = vld [vmem:[%s1902 + $0xac] sm:$0xf]
        %v3167 = vld [vmem:[%s1902 + $0xb0] sm:$0x1]
        %v3168 = vld [vmem:[%s1902 + $0xb4] sm:$0xe]
        %v3169 = vld [vmem:[%s1902 + $0xb8] sm:$0xf]
        %v3170 = vld [vmem:[%s1902 + $0xbc] sm:$0x1]
        %v3219 = vrot.slane %v3123, 5
        %v3220 = vrot.slane %v3219, 4
        %v3221 = vrot.slane %v3124, 5
        %v3222 = vsel %vm1427, %v3220, %v3221
        %v3223 = vrot.slane %v3221, 4
        %v3224 = vrot.slane %v3125, 5
        %v3225 = vsel %vm1427, %v3223, %v3224
        %v3226 = vrot.slane %v3126, 5
        %v3227 = vrot.slane %v3226, 4
        %v3228 = vrot.slane %v3127, 5
        %v3229 = vsel %vm1427, %v3227, %v3228
        %v3230 = vrot.slane %v3228, 4
        %v3231 = vrot.slane %v3128, 5
        %v3232 = vsel %vm1427, %v3230, %v3231
        %v3233 = vrot.slane %v3129, 5
        %v3234 = vrot.slane %v3233, 4
        %v3235 = vrot.slane %v3130, 5
        %v3236 = vsel %vm1427, %v3234, %v3235
        %v3237 = vrot.slane %v3235, 4
        %v3238 = vrot.slane %v3131, 5
        %v3239 = vsel %vm1427, %v3237, %v3238
        %v3240 = vrot.slane %v3132, 5
        %v3241 = vrot.slane %v3240, 4
        %v3242 = vrot.slane %v3133, 5
        %v3243 = vsel %vm1427, %v3241, %v3242
        %v3244 = vrot.slane %v3242, 4
        %v3245 = vrot.slane %v3134, 5
        %v3246 = vsel %vm1427, %v3244, %v3245
        %v3247 = vrot.slane %v3135, 5
        %v3248 = vrot.slane %v3247, 4
        %v3249 = vrot.slane %v3136, 5
        %v3250 = vsel %vm1427, %v3248, %v3249
        %v3251 = vrot.slane %v3249, 4
        %v3252 = vrot.slane %v3137, 5
        %v3253 = vsel %vm1427, %v3251, %v3252
        %v3254 = vrot.slane %v3138, 5
        %v3255 = vrot.slane %v3254, 4
        %v3256 = vrot.slane %v3139, 5
        %v3257 = vsel %vm1427, %v3255, %v3256
        %v3258 = vrot.slane %v3256, 4
        %v3259 = vrot.slane %v3140, 5
        %v3260 = vsel %vm1427, %v3258, %v3259
        %v3261 = vrot.slane %v3141, 5
        %v3262 = vrot.slane %v3261, 4
        %v3263 = vrot.slane %v3142, 5
        %v3264 = vsel %vm1427, %v3262, %v3263
        %v3265 = vrot.slane %v3263, 4
        %v3266 = vrot.slane %v3143, 5
        %v3267 = vsel %vm1427, %v3265, %v3266
        %v3268 = vrot.slane %v3144, 5
        %v3269 = vrot.slane %v3268, 4
        %v3270 = vrot.slane %v3145, 5
        %v3271 = vsel %vm1427, %v3269, %v3270
        %v3272 = vrot.slane %v3270, 4
        %v3273 = vrot.slane %v3146, 5
        %v3274 = vsel %vm1427, %v3272, %v3273
        %v3275 = vrot.slane %v3147, 5
        %v3276 = vrot.slane %v3275, 4
        %v3277 = vrot.slane %v3148, 5
        %v3278 = vsel %vm1427, %v3276, %v3277
        %v3279 = vrot.slane %v3277, 4
        %v3280 = vrot.slane %v3149, 5
        %v3281 = vsel %vm1427, %v3279, %v3280
        %v3282 = vrot.slane %v3150, 5
        %v3283 = vrot.slane %v3282, 4
        %v3284 = vrot.slane %v3151, 5
        %v3285 = vsel %vm1427, %v3283, %v3284
        %v3286 = vrot.slane %v3284, 4
        %v3287 = vrot.slane %v3152, 5
        %v3288 = vsel %vm1427, %v3286, %v3287
        %v3289 = vrot.slane %v3153, 5
        %v3290 = vrot.slane %v3289, 4
        %v3291 = vrot.slane %v3154, 5
        %v3292 = vsel %vm1427, %v3290, %v3291
        %v3293 = vrot.slane %v3291, 4
        %v3294 = vrot.slane %v3155, 5
        %v3295 = vsel %vm1427, %v3293, %v3294
        %v3296 = vrot.slane %v3156, 5
        %v3297 = vrot.slane %v3296, 4
        %v3298 = vrot.slane %v3157, 5
        %v3299 = vsel %vm1427, %v3297, %v3298
        %v3300 = vrot.slane %v3298, 4
        %v3301 = vrot.slane %v3158, 5
        %v3302 = vsel %vm1427, %v3300, %v3301
        %v3303 = vrot.slane %v3159, 5
        %v3304 = vrot.slane %v3303, 4
        %v3305 = vrot.slane %v3160, 5
        %v3306 = vsel %vm1427, %v3304, %v3305
        %v3307 = vrot.slane %v3305, 4
        %v3308 = vrot.slane %v3161, 5
        %v3309 = vsel %vm1427, %v3307, %v3308
        %v3310 = vrot.slane %v3162, 5
        %v3311 = vrot.slane %v3310, 4
        %v3312 = vrot.slane %v3163, 5
        %v3313 = vsel %vm1427, %v3311, %v3312
        %v3314 = vrot.slane %v3312, 4
        %v3315 = vrot.slane %v3164, 5
        %v3316 = vsel %vm1427, %v3314, %v3315
        %v3317 = vrot.slane %v3165, 5
        %v3318 = vrot.slane %v3317, 4
        %v3319 = vrot.slane %v3166, 5
        %v3320 = vsel %vm1427, %v3318, %v3319
        %v3321 = vrot.slane %v3319, 4
        %v3322 = vrot.slane %v3167, 5
        %v3323 = vsel %vm1427, %v3321, %v3322
        %v3324 = vrot.slane %v3168, 5
        %v3325 = vrot.slane %v3324, 4
        %v3326 = vrot.slane %v3169, 5
        %v3327 = vsel %vm1427, %v3325, %v3326
        %v3328 = vrot.slane %v3326, 4
        %v3329 = vrot.slane %v3170, 5
        %v3330 = vsel %vm1427, %v3328, %v3329
        %s3331 = scalar_lea.vmem %s1, 40
        %v3332 = vld [vmem:[%s3331] sm:$0xf]
        %v3333 = vld [vmem:[%s3331 + $0x4] sm:$0xf]
        %v3334 = vunpack.c.l.b16 %v3222
        %v3335 = vunpack.c.l.b16 %v3225
        %v3336 = vunpack.c.l.b16 %v3229
        %v3337 = vunpack.c.l.b16 %v3232
        %v3338 = vunpack.c.l.b16 %v3236
        %v3339 = vunpack.c.l.b16 %v3239
        %v3340 = vunpack.c.l.b16 %v3243
        %v3341 = vunpack.c.l.b16 %v3246
        %v3342 = vunpack.c.l.b16 %v3250
        %v3343 = vunpack.c.l.b16 %v3253
        %v3344 = vunpack.c.l.b16 %v3257
        %v3345 = vunpack.c.l.b16 %v3260
        %v3346 = vunpack.c.l.b16 %v3264
        %v3347 = vunpack.c.l.b16 %v3267
        %v3348 = vunpack.c.l.b16 %v3271
        %v3349 = vunpack.c.l.b16 %v3274
        %v3350 = vunpack.c.l.b16 %v3278
        %v3351 = vunpack.c.l.b16 %v3281
        %v3352 = vunpack.c.l.b16 %v3285
        %v3353 = vunpack.c.l.b16 %v3288
        %v3354 = vunpack.c.l.b16 %v3292
        %v3355 = vunpack.c.l.b16 %v3295
        %v3356 = vunpack.c.l.b16 %v3299
        %v3357 = vunpack.c.l.b16 %v3302
        %v3358 = vunpack.c.l.b16 %v3306
        %v3359 = vunpack.c.l.b16 %v3309
        %v3360 = vunpack.c.l.b16 %v3313
        %v3361 = vunpack.c.l.b16 %v3316
        %v3362 = vunpack.c.l.b16 %v3320
        %v3363 = vunpack.c.l.b16 %v3323
        %v3364 = vunpack.c.l.b16 %v3327
        %v3365 = vunpack.c.l.b16 %v3330
        %v3366 = vpack.c.b16 %v3335, %v3334
        %v3367 = vpack.c.b16 %v3337, %v3336
        %v3368 = vpack.c.b16 %v3339, %v3338
        %v3369 = vpack.c.b16 %v3341, %v3340
        %v3370 = vpack.c.b16 %v3343, %v3342
        %v3371 = vpack.c.b16 %v3345, %v3344
        %v3372 = vpack.c.b16 %v3347, %v3346
        %v3373 = vpack.c.b16 %v3349, %v3348
        %v3374 = vpack.c.b16 %v3351, %v3350
        %v3375 = vpack.c.b16 %v3353, %v3352
        %v3376 = vpack.c.b16 %v3355, %v3354
        %v3377 = vpack.c.b16 %v3357, %v3356
        %v3378 = vpack.c.b16 %v3359, %v3358
        %v3379 = vpack.c.b16 %v3361, %v3360
        %v3380 = vpack.c.b16 %v3363, %v3362
        %v3381 = vpack.c.b16 %v3365, %v3364
        %v3384 = vunpack.c.l.b16 %v3332
        %v3385 = vunpack.c.l.b16 %v3333
        %v3386 = vpack.c.b16 %v3385, %v3384
        %v3389 = vsel %vm290, %v3366, 0
        %v3392 = vsel %vm290, %v3367, 0
        %v3395 = vsel %vm290, %v3368, 0
        %v3398 = vsel %vm290, %v3369, 0
        %v3401 = vsel %vm290, %v3370, 0
        %v3404 = vsel %vm290, %v3371, 0
        %v3407 = vsel %vm290, %v3372, 0
        %v3410 = vsel %vm290, %v3373, 0
        %v3413 = vsel %vm290, %v3374, 0
        %v3416 = vsel %vm290, %v3375, 0
        %v3419 = vsel %vm290, %v3376, 0
        %v3422 = vsel %vm290, %v3377, 0
        %v3425 = vsel %vm290, %v3378, 0
        %v3428 = vsel %vm290, %v3379, 0
        %v3431 = vsel %vm290, %v3380, 0
        %v3434 = vsel %vm290, %v3381, 0
        %3436 = vmatprep.subr.bf16.mxu0 0
        %3437 = vmatpush1.bf16.msra.mxu0 0
        %3438 = vmatprep.subr.bf16.mxu0 0
        %3439 = vmatpush1.bf16.msra.mxu0 0
        %3440 = vmatprep.subr.bf16.mxu0 0
        %3441 = vmatpush1.bf16.msra.mxu0 0
        %3442 = vmatprep.subr.bf16.mxu0 0
        %3443 = vmatpush1.bf16.msra.mxu0 0
        %3444 = vmatprep.subr.bf16.mxu0 0
        %3445 = vmatpush1.bf16.msra.mxu0 0
        %3446 = vmatprep.subr.bf16.mxu0 0
        %3447 = vmatpush1.bf16.msra.mxu0 0
        %3448 = vmatprep.subr.bf16.mxu0 0
        %3449 = vmatpush1.bf16.msra.mxu0 0
        %3450 = vmatprep.subr.bf16.mxu0 0
        %3451 = vmatpush1.bf16.msra.mxu0 %v3386
        %3452 = vmatprep.subr.bf16.mxu0 0
        %3453 = vmatpush2.bf16.msra.mxu0 0
        %3454 = vmatprep.subr.bf16.mxu0 0
        %3455 = vmatpush2.bf16.msra.mxu0 0
        %3456 = vmatprep.subr.bf16.mxu0 0
        %3457 = vmatpush2.bf16.msra.mxu0 0
        %3458 = vmatprep.subr.bf16.mxu0 0
        %3459 = vmatpush2.bf16.msra.mxu0 0
        %3460 = vmatprep.subr.bf16.mxu0 0
        %3461 = vmatpush2.bf16.msra.mxu0 0
        %3462 = vmatprep.subr.bf16.mxu0 0
        %3463 = vmatpush2.bf16.msra.mxu0 0
        %3464 = vmatprep.subr.bf16.mxu0 0
        %3465 = vmatpush2.bf16.msra.mxu0 0
        %3466 = vmatprep.subr.bf16.mxu0 0
        %3467 = vmatpush2.bf16.msra.mxu0 0
        %3468 = vmatprep.mubr.bf16.mxu0 0
        %3469 = vmatmul.mubr.bf16.gmra.mxu0 %v3389
        %v3470 = vpop.f32.mrf.mxu0
        %v3471 = vadd.f32 0.0, %v3470
        %v3472 = vpop.f32.mrf.mxu0
        %v3473 = vpop.f32.mrf.mxu0
        %v3474 = vadd.f32 0.0, %v3473
        %v3475 = vpop.f32.mrf.mxu0
        %3476 = vmatprep.mubr.bf16.mxu0 0
        %3477 = vmatmul.mubr.bf16.gmra.mxu0 %v3392
        %v3478 = vpop.f32.mrf.mxu0
        %v3479 = vadd.f32 0.0, %v3478
        %v3480 = vpop.f32.mrf.mxu0
        %v3481 = vpop.f32.mrf.mxu0
        %v3482 = vadd.f32 0.0, %v3481
        %v3483 = vpop.f32.mrf.mxu0
        %3484 = vmatprep.mubr.bf16.mxu0 0
        %3485 = vmatmul.mubr.bf16.gmra.mxu0 %v3395
        %v3486 = vpop.f32.mrf.mxu0
        %v3487 = vadd.f32 0.0, %v3486
        %v3488 = vpop.f32.mrf.mxu0
        %v3489 = vpop.f32.mrf.mxu0
        %v3490 = vadd.f32 0.0, %v3489
        %v3491 = vpop.f32.mrf.mxu0
        %3492 = vmatprep.mubr.bf16.mxu0 0
        %3493 = vmatmul.mubr.bf16.gmra.mxu0 %v3398
        %v3494 = vpop.f32.mrf.mxu0
        %v3495 = vadd.f32 0.0, %v3494
        %v3496 = vpop.f32.mrf.mxu0
        %v3497 = vpop.f32.mrf.mxu0
        %v3498 = vadd.f32 0.0, %v3497
        %v3499 = vpop.f32.mrf.mxu0
        %3500 = vmatprep.mubr.bf16.mxu0 0
        %3501 = vmatmul.mubr.bf16.gmra.mxu0 %v3401
        %v3502 = vpop.f32.mrf.mxu0
        %v3503 = vadd.f32 0.0, %v3502
        %v3504 = vpop.f32.mrf.mxu0
        %v3505 = vpop.f32.mrf.mxu0
        %v3506 = vadd.f32 0.0, %v3505
        %v3507 = vpop.f32.mrf.mxu0
        %3508 = vmatprep.mubr.bf16.mxu0 0
        %3509 = vmatmul.mubr.bf16.gmra.mxu0 %v3404
        %v3510 = vpop.f32.mrf.mxu0
        %v3511 = vadd.f32 0.0, %v3510
        %v3512 = vpop.f32.mrf.mxu0
        %v3513 = vpop.f32.mrf.mxu0
        %v3514 = vadd.f32 0.0, %v3513
        %v3515 = vpop.f32.mrf.mxu0
        %3516 = vmatprep.mubr.bf16.mxu0 0
        %3517 = vmatmul.mubr.bf16.gmra.mxu0 %v3407
        %v3518 = vpop.f32.mrf.mxu0
        %v3519 = vadd.f32 0.0, %v3518
        %v3520 = vpop.f32.mrf.mxu0
        %v3521 = vpop.f32.mrf.mxu0
        %v3522 = vadd.f32 0.0, %v3521
        %v3523 = vpop.f32.mrf.mxu0
        %3524 = vmatprep.mubr.bf16.mxu0 0
        %3525 = vmatmul.mubr.bf16.gmra.mxu0 %v3410
        %v3526 = vpop.f32.mrf.mxu0
        %v3527 = vadd.f32 0.0, %v3526
        %v3528 = vpop.f32.mrf.mxu0
        %v3529 = vpop.f32.mrf.mxu0
        %v3530 = vadd.f32 0.0, %v3529
        %v3531 = vpop.f32.mrf.mxu0
        %3532 = vmatprep.mubr.bf16.mxu0 0
        %3533 = vmatmul.mubr.bf16.gmra.mxu0 %v3413
        %v3534 = vpop.f32.mrf.mxu0
        %v3535 = vadd.f32 0.0, %v3534
        %v3536 = vpop.f32.mrf.mxu0
        %v3537 = vpop.f32.mrf.mxu0
        %v3538 = vadd.f32 0.0, %v3537
        %v3539 = vpop.f32.mrf.mxu0
        %3540 = vmatprep.mubr.bf16.mxu0 0
        %3541 = vmatmul.mubr.bf16.gmra.mxu0 %v3416
        %v3542 = vpop.f32.mrf.mxu0
        %v3543 = vadd.f32 0.0, %v3542
        %v3544 = vpop.f32.mrf.mxu0
        %v3545 = vpop.f32.mrf.mxu0
        %v3546 = vadd.f32 0.0, %v3545
        %v3547 = vpop.f32.mrf.mxu0
        %3548 = vmatprep.mubr.bf16.mxu0 0
        %3549 = vmatmul.mubr.bf16.gmra.mxu0 %v3419
        %v3550 = vpop.f32.mrf.mxu0
        %v3551 = vadd.f32 0.0, %v3550
        %v3552 = vpop.f32.mrf.mxu0
        %v3553 = vpop.f32.mrf.mxu0
        %v3554 = vadd.f32 0.0, %v3553
        %v3555 = vpop.f32.mrf.mxu0
        %3556 = vmatprep.mubr.bf16.mxu0 0
        %3557 = vmatmul.mubr.bf16.gmra.mxu0 %v3422
        %v3558 = vpop.f32.mrf.mxu0
        %v3559 = vadd.f32 0.0, %v3558
        %v3560 = vpop.f32.mrf.mxu0
        %v3561 = vpop.f32.mrf.mxu0
        %v3562 = vadd.f32 0.0, %v3561
        %v3563 = vpop.f32.mrf.mxu0
        %3564 = vmatprep.mubr.bf16.mxu0 0
        %3565 = vmatmul.mubr.bf16.gmra.mxu0 %v3425
        %v3566 = vpop.f32.mrf.mxu0
        %v3567 = vadd.f32 0.0, %v3566
        %v3568 = vpop.f32.mrf.mxu0
        %v3569 = vpop.f32.mrf.mxu0
        %v3570 = vadd.f32 0.0, %v3569
        %v3571 = vpop.f32.mrf.mxu0
        %3572 = vmatprep.mubr.bf16.mxu0 0
        %3573 = vmatmul.mubr.bf16.gmra.mxu0 %v3428
        %v3574 = vpop.f32.mrf.mxu0
        %v3575 = vadd.f32 0.0, %v3574
        %v3576 = vpop.f32.mrf.mxu0
        %v3577 = vpop.f32.mrf.mxu0
        %v3578 = vadd.f32 0.0, %v3577
        %v3579 = vpop.f32.mrf.mxu0
        %3580 = vmatprep.mubr.bf16.mxu0 0
        %3581 = vmatmul.mubr.bf16.gmra.mxu0 %v3431
        %v3582 = vpop.f32.mrf.mxu0
        %v3583 = vadd.f32 0.0, %v3582
        %v3584 = vpop.f32.mrf.mxu0
        %v3585 = vpop.f32.mrf.mxu0
        %v3586 = vadd.f32 0.0, %v3585
        %v3587 = vpop.f32.mrf.mxu0
        %3588 = vmatprep.mubr.bf16.mxu0 0
        %3589 = vmatmul.mubr.bf16.gmra.mxu0 %v3434
        %v3590 = vpop.f32.mrf.mxu0
        %v3591 = vadd.f32 0.0, %v3590
        %v3592 = vpop.f32.mrf.mxu0
        %v3593 = vpop.f32.mrf.mxu0
        %v3594 = vadd.f32 0.0, %v3593
        %v3595 = vpop.f32.mrf.mxu0
        %3596 = vdwg.mxu0
        %v3597 = vld [vmem:[%s163] sm:$0xff]
        %v3598 = vld [vmem:[%s163 + $0x8] sm:$0xff]
        %v3599 = vld [vmem:[%s163 + $0x10] sm:$0xff]
        %v3600 = vld [vmem:[%s163 + $0x18] sm:$0xff]
        %v3601 = vld [vmem:[%s163 + $0x20] sm:$0xff]
        %v3602 = vld [vmem:[%s163 + $0x28] sm:$0xff]
        %v3603 = vld [vmem:[%s163 + $0x30] sm:$0xff]
        %v3604 = vld [vmem:[%s163 + $0x38] sm:$0xff]
        %v3605 = vld [vmem:[%s163 + $0x40] sm:$0xff]
        %v3606 = vld [vmem:[%s163 + $0x48] sm:$0xff]
        %v3607 = vld [vmem:[%s163 + $0x50] sm:$0xff]
        %v3608 = vld [vmem:[%s163 + $0x58] sm:$0xff]
        %v3609 = vld [vmem:[%s163 + $0x60] sm:$0xff]
        %v3610 = vld [vmem:[%s163 + $0x68] sm:$0xff]
        %v3611 = vld [vmem:[%s163 + $0x70] sm:$0xff]
        %v3612 = vld [vmem:[%s163 + $0x78] sm:$0xff]
        %v3613 = vld [vmem:[%s163 + $0x80] sm:$0xff]
        %v3614 = vld [vmem:[%s163 + $0x88] sm:$0xff]
        %v3615 = vld [vmem:[%s163 + $0x90] sm:$0xff]
        %v3616 = vld [vmem:[%s163 + $0x98] sm:$0xff]
        %v3617 = vld [vmem:[%s163 + $0xa0] sm:$0xff]
        %v3618 = vld [vmem:[%s163 + $0xa8] sm:$0xff]
        %v3619 = vld [vmem:[%s163 + $0xb0] sm:$0xff]
        %v3620 = vld [vmem:[%s163 + $0xb8] sm:$0xff]
        %v3621 = vld [vmem:[%s163 + $0xc0] sm:$0xff]
        %v3622 = vld [vmem:[%s163 + $0xc8] sm:$0xff]
        %v3623 = vld [vmem:[%s163 + $0xd0] sm:$0xff]
        %v3624 = vld [vmem:[%s163 + $0xd8] sm:$0xff]
        %v3625 = vld [vmem:[%s163 + $0xe0] sm:$0xff]
        %v3626 = vld [vmem:[%s163 + $0xe8] sm:$0xff]
        %v3627 = vld [vmem:[%s163 + $0xf0] sm:$0xff]
        %v3628 = vld [vmem:[%s163 + $0xf8] sm:$0xff]
        %v3629 = vadd.f32 %v3597, %v3471
        %v3630 = vadd.f32 %v3598, %v3474
        %v3631 = vadd.f32 %v3599, %v3479
        %v3632 = vadd.f32 %v3600, %v3482
        %v3633 = vadd.f32 %v3601, %v3487
        %v3634 = vadd.f32 %v3602, %v3490
        %v3635 = vadd.f32 %v3603, %v3495
        %v3636 = vadd.f32 %v3604, %v3498
        %v3637 = vadd.f32 %v3605, %v3503
        %v3638 = vadd.f32 %v3606, %v3506
        %v3639 = vadd.f32 %v3607, %v3511
        %v3640 = vadd.f32 %v3608, %v3514
        %v3641 = vadd.f32 %v3609, %v3519
        %v3642 = vadd.f32 %v3610, %v3522
        %v3643 = vadd.f32 %v3611, %v3527
        %v3644 = vadd.f32 %v3612, %v3530
        %v3645 = vadd.f32 %v3613, %v3535
        %v3646 = vadd.f32 %v3614, %v3538
        %v3647 = vadd.f32 %v3615, %v3543
        %v3648 = vadd.f32 %v3616, %v3546
        %v3649 = vadd.f32 %v3617, %v3551
        %v3650 = vadd.f32 %v3618, %v3554
        %v3651 = vadd.f32 %v3619, %v3559
        %v3652 = vadd.f32 %v3620, %v3562
        %v3653 = vadd.f32 %v3621, %v3567
        %v3654 = vadd.f32 %v3622, %v3570
        %v3655 = vadd.f32 %v3623, %v3575
        %v3656 = vadd.f32 %v3624, %v3578
        %v3657 = vadd.f32 %v3625, %v3583
        %v3658 = vadd.f32 %v3626, %v3586
        %v3659 = vadd.f32 %v3627, %v3591
        %v3660 = vadd.f32 %v3628, %v3594
        %3661 = vst [vmem:[%s163] sm:$0xff] %v3629
        %3662 = vst [vmem:[%s163 + $0x8] sm:$0xff] %v3630
        %3663 = vst [vmem:[%s163 + $0x10] sm:$0xff] %v3631
        %3664 = vst [vmem:[%s163 + $0x18] sm:$0xff] %v3632
        %3665 = vst [vmem:[%s163 + $0x20] sm:$0xff] %v3633
        %3666 = vst [vmem:[%s163 + $0x28] sm:$0xff] %v3634
        %3667 = vst [vmem:[%s163 + $0x30] sm:$0xff] %v3635
        %3668 = vst [vmem:[%s163 + $0x38] sm:$0xff] %v3636
        %3669 = vst [vmem:[%s163 + $0x40] sm:$0xff] %v3637
        %3670 = vst [vmem:[%s163 + $0x48] sm:$0xff] %v3638
        %3671 = vst [vmem:[%s163 + $0x50] sm:$0xff] %v3639
        %3672 = vst [vmem:[%s163 + $0x58] sm:$0xff] %v3640
        %3673 = vst [vmem:[%s163 + $0x60] sm:$0xff] %v3641
        %3674 = vst [vmem:[%s163 + $0x68] sm:$0xff] %v3642
        %3675 = vst [vmem:[%s163 + $0x70] sm:$0xff] %v3643
        %3676 = vst [vmem:[%s163 + $0x78] sm:$0xff] %v3644
        %3677 = vst [vmem:[%s163 + $0x80] sm:$0xff] %v3645
        %3678 = vst [vmem:[%s163 + $0x88] sm:$0xff] %v3646
        %3679 = vst [vmem:[%s163 + $0x90] sm:$0xff] %v3647
        %3680 = vst [vmem:[%s163 + $0x98] sm:$0xff] %v3648
        %3681 = vst [vmem:[%s163 + $0xa0] sm:$0xff] %v3649
        %3682 = vst [vmem:[%s163 + $0xa8] sm:$0xff] %v3650
        %3683 = vst [vmem:[%s163 + $0xb0] sm:$0xff] %v3651
        %3684 = vst [vmem:[%s163 + $0xb8] sm:$0xff] %v3652
        %3685 = vst [vmem:[%s163 + $0xc0] sm:$0xff] %v3653
        %3686 = vst [vmem:[%s163 + $0xc8] sm:$0xff] %v3654
        %3687 = vst [vmem:[%s163 + $0xd0] sm:$0xff] %v3655
        %3688 = vst [vmem:[%s163 + $0xd8] sm:$0xff] %v3656
        %3689 = vst [vmem:[%s163 + $0xe0] sm:$0xff] %v3657
        %3690 = vst [vmem:[%s163 + $0xe8] sm:$0xff] %v3658
        %3691 = vst [vmem:[%s163 + $0xf0] sm:$0xff] %v3659
        %3692 = vst [vmem:[%s163 + $0xf8] sm:$0xff] %v3660
        %s3693 = scalar_lea.vmem %s168, 24
        %v3694 = vld [vmem:[%s3693] sm:$0xf]
        %v3695 = vld [vmem:[%s3693 + $0x4] sm:$0xf]
        %v3696 = vld [vmem:[%s3693 + $0xc] sm:$0xf]
        %v3697 = vld [vmem:[%s3693 + $0x10] sm:$0xf]
        %v3698 = vld [vmem:[%s3693 + $0x18] sm:$0xf]
        %v3699 = vld [vmem:[%s3693 + $0x1c] sm:$0xf]
        %v3700 = vld [vmem:[%s3693 + $0x24] sm:$0xf]
        %v3701 = vld [vmem:[%s3693 + $0x28] sm:$0xf]
        %v3702 = vld [vmem:[%s3693 + $0x30] sm:$0xf]
        %v3703 = vld [vmem:[%s3693 + $0x34] sm:$0xf]
        %v3704 = vld [vmem:[%s3693 + $0x3c] sm:$0xf]
        %v3705 = vld [vmem:[%s3693 + $0x40] sm:$0xf]
        %v3706 = vld [vmem:[%s3693 + $0x48] sm:$0xf]
        %v3707 = vld [vmem:[%s3693 + $0x4c] sm:$0xf]
        %v3708 = vld [vmem:[%s3693 + $0x54] sm:$0xf]
        %v3709 = vld [vmem:[%s3693 + $0x58] sm:$0xf]
        %v3710 = vld [vmem:[%s3693 + $0x60] sm:$0xf]
        %v3711 = vld [vmem:[%s3693 + $0x64] sm:$0xf]
        %v3712 = vld [vmem:[%s3693 + $0x6c] sm:$0xf]
        %v3713 = vld [vmem:[%s3693 + $0x70] sm:$0xf]
        %v3714 = vld [vmem:[%s3693 + $0x78] sm:$0xf]
        %v3715 = vld [vmem:[%s3693 + $0x7c] sm:$0xf]
        %v3716 = vld [vmem:[%s3693 + $0x84] sm:$0xf]
        %v3717 = vld [vmem:[%s3693 + $0x88] sm:$0xf]
        %v3718 = vld [vmem:[%s3693 + $0x90] sm:$0xf]
        %v3719 = vld [vmem:[%s3693 + $0x94] sm:$0xf]
        %v3720 = vld [vmem:[%s3693 + $0x9c] sm:$0xf]
        %v3721 = vld [vmem:[%s3693 + $0xa0] sm:$0xf]
        %v3722 = vld [vmem:[%s3693 + $0xa8] sm:$0xf]
        %v3723 = vld [vmem:[%s3693 + $0xac] sm:$0xf]
        %v3724 = vld [vmem:[%s3693 + $0xb4] sm:$0xf]
        %v3725 = vld [vmem:[%s3693 + $0xb8] sm:$0xf]
        %s3726 = scalar_lea.vmem %s1, 48
        %v3727 = vld [vmem:[%s3726] sm:$0xf]
        %v3728 = vld [vmem:[%s3726 + $0x4] sm:$0xf]
        %v3761 = vunpack.c.l.b16 %v3694
        %v3762 = vunpack.c.l.b16 %v3695
        %v3763 = vunpack.c.l.b16 %v3696
        %v3764 = vunpack.c.l.b16 %v3697
        %v3765 = vunpack.c.l.b16 %v3698
        %v3766 = vunpack.c.l.b16 %v3699
        %v3767 = vunpack.c.l.b16 %v3700
        %v3768 = vunpack.c.l.b16 %v3701
        %v3769 = vunpack.c.l.b16 %v3702
        %v3770 = vunpack.c.l.b16 %v3703
        %v3771 = vunpack.c.l.b16 %v3704
        %v3772 = vunpack.c.l.b16 %v3705
        %v3773 = vunpack.c.l.b16 %v3706
        %v3774 = vunpack.c.l.b16 %v3707
        %v3775 = vunpack.c.l.b16 %v3708
        %v3776 = vunpack.c.l.b16 %v3709
        %v3777 = vunpack.c.l.b16 %v3710
        %v3778 = vunpack.c.l.b16 %v3711
        %v3779 = vunpack.c.l.b16 %v3712
        %v3780 = vunpack.c.l.b16 %v3713
        %v3781 = vunpack.c.l.b16 %v3714
        %v3782 = vunpack.c.l.b16 %v3715
        %v3783 = vunpack.c.l.b16 %v3716
        %v3784 = vunpack.c.l.b16 %v3717
        %v3785 = vunpack.c.l.b16 %v3718
        %v3786 = vunpack.c.l.b16 %v3719
        %v3787 = vunpack.c.l.b16 %v3720
        %v3788 = vunpack.c.l.b16 %v3721
        %v3789 = vunpack.c.l.b16 %v3722
        %v3790 = vunpack.c.l.b16 %v3723
        %v3791 = vunpack.c.l.b16 %v3724
        %v3792 = vunpack.c.l.b16 %v3725
        %v3793 = vpack.c.b16 %v3762, %v3761
        %v3794 = vpack.c.b16 %v3764, %v3763
        %v3795 = vpack.c.b16 %v3766, %v3765
        %v3796 = vpack.c.b16 %v3768, %v3767
        %v3797 = vpack.c.b16 %v3770, %v3769
        %v3798 = vpack.c.b16 %v3772, %v3771
        %v3799 = vpack.c.b16 %v3774, %v3773
        %v3800 = vpack.c.b16 %v3776, %v3775
        %v3801 = vpack.c.b16 %v3778, %v3777
        %v3802 = vpack.c.b16 %v3780, %v3779
        %v3803 = vpack.c.b16 %v3782, %v3781
        %v3804 = vpack.c.b16 %v3784, %v3783
        %v3805 = vpack.c.b16 %v3786, %v3785
        %v3806 = vpack.c.b16 %v3788, %v3787
        %v3807 = vpack.c.b16 %v3790, %v3789
        %v3808 = vpack.c.b16 %v3792, %v3791
        %v3811 = vunpack.c.l.b16 %v3727
        %v3812 = vunpack.c.l.b16 %v3728
        %v3813 = vpack.c.b16 %v3812, %v3811
        %v3816 = vsel %vm290, %v3793, 0
        %v3819 = vsel %vm290, %v3794, 0
        %v3822 = vsel %vm290, %v3795, 0
        %v3825 = vsel %vm290, %v3796, 0
        %v3828 = vsel %vm290, %v3797, 0
        %v3831 = vsel %vm290, %v3798, 0
        %v3834 = vsel %vm290, %v3799, 0
        %v3837 = vsel %vm290, %v3800, 0
        %v3840 = vsel %vm290, %v3801, 0
        %v3843 = vsel %vm290, %v3802, 0
        %v3846 = vsel %vm290, %v3803, 0
        %v3849 = vsel %vm290, %v3804, 0
        %v3852 = vsel %vm290, %v3805, 0
        %v3855 = vsel %vm290, %v3806, 0
        %v3858 = vsel %vm290, %v3807, 0
        %v3861 = vsel %vm290, %v3808, 0
        %3863 = vmatprep.subr.bf16.mxu0 0
        %3864 = vmatpush1.bf16.msra.mxu0 0
        %3865 = vmatprep.subr.bf16.mxu0 0
        %3866 = vmatpush1.bf16.msra.mxu0 0
        %3867 = vmatprep.subr.bf16.mxu0 0
        %3868 = vmatpush1.bf16.msra.mxu0 0
        %3869 = vmatprep.subr.bf16.mxu0 0
        %3870 = vmatpush1.bf16.msra.mxu0 0
        %3871 = vmatprep.subr.bf16.mxu0 0
        %3872 = vmatpush1.bf16.msra.mxu0 0
        %3873 = vmatprep.subr.bf16.mxu0 0
        %3874 = vmatpush1.bf16.msra.mxu0 0
        %3875 = vmatprep.subr.bf16.mxu0 0
        %3876 = vmatpush1.bf16.msra.mxu0 0
        %3877 = vmatprep.subr.bf16.mxu0 0
        %3878 = vmatpush1.bf16.msra.mxu0 %v3813
        %3879 = vmatprep.subr.bf16.mxu0 0
        %3880 = vmatpush2.bf16.msra.mxu0 0
        %3881 = vmatprep.subr.bf16.mxu0 0
        %3882 = vmatpush2.bf16.msra.mxu0 0
        %3883 = vmatprep.subr.bf16.mxu0 0
        %3884 = vmatpush2.bf16.msra.mxu0 0
        %3885 = vmatprep.subr.bf16.mxu0 0
        %3886 = vmatpush2.bf16.msra.mxu0 0
        %3887 = vmatprep.subr.bf16.mxu0 0
        %3888 = vmatpush2.bf16.msra.mxu0 0
        %3889 = vmatprep.subr.bf16.mxu0 0
        %3890 = vmatpush2.bf16.msra.mxu0 0
        %3891 = vmatprep.subr.bf16.mxu0 0
        %3892 = vmatpush2.bf16.msra.mxu0 0
        %3893 = vmatprep.subr.bf16.mxu0 0
        %3894 = vmatpush2.bf16.msra.mxu0 0
        %3895 = vmatprep.mubr.bf16.mxu0 0
        %3896 = vmatmul.mubr.bf16.gmra.mxu0 %v3816
        %v3897 = vpop.f32.mrf.mxu0
        %v3898 = vadd.f32 0.0, %v3897
        %v3899 = vpop.f32.mrf.mxu0
        %v3900 = vpop.f32.mrf.mxu0
        %v3901 = vadd.f32 0.0, %v3900
        %v3902 = vpop.f32.mrf.mxu0
        %3903 = vmatprep.mubr.bf16.mxu0 0
        %3904 = vmatmul.mubr.bf16.gmra.mxu0 %v3819
        %v3905 = vpop.f32.mrf.mxu0
        %v3906 = vadd.f32 0.0, %v3905
        %v3907 = vpop.f32.mrf.mxu0
        %v3908 = vpop.f32.mrf.mxu0
        %v3909 = vadd.f32 0.0, %v3908
        %v3910 = vpop.f32.mrf.mxu0
        %3911 = vmatprep.mubr.bf16.mxu0 0
        %3912 = vmatmul.mubr.bf16.gmra.mxu0 %v3822
        %v3913 = vpop.f32.mrf.mxu0
        %v3914 = vadd.f32 0.0, %v3913
        %v3915 = vpop.f32.mrf.mxu0
        %v3916 = vpop.f32.mrf.mxu0
        %v3917 = vadd.f32 0.0, %v3916
        %v3918 = vpop.f32.mrf.mxu0
        %3919 = vmatprep.mubr.bf16.mxu0 0
        %3920 = vmatmul.mubr.bf16.gmra.mxu0 %v3825
        %v3921 = vpop.f32.mrf.mxu0
        %v3922 = vadd.f32 0.0, %v3921
        %v3923 = vpop.f32.mrf.mxu0
        %v3924 = vpop.f32.mrf.mxu0
        %v3925 = vadd.f32 0.0, %v3924
        %v3926 = vpop.f32.mrf.mxu0
        %3927 = vmatprep.mubr.bf16.mxu0 0
        %3928 = vmatmul.mubr.bf16.gmra.mxu0 %v3828
        %v3929 = vpop.f32.mrf.mxu0
        %v3930 = vadd.f32 0.0, %v3929
        %v3931 = vpop.f32.mrf.mxu0
        %v3932 = vpop.f32.mrf.mxu0
        %v3933 = vadd.f32 0.0, %v3932
        %v3934 = vpop.f32.mrf.mxu0
        %3935 = vmatprep.mubr.bf16.mxu0 0
        %3936 = vmatmul.mubr.bf16.gmra.mxu0 %v3831
        %v3937 = vpop.f32.mrf.mxu0
        %v3938 = vadd.f32 0.0, %v3937
        %v3939 = vpop.f32.mrf.mxu0
        %v3940 = vpop.f32.mrf.mxu0
        %v3941 = vadd.f32 0.0, %v3940
        %v3942 = vpop.f32.mrf.mxu0
        %3943 = vmatprep.mubr.bf16.mxu0 0
        %3944 = vmatmul.mubr.bf16.gmra.mxu0 %v3834
        %v3945 = vpop.f32.mrf.mxu0
        %v3946 = vadd.f32 0.0, %v3945
        %v3947 = vpop.f32.mrf.mxu0
        %v3948 = vpop.f32.mrf.mxu0
        %v3949 = vadd.f32 0.0, %v3948
        %v3950 = vpop.f32.mrf.mxu0
        %3951 = vmatprep.mubr.bf16.mxu0 0
        %3952 = vmatmul.mubr.bf16.gmra.mxu0 %v3837
        %v3953 = vpop.f32.mrf.mxu0
        %v3954 = vadd.f32 0.0, %v3953
        %v3955 = vpop.f32.mrf.mxu0
        %v3956 = vpop.f32.mrf.mxu0
        %v3957 = vadd.f32 0.0, %v3956
        %v3958 = vpop.f32.mrf.mxu0
        %3959 = vmatprep.mubr.bf16.mxu0 0
        %3960 = vmatmul.mubr.bf16.gmra.mxu0 %v3840
        %v3961 = vpop.f32.mrf.mxu0
        %v3962 = vadd.f32 0.0, %v3961
        %v3963 = vpop.f32.mrf.mxu0
        %v3964 = vpop.f32.mrf.mxu0
        %v3965 = vadd.f32 0.0, %v3964
        %v3966 = vpop.f32.mrf.mxu0
        %3967 = vmatprep.mubr.bf16.mxu0 0
        %3968 = vmatmul.mubr.bf16.gmra.mxu0 %v3843
        %v3969 = vpop.f32.mrf.mxu0
        %v3970 = vadd.f32 0.0, %v3969
        %v3971 = vpop.f32.mrf.mxu0
        %v3972 = vpop.f32.mrf.mxu0
        %v3973 = vadd.f32 0.0, %v3972
        %v3974 = vpop.f32.mrf.mxu0
        %3975 = vmatprep.mubr.bf16.mxu0 0
        %3976 = vmatmul.mubr.bf16.gmra.mxu0 %v3846
        %v3977 = vpop.f32.mrf.mxu0
        %v3978 = vadd.f32 0.0, %v3977
        %v3979 = vpop.f32.mrf.mxu0
        %v3980 = vpop.f32.mrf.mxu0
        %v3981 = vadd.f32 0.0, %v3980
        %v3982 = vpop.f32.mrf.mxu0
        %3983 = vmatprep.mubr.bf16.mxu0 0
        %3984 = vmatmul.mubr.bf16.gmra.mxu0 %v3849
        %v3985 = vpop.f32.mrf.mxu0
        %v3986 = vadd.f32 0.0, %v3985
        %v3987 = vpop.f32.mrf.mxu0
        %v3988 = vpop.f32.mrf.mxu0
        %v3989 = vadd.f32 0.0, %v3988
        %v3990 = vpop.f32.mrf.mxu0
        %3991 = vmatprep.mubr.bf16.mxu0 0
        %3992 = vmatmul.mubr.bf16.gmra.mxu0 %v3852
        %v3993 = vpop.f32.mrf.mxu0
        %v3994 = vadd.f32 0.0, %v3993
        %v3995 = vpop.f32.mrf.mxu0
        %v3996 = vpop.f32.mrf.mxu0
        %v3997 = vadd.f32 0.0, %v3996
        %v3998 = vpop.f32.mrf.mxu0
        %3999 = vmatprep.mubr.bf16.mxu0 0
        %4000 = vmatmul.mubr.bf16.gmra.mxu0 %v3855
        %v4001 = vpop.f32.mrf.mxu0
        %v4002 = vadd.f32 0.0, %v4001
        %v4003 = vpop.f32.mrf.mxu0
        %v4004 = vpop.f32.mrf.mxu0
        %v4005 = vadd.f32 0.0, %v4004
        %v4006 = vpop.f32.mrf.mxu0
        %4007 = vmatprep.mubr.bf16.mxu0 0
        %4008 = vmatmul.mubr.bf16.gmra.mxu0 %v3858
        %v4009 = vpop.f32.mrf.mxu0
        %v4010 = vadd.f32 0.0, %v4009
        %v4011 = vpop.f32.mrf.mxu0
        %v4012 = vpop.f32.mrf.mxu0
        %v4013 = vadd.f32 0.0, %v4012
        %v4014 = vpop.f32.mrf.mxu0
        %4015 = vmatprep.mubr.bf16.mxu0 0
        %4016 = vmatmul.mubr.bf16.gmra.mxu0 %v3861
        %v4017 = vpop.f32.mrf.mxu0
        %v4018 = vadd.f32 0.0, %v4017
        %v4019 = vpop.f32.mrf.mxu0
        %v4020 = vpop.f32.mrf.mxu0
        %v4021 = vadd.f32 0.0, %v4020
        %v4022 = vpop.f32.mrf.mxu0
        %4023 = vdwg.mxu0
        %v4024 = vld [vmem:[%s163] sm:$0xff]
        %v4025 = vld [vmem:[%s163 + $0x8] sm:$0xff]
        %v4026 = vld [vmem:[%s163 + $0x10] sm:$0xff]
        %v4027 = vld [vmem:[%s163 + $0x18] sm:$0xff]
        %v4028 = vld [vmem:[%s163 + $0x20] sm:$0xff]
        %v4029 = vld [vmem:[%s163 + $0x28] sm:$0xff]
        %v4030 = vld [vmem:[%s163 + $0x30] sm:$0xff]
        %v4031 = vld [vmem:[%s163 + $0x38] sm:$0xff]
        %v4032 = vld [vmem:[%s163 + $0x40] sm:$0xff]
        %v4033 = vld [vmem:[%s163 + $0x48] sm:$0xff]
        %v4034 = vld [vmem:[%s163 + $0x50] sm:$0xff]
        %v4035 = vld [vmem:[%s163 + $0x58] sm:$0xff]
        %v4036 = vld [vmem:[%s163 + $0x60] sm:$0xff]
        %v4037 = vld [vmem:[%s163 + $0x68] sm:$0xff]
        %v4038 = vld [vmem:[%s163 + $0x70] sm:$0xff]
        %v4039 = vld [vmem:[%s163 + $0x78] sm:$0xff]
        %v4040 = vld [vmem:[%s163 + $0x80] sm:$0xff]
        %v4041 = vld [vmem:[%s163 + $0x88] sm:$0xff]
        %v4042 = vld [vmem:[%s163 + $0x90] sm:$0xff]
        %v4043 = vld [vmem:[%s163 + $0x98] sm:$0xff]
        %v4044 = vld [vmem:[%s163 + $0xa0] sm:$0xff]
        %v4045 = vld [vmem:[%s163 + $0xa8] sm:$0xff]
        %v4046 = vld [vmem:[%s163 + $0xb0] sm:$0xff]
        %v4047 = vld [vmem:[%s163 + $0xb8] sm:$0xff]
        %v4048 = vld [vmem:[%s163 + $0xc0] sm:$0xff]
        %v4049 = vld [vmem:[%s163 + $0xc8] sm:$0xff]
        %v4050 = vld [vmem:[%s163 + $0xd0] sm:$0xff]
        %v4051 = vld [vmem:[%s163 + $0xd8] sm:$0xff]
        %v4052 = vld [vmem:[%s163 + $0xe0] sm:$0xff]
        %v4053 = vld [vmem:[%s163 + $0xe8] sm:$0xff]
        %v4054 = vld [vmem:[%s163 + $0xf0] sm:$0xff]
        %v4055 = vld [vmem:[%s163 + $0xf8] sm:$0xff]
        %v4056 = vadd.f32 %v4024, %v3898
        %v4057 = vadd.f32 %v4025, %v3901
        %v4058 = vadd.f32 %v4026, %v3906
        %v4059 = vadd.f32 %v4027, %v3909
        %v4060 = vadd.f32 %v4028, %v3914
        %v4061 = vadd.f32 %v4029, %v3917
        %v4062 = vadd.f32 %v4030, %v3922
        %v4063 = vadd.f32 %v4031, %v3925
        %v4064 = vadd.f32 %v4032, %v3930
        %v4065 = vadd.f32 %v4033, %v3933
        %v4066 = vadd.f32 %v4034, %v3938
        %v4067 = vadd.f32 %v4035, %v3941
        %v4068 = vadd.f32 %v4036, %v3946
        %v4069 = vadd.f32 %v4037, %v3949
        %v4070 = vadd.f32 %v4038, %v3954
        %v4071 = vadd.f32 %v4039, %v3957
        %v4072 = vadd.f32 %v4040, %v3962
        %v4073 = vadd.f32 %v4041, %v3965
        %v4074 = vadd.f32 %v4042, %v3970
        %v4075 = vadd.f32 %v4043, %v3973
        %v4076 = vadd.f32 %v4044, %v3978
        %v4077 = vadd.f32 %v4045, %v3981
        %v4078 = vadd.f32 %v4046, %v3986
        %v4079 = vadd.f32 %v4047, %v3989
        %v4080 = vadd.f32 %v4048, %v3994
        %v4081 = vadd.f32 %v4049, %v3997
        %v4082 = vadd.f32 %v4050, %v4002
        %v4083 = vadd.f32 %v4051, %v4005
        %v4084 = vadd.f32 %v4052, %v4010
        %v4085 = vadd.f32 %v4053, %v4013
        %v4086 = vadd.f32 %v4054, %v4018
        %v4087 = vadd.f32 %v4055, %v4021
        %4088 = vst [vmem:[%s163] sm:$0xff] %v4056
        %4089 = vst [vmem:[%s163 + $0x8] sm:$0xff] %v4057
        %4090 = vst [vmem:[%s163 + $0x10] sm:$0xff] %v4058
        %4091 = vst [vmem:[%s163 + $0x18] sm:$0xff] %v4059
        %4092 = vst [vmem:[%s163 + $0x20] sm:$0xff] %v4060
        %4093 = vst [vmem:[%s163 + $0x28] sm:$0xff] %v4061
        %4094 = vst [vmem:[%s163 + $0x30] sm:$0xff] %v4062
        %4095 = vst [vmem:[%s163 + $0x38] sm:$0xff] %v4063
        %4096 = vst [vmem:[%s163 + $0x40] sm:$0xff] %v4064
        %4097 = vst [vmem:[%s163 + $0x48] sm:$0xff] %v4065
        %4098 = vst [vmem:[%s163 + $0x50] sm:$0xff] %v4066
        %4099 = vst [vmem:[%s163 + $0x58] sm:$0xff] %v4067
        %4100 = vst [vmem:[%s163 + $0x60] sm:$0xff] %v4068
        %4101 = vst [vmem:[%s163 + $0x68] sm:$0xff] %v4069
        %4102 = vst [vmem:[%s163 + $0x70] sm:$0xff] %v4070
        %4103 = vst [vmem:[%s163 + $0x78] sm:$0xff] %v4071
        %4104 = vst [vmem:[%s163 + $0x80] sm:$0xff] %v4072
        %4105 = vst [vmem:[%s163 + $0x88] sm:$0xff] %v4073
        %4106 = vst [vmem:[%s163 + $0x90] sm:$0xff] %v4074
        %4107 = vst [vmem:[%s163 + $0x98] sm:$0xff] %v4075
        %4108 = vst [vmem:[%s163 + $0xa0] sm:$0xff] %v4076
        %4109 = vst [vmem:[%s163 + $0xa8] sm:$0xff] %v4077
        %4110 = vst [vmem:[%s163 + $0xb0] sm:$0xff] %v4078
        %4111 = vst [vmem:[%s163 + $0xb8] sm:$0xff] %v4079
        %4112 = vst [vmem:[%s163 + $0xc0] sm:$0xff] %v4080
        %4113 = vst [vmem:[%s163 + $0xc8] sm:$0xff] %v4081
        %4114 = vst [vmem:[%s163 + $0xd0] sm:$0xff] %v4082
        %4115 = vst [vmem:[%s163 + $0xd8] sm:$0xff] %v4083
        %4116 = vst [vmem:[%s163 + $0xe0] sm:$0xff] %v4084
        %4117 = vst [vmem:[%s163 + $0xe8] sm:$0xff] %v4085
        %4118 = vst [vmem:[%s163 + $0xf0] sm:$0xff] %v4086
        %4119 = vst [vmem:[%s163 + $0xf8] sm:$0xff] %v4087
        %v4120 = vld [vmem:[%s3693] sm:$0xf]
        %v4121 = vld [vmem:[%s3693 + $0x4] sm:$0xf]
        %v4122 = vld [vmem:[%s3693 + $0x8] sm:$0x1]
        %v4123 = vld [vmem:[%s3693 + $0xc] sm:$0xf]
        %v4124 = vld [vmem:[%s3693 + $0x10] sm:$0xf]
        %v4125 = vld [vmem:[%s3693 + $0x14] sm:$0x1]
        %v4126 = vld [vmem:[%s3693 + $0x18] sm:$0xf]
        %v4127 = vld [vmem:[%s3693 + $0x1c] sm:$0xf]
        %v4128 = vld [vmem:[%s3693 + $0x20] sm:$0x1]
        %v4129 = vld [vmem:[%s3693 + $0x24] sm:$0xf]
        %v4130 = vld [vmem:[%s3693 + $0x28] sm:$0xf]
        %v4131 = vld [vmem:[%s3693 + $0x2c] sm:$0x1]
        %v4132 = vld [vmem:[%s3693 + $0x30] sm:$0xf]
        %v4133 = vld [vmem:[%s3693 + $0x34] sm:$0xf]
        %v4134 = vld [vmem:[%s3693 + $0x38] sm:$0x1]
        %v4135 = vld [vmem:[%s3693 + $0x3c] sm:$0xf]
        %v4136 = vld [vmem:[%s3693 + $0x40] sm:$0xf]
        %v4137 = vld [vmem:[%s3693 + $0x44] sm:$0x1]
        %v4138 = vld [vmem:[%s3693 + $0x48] sm:$0xf]
        %v4139 = vld [vmem:[%s3693 + $0x4c] sm:$0xf]
        %v4140 = vld [vmem:[%s3693 + $0x50] sm:$0x1]
        %v4141 = vld [vmem:[%s3693 + $0x54] sm:$0xf]
        %v4142 = vld [vmem:[%s3693 + $0x58] sm:$0xf]
        %v4143 = vld [vmem:[%s3693 + $0x5c] sm:$0x1]
        %v4144 = vld [vmem:[%s3693 + $0x60] sm:$0xf]
        %v4145 = vld [vmem:[%s3693 + $0x64] sm:$0xf]
        %v4146 = vld [vmem:[%s3693 + $0x68] sm:$0x1]
        %v4147 = vld [vmem:[%s3693 + $0x6c] sm:$0xf]
        %v4148 = vld [vmem:[%s3693 + $0x70] sm:$0xf]
        %v4149 = vld [vmem:[%s3693 + $0x74] sm:$0x1]
        %v4150 = vld [vmem:[%s3693 + $0x78] sm:$0xf]
        %v4151 = vld [vmem:[%s3693 + $0x7c] sm:$0xf]
        %v4152 = vld [vmem:[%s3693 + $0x80] sm:$0x1]
        %v4153 = vld [vmem:[%s3693 + $0x84] sm:$0xf]
        %v4154 = vld [vmem:[%s3693 + $0x88] sm:$0xf]
        %v4155 = vld [vmem:[%s3693 + $0x8c] sm:$0x1]
        %v4156 = vld [vmem:[%s3693 + $0x90] sm:$0xf]
        %v4157 = vld [vmem:[%s3693 + $0x94] sm:$0xf]
        %v4158 = vld [vmem:[%s3693 + $0x98] sm:$0x1]
        %v4159 = vld [vmem:[%s3693 + $0x9c] sm:$0xf]
        %v4160 = vld [vmem:[%s3693 + $0xa0] sm:$0xf]
        %v4161 = vld [vmem:[%s3693 + $0xa4] sm:$0x1]
        %v4162 = vld [vmem:[%s3693 + $0xa8] sm:$0xf]
        %v4163 = vld [vmem:[%s3693 + $0xac] sm:$0xf]
        %v4164 = vld [vmem:[%s3693 + $0xb0] sm:$0x1]
        %v4165 = vld [vmem:[%s3693 + $0xb4] sm:$0xf]
        %v4166 = vld [vmem:[%s3693 + $0xb8] sm:$0xf]
        %v4167 = vld [vmem:[%s3693 + $0xbc] sm:$0x1]
        %v4169 = vshrl.u32 %v4120, 16
        %v4171 = vrot.slane %v4169, 4
        %v4172 = vshll.u32 %v4120, 16
        %v4174 = vrot.slane %v4172, 5
        %v4175 = vor.u32 %v4171, %v4174
        %v4176 = vrot.slane %v4175, 4
        %v4178 = vshll.u32 %v4121, 16
        %v4180 = vrot.slane %v4178, 5
        %v4181 = vsel %vm582, %v4176, %v4180
        %v4182 = vshrl.u32 %v4121, 16
        %v4184 = vrot.slane %v4182, 4
        %v4185 = vor.u32 %v4184, %v4180
        %v4186 = vrot.slane %v4185, 4
        %v4188 = vshll.u32 %v4122, 16
        %v4190 = vrot.slane %v4188, 5
        %v4191 = vsel %vm582, %v4186, %v4190
        %v4193 = vshrl.u32 %v4123, 16
        %v4195 = vrot.slane %v4193, 4
        %v4196 = vshll.u32 %v4123, 16
        %v4198 = vrot.slane %v4196, 5
        %v4199 = vor.u32 %v4195, %v4198
        %v4200 = vrot.slane %v4199, 4
        %v4202 = vshll.u32 %v4124, 16
        %v4204 = vrot.slane %v4202, 5
        %v4205 = vsel %vm582, %v4200, %v4204
        %v4206 = vshrl.u32 %v4124, 16
        %v4208 = vrot.slane %v4206, 4
        %v4209 = vor.u32 %v4208, %v4204
        %v4210 = vrot.slane %v4209, 4
        %v4212 = vshll.u32 %v4125, 16
        %v4214 = vrot.slane %v4212, 5
        %v4215 = vsel %vm582, %v4210, %v4214
        %v4217 = vshrl.u32 %v4126, 16
        %v4219 = vrot.slane %v4217, 4
        %v4220 = vshll.u32 %v4126, 16
        %v4222 = vrot.slane %v4220, 5
        %v4223 = vor.u32 %v4219, %v4222
        %v4224 = vrot.slane %v4223, 4
        %v4226 = vshll.u32 %v4127, 16
        %v4228 = vrot.slane %v4226, 5
        %v4229 = vsel %vm582, %v4224, %v4228
        %v4230 = vshrl.u32 %v4127, 16
        %v4232 = vrot.slane %v4230, 4
        %v4233 = vor.u32 %v4232, %v4228
        %v4234 = vrot.slane %v4233, 4
        %v4236 = vshll.u32 %v4128, 16
        %v4238 = vrot.slane %v4236, 5
        %v4239 = vsel %vm582, %v4234, %v4238
        %v4241 = vshrl.u32 %v4129, 16
        %v4243 = vrot.slane %v4241, 4
        %v4244 = vshll.u32 %v4129, 16
        %v4246 = vrot.slane %v4244, 5
        %v4247 = vor.u32 %v4243, %v4246
        %v4248 = vrot.slane %v4247, 4
        %v4250 = vshll.u32 %v4130, 16
        %v4252 = vrot.slane %v4250, 5
        %v4253 = vsel %vm582, %v4248, %v4252
        %v4254 = vshrl.u32 %v4130, 16
        %v4256 = vrot.slane %v4254, 4
        %v4257 = vor.u32 %v4256, %v4252
        %v4258 = vrot.slane %v4257, 4
        %v4260 = vshll.u32 %v4131, 16
        %v4262 = vrot.slane %v4260, 5
        %v4263 = vsel %vm582, %v4258, %v4262
        %v4265 = vshrl.u32 %v4132, 16
        %v4267 = vrot.slane %v4265, 4
        %v4268 = vshll.u32 %v4132, 16
        %v4270 = vrot.slane %v4268, 5
        %v4271 = vor.u32 %v4267, %v4270
        %v4272 = vrot.slane %v4271, 4
        %v4274 = vshll.u32 %v4133, 16
        %v4276 = vrot.slane %v4274, 5
        %v4277 = vsel %vm582, %v4272, %v4276
        %v4278 = vshrl.u32 %v4133, 16
        %v4280 = vrot.slane %v4278, 4
        %v4281 = vor.u32 %v4280, %v4276
        %v4282 = vrot.slane %v4281, 4
        %v4284 = vshll.u32 %v4134, 16
        %v4286 = vrot.slane %v4284, 5
        %v4287 = vsel %vm582, %v4282, %v4286
        %v4289 = vshrl.u32 %v4135, 16
        %v4291 = vrot.slane %v4289, 4
        %v4292 = vshll.u32 %v4135, 16
        %v4294 = vrot.slane %v4292, 5
        %v4295 = vor.u32 %v4291, %v4294
        %v4296 = vrot.slane %v4295, 4
        %v4298 = vshll.u32 %v4136, 16
        %v4300 = vrot.slane %v4298, 5
        %v4301 = vsel %vm582, %v4296, %v4300
        %v4302 = vshrl.u32 %v4136, 16
        %v4304 = vrot.slane %v4302, 4
        %v4305 = vor.u32 %v4304, %v4300
        %v4306 = vrot.slane %v4305, 4
        %v4308 = vshll.u32 %v4137, 16
        %v4310 = vrot.slane %v4308, 5
        %v4311 = vsel %vm582, %v4306, %v4310
        %v4313 = vshrl.u32 %v4138, 16
        %v4315 = vrot.slane %v4313, 4
        %v4316 = vshll.u32 %v4138, 16
        %v4318 = vrot.slane %v4316, 5
        %v4319 = vor.u32 %v4315, %v4318
        %v4320 = vrot.slane %v4319, 4
        %v4322 = vshll.u32 %v4139, 16
        %v4324 = vrot.slane %v4322, 5
        %v4325 = vsel %vm582, %v4320, %v4324
        %v4326 = vshrl.u32 %v4139, 16
        %v4328 = vrot.slane %v4326, 4
        %v4329 = vor.u32 %v4328, %v4324
        %v4330 = vrot.slane %v4329, 4
        %v4332 = vshll.u32 %v4140, 16
        %v4334 = vrot.slane %v4332, 5
        %v4335 = vsel %vm582, %v4330, %v4334
        %v4337 = vshrl.u32 %v4141, 16
        %v4339 = vrot.slane %v4337, 4
        %v4340 = vshll.u32 %v4141, 16
        %v4342 = vrot.slane %v4340, 5
        %v4343 = vor.u32 %v4339, %v4342
        %v4344 = vrot.slane %v4343, 4
        %v4346 = vshll.u32 %v4142, 16
        %v4348 = vrot.slane %v4346, 5
        %v4349 = vsel %vm582, %v4344, %v4348
        %v4350 = vshrl.u32 %v4142, 16
        %v4352 = vrot.slane %v4350, 4
        %v4353 = vor.u32 %v4352, %v4348
        %v4354 = vrot.slane %v4353, 4
        %v4356 = vshll.u32 %v4143, 16
        %v4358 = vrot.slane %v4356, 5
        %v4359 = vsel %vm582, %v4354, %v4358
        %v4361 = vshrl.u32 %v4144, 16
        %v4363 = vrot.slane %v4361, 4
        %v4364 = vshll.u32 %v4144, 16
        %v4366 = vrot.slane %v4364, 5
        %v4367 = vor.u32 %v4363, %v4366
        %v4368 = vrot.slane %v4367, 4
        %v4370 = vshll.u32 %v4145, 16
        %v4372 = vrot.slane %v4370, 5
        %v4373 = vsel %vm582, %v4368, %v4372
        %v4374 = vshrl.u32 %v4145, 16
        %v4376 = vrot.slane %v4374, 4
        %v4377 = vor.u32 %v4376, %v4372
        %v4378 = vrot.slane %v4377, 4
        %v4380 = vshll.u32 %v4146, 16
        %v4382 = vrot.slane %v4380, 5
        %v4383 = vsel %vm582, %v4378, %v4382
        %v4385 = vshrl.u32 %v4147, 16
        %v4387 = vrot.slane %v4385, 4
        %v4388 = vshll.u32 %v4147, 16
        %v4390 = vrot.slane %v4388, 5
        %v4391 = vor.u32 %v4387, %v4390
        %v4392 = vrot.slane %v4391, 4
        %v4394 = vshll.u32 %v4148, 16
        %v4396 = vrot.slane %v4394, 5
        %v4397 = vsel %vm582, %v4392, %v4396
        %v4398 = vshrl.u32 %v4148, 16
        %v4400 = vrot.slane %v4398, 4
        %v4401 = vor.u32 %v4400, %v4396
        %v4402 = vrot.slane %v4401, 4
        %v4404 = vshll.u32 %v4149, 16
        %v4406 = vrot.slane %v4404, 5
        %v4407 = vsel %vm582, %v4402, %v4406
        %v4409 = vshrl.u32 %v4150, 16
        %v4411 = vrot.slane %v4409, 4
        %v4412 = vshll.u32 %v4150, 16
        %v4414 = vrot.slane %v4412, 5
        %v4415 = vor.u32 %v4411, %v4414
        %v4416 = vrot.slane %v4415, 4
        %v4418 = vshll.u32 %v4151, 16
        %v4420 = vrot.slane %v4418, 5
        %v4421 = vsel %vm582, %v4416, %v4420
        %v4422 = vshrl.u32 %v4151, 16
        %v4424 = vrot.slane %v4422, 4
        %v4425 = vor.u32 %v4424, %v4420
        %v4426 = vrot.slane %v4425, 4
        %v4428 = vshll.u32 %v4152, 16
        %v4430 = vrot.slane %v4428, 5
        %v4431 = vsel %vm582, %v4426, %v4430
        %v4433 = vshrl.u32 %v4153, 16
        %v4435 = vrot.slane %v4433, 4
        %v4436 = vshll.u32 %v4153, 16
        %v4438 = vrot.slane %v4436, 5
        %v4439 = vor.u32 %v4435, %v4438
        %v4440 = vrot.slane %v4439, 4
        %v4442 = vshll.u32 %v4154, 16
        %v4444 = vrot.slane %v4442, 5
        %v4445 = vsel %vm582, %v4440, %v4444
        %v4446 = vshrl.u32 %v4154, 16
        %v4448 = vrot.slane %v4446, 4
        %v4449 = vor.u32 %v4448, %v4444
        %v4450 = vrot.slane %v4449, 4
        %v4452 = vshll.u32 %v4155, 16
        %v4454 = vrot.slane %v4452, 5
        %v4455 = vsel %vm582, %v4450, %v4454
        %v4457 = vshrl.u32 %v4156, 16
        %v4459 = vrot.slane %v4457, 4
        %v4460 = vshll.u32 %v4156, 16
        %v4462 = vrot.slane %v4460, 5
        %v4463 = vor.u32 %v4459, %v4462
        %v4464 = vrot.slane %v4463, 4
        %v4466 = vshll.u32 %v4157, 16
        %v4468 = vrot.slane %v4466, 5
        %v4469 = vsel %vm582, %v4464, %v4468
        %v4470 = vshrl.u32 %v4157, 16
        %v4472 = vrot.slane %v4470, 4
        %v4473 = vor.u32 %v4472, %v4468
        %v4474 = vrot.slane %v4473, 4
        %v4476 = vshll.u32 %v4158, 16
        %v4478 = vrot.slane %v4476, 5
        %v4479 = vsel %vm582, %v4474, %v4478
        %v4481 = vshrl.u32 %v4159, 16
        %v4483 = vrot.slane %v4481, 4
        %v4484 = vshll.u32 %v4159, 16
        %v4486 = vrot.slane %v4484, 5
        %v4487 = vor.u32 %v4483, %v4486
        %v4488 = vrot.slane %v4487, 4
        %v4490 = vshll.u32 %v4160, 16
        %v4492 = vrot.slane %v4490, 5
        %v4493 = vsel %vm582, %v4488, %v4492
        %v4494 = vshrl.u32 %v4160, 16
        %v4496 = vrot.slane %v4494, 4
        %v4497 = vor.u32 %v4496, %v4492
        %v4498 = vrot.slane %v4497, 4
        %v4500 = vshll.u32 %v4161, 16
        %v4502 = vrot.slane %v4500, 5
        %v4503 = vsel %vm582, %v4498, %v4502
        %v4505 = vshrl.u32 %v4162, 16
        %v4507 = vrot.slane %v4505, 4
        %v4508 = vshll.u32 %v4162, 16
        %v4510 = vrot.slane %v4508, 5
        %v4511 = vor.u32 %v4507, %v4510
        %v4512 = vrot.slane %v4511, 4
        %v4514 = vshll.u32 %v4163, 16
        %v4516 = vrot.slane %v4514, 5
        %v4517 = vsel %vm582, %v4512, %v4516
        %v4518 = vshrl.u32 %v4163, 16
        %v4520 = vrot.slane %v4518, 4
        %v4521 = vor.u32 %v4520, %v4516
        %v4522 = vrot.slane %v4521, 4
        %v4524 = vshll.u32 %v4164, 16
        %v4526 = vrot.slane %v4524, 5
        %v4527 = vsel %vm582, %v4522, %v4526
        %v4529 = vshrl.u32 %v4165, 16
        %v4531 = vrot.slane %v4529, 4
        %v4532 = vshll.u32 %v4165, 16
        %v4534 = vrot.slane %v4532, 5
        %v4535 = vor.u32 %v4531, %v4534
        %v4536 = vrot.slane %v4535, 4
        %v4538 = vshll.u32 %v4166, 16
        %v4540 = vrot.slane %v4538, 5
        %v4541 = vsel %vm582, %v4536, %v4540
        %v4542 = vshrl.u32 %v4166, 16
        %v4544 = vrot.slane %v4542, 4
        %v4545 = vor.u32 %v4544, %v4540
        %v4546 = vrot.slane %v4545, 4
        %v4548 = vshll.u32 %v4167, 16
        %v4550 = vrot.slane %v4548, 5
        %v4551 = vsel %vm582, %v4546, %v4550
        %s4552 = scalar_lea.vmem %s1, 56
        %v4553 = vld [vmem:[%s4552] sm:$0xf]
        %v4554 = vld [vmem:[%s4552 + $0x4] sm:$0xf]
        %v4555 = vunpack.c.l.b16 %v4181
        %v4556 = vunpack.c.l.b16 %v4191
        %v4557 = vunpack.c.l.b16 %v4205
        %v4558 = vunpack.c.l.b16 %v4215
        %v4559 = vunpack.c.l.b16 %v4229
        %v4560 = vunpack.c.l.b16 %v4239
        %v4561 = vunpack.c.l.b16 %v4253
        %v4562 = vunpack.c.l.b16 %v4263
        %v4563 = vunpack.c.l.b16 %v4277
        %v4564 = vunpack.c.l.b16 %v4287
        %v4565 = vunpack.c.l.b16 %v4301
        %v4566 = vunpack.c.l.b16 %v4311
        %v4567 = vunpack.c.l.b16 %v4325
        %v4568 = vunpack.c.l.b16 %v4335
        %v4569 = vunpack.c.l.b16 %v4349
        %v4570 = vunpack.c.l.b16 %v4359
        %v4571 = vunpack.c.l.b16 %v4373
        %v4572 = vunpack.c.l.b16 %v4383
        %v4573 = vunpack.c.l.b16 %v4397
        %v4574 = vunpack.c.l.b16 %v4407
        %v4575 = vunpack.c.l.b16 %v4421
        %v4576 = vunpack.c.l.b16 %v4431
        %v4577 = vunpack.c.l.b16 %v4445
        %v4578 = vunpack.c.l.b16 %v4455
        %v4579 = vunpack.c.l.b16 %v4469
        %v4580 = vunpack.c.l.b16 %v4479
        %v4581 = vunpack.c.l.b16 %v4493
        %v4582 = vunpack.c.l.b16 %v4503
        %v4583 = vunpack.c.l.b16 %v4517
        %v4584 = vunpack.c.l.b16 %v4527
        %v4585 = vunpack.c.l.b16 %v4541
        %v4586 = vunpack.c.l.b16 %v4551
        %v4587 = vpack.c.b16 %v4556, %v4555
        %v4588 = vpack.c.b16 %v4558, %v4557
        %v4589 = vpack.c.b16 %v4560, %v4559
        %v4590 = vpack.c.b16 %v4562, %v4561
        %v4591 = vpack.c.b16 %v4564, %v4563
        %v4592 = vpack.c.b16 %v4566, %v4565
        %v4593 = vpack.c.b16 %v4568, %v4567
        %v4594 = vpack.c.b16 %v4570, %v4569
        %v4595 = vpack.c.b16 %v4572, %v4571
        %v4596 = vpack.c.b16 %v4574, %v4573
        %v4597 = vpack.c.b16 %v4576, %v4575
        %v4598 = vpack.c.b16 %v4578, %v4577
        %v4599 = vpack.c.b16 %v4580, %v4579
        %v4600 = vpack.c.b16 %v4582, %v4581
        %v4601 = vpack.c.b16 %v4584, %v4583
        %v4602 = vpack.c.b16 %v4586, %v4585
        %v4605 = vunpack.c.l.b16 %v4553
        %v4606 = vunpack.c.l.b16 %v4554
        %v4607 = vpack.c.b16 %v4606, %v4605
        %v4610 = vsel %vm290, %v4587, 0
        %v4613 = vsel %vm290, %v4588, 0
        %v4616 = vsel %vm290, %v4589, 0
        %v4619 = vsel %vm290, %v4590, 0
        %v4622 = vsel %vm290, %v4591, 0
        %v4625 = vsel %vm290, %v4592, 0
        %v4628 = vsel %vm290, %v4593, 0
        %v4631 = vsel %vm290, %v4594, 0
        %v4634 = vsel %vm290, %v4595, 0
        %v4637 = vsel %vm290, %v4596, 0
        %v4640 = vsel %vm290, %v4597, 0
        %v4643 = vsel %vm290, %v4598, 0
        %v4646 = vsel %vm290, %v4599, 0
        %v4649 = vsel %vm290, %v4600, 0
        %v4652 = vsel %vm290, %v4601, 0
        %v4655 = vsel %vm290, %v4602, 0
        %4657 = vmatprep.subr.bf16.mxu0 0
        %4658 = vmatpush1.bf16.msra.mxu0 0
        %4659 = vmatprep.subr.bf16.mxu0 0
        %4660 = vmatpush1.bf16.msra.mxu0 0
        %4661 = vmatprep.subr.bf16.mxu0 0
        %4662 = vmatpush1.bf16.msra.mxu0 0
        %4663 = vmatprep.subr.bf16.mxu0 0
        %4664 = vmatpush1.bf16.msra.mxu0 0
        %4665 = vmatprep.subr.bf16.mxu0 0
        %4666 = vmatpush1.bf16.msra.mxu0 0
        %4667 = vmatprep.subr.bf16.mxu0 0
        %4668 = vmatpush1.bf16.msra.mxu0 0
        %4669 = vmatprep.subr.bf16.mxu0 0
        %4670 = vmatpush1.bf16.msra.mxu0 0
        %4671 = vmatprep.subr.bf16.mxu0 0
        %4672 = vmatpush1.bf16.msra.mxu0 %v4607
        %4673 = vmatprep.subr.bf16.mxu0 0
        %4674 = vmatpush2.bf16.msra.mxu0 0
        %4675 = vmatprep.subr.bf16.mxu0 0
        %4676 = vmatpush2.bf16.msra.mxu0 0
        %4677 = vmatprep.subr.bf16.mxu0 0
        %4678 = vmatpush2.bf16.msra.mxu0 0
        %4679 = vmatprep.subr.bf16.mxu0 0
        %4680 = vmatpush2.bf16.msra.mxu0 0
        %4681 = vmatprep.subr.bf16.mxu0 0
        %4682 = vmatpush2.bf16.msra.mxu0 0
        %4683 = vmatprep.subr.bf16.mxu0 0
        %4684 = vmatpush2.bf16.msra.mxu0 0
        %4685 = vmatprep.subr.bf16.mxu0 0
        %4686 = vmatpush2.bf16.msra.mxu0 0
        %4687 = vmatprep.subr.bf16.mxu0 0
        %4688 = vmatpush2.bf16.msra.mxu0 0
        %4689 = vmatprep.mubr.bf16.mxu0 0
        %4690 = vmatmul.mubr.bf16.gmra.mxu0 %v4610
        %v4691 = vpop.f32.mrf.mxu0
        %v4692 = vadd.f32 0.0, %v4691
        %v4693 = vpop.f32.mrf.mxu0
        %v4694 = vpop.f32.mrf.mxu0
        %v4695 = vadd.f32 0.0, %v4694
        %v4696 = vpop.f32.mrf.mxu0
        %4697 = vmatprep.mubr.bf16.mxu0 0
        %4698 = vmatmul.mubr.bf16.gmra.mxu0 %v4613
        %v4699 = vpop.f32.mrf.mxu0
        %v4700 = vadd.f32 0.0, %v4699
        %v4701 = vpop.f32.mrf.mxu0
        %v4702 = vpop.f32.mrf.mxu0
        %v4703 = vadd.f32 0.0, %v4702
        %v4704 = vpop.f32.mrf.mxu0
        %4705 = vmatprep.mubr.bf16.mxu0 0
        %4706 = vmatmul.mubr.bf16.gmra.mxu0 %v4616
        %v4707 = vpop.f32.mrf.mxu0
        %v4708 = vadd.f32 0.0, %v4707
        %v4709 = vpop.f32.mrf.mxu0
        %v4710 = vpop.f32.mrf.mxu0
        %v4711 = vadd.f32 0.0, %v4710
        %v4712 = vpop.f32.mrf.mxu0
        %4713 = vmatprep.mubr.bf16.mxu0 0
        %4714 = vmatmul.mubr.bf16.gmra.mxu0 %v4619
        %v4715 = vpop.f32.mrf.mxu0
        %v4716 = vadd.f32 0.0, %v4715
        %v4717 = vpop.f32.mrf.mxu0
        %v4718 = vpop.f32.mrf.mxu0
        %v4719 = vadd.f32 0.0, %v4718
        %v4720 = vpop.f32.mrf.mxu0
        %4721 = vmatprep.mubr.bf16.mxu0 0
        %4722 = vmatmul.mubr.bf16.gmra.mxu0 %v4622
        %v4723 = vpop.f32.mrf.mxu0
        %v4724 = vadd.f32 0.0, %v4723
        %v4725 = vpop.f32.mrf.mxu0
        %v4726 = vpop.f32.mrf.mxu0
        %v4727 = vadd.f32 0.0, %v4726
        %v4728 = vpop.f32.mrf.mxu0
        %4729 = vmatprep.mubr.bf16.mxu0 0
        %4730 = vmatmul.mubr.bf16.gmra.mxu0 %v4625
        %v4731 = vpop.f32.mrf.mxu0
        %v4732 = vadd.f32 0.0, %v4731
        %v4733 = vpop.f32.mrf.mxu0
        %v4734 = vpop.f32.mrf.mxu0
        %v4735 = vadd.f32 0.0, %v4734
        %v4736 = vpop.f32.mrf.mxu0
        %4737 = vmatprep.mubr.bf16.mxu0 0
        %4738 = vmatmul.mubr.bf16.gmra.mxu0 %v4628
        %v4739 = vpop.f32.mrf.mxu0
        %v4740 = vadd.f32 0.0, %v4739
        %v4741 = vpop.f32.mrf.mxu0
        %v4742 = vpop.f32.mrf.mxu0
        %v4743 = vadd.f32 0.0, %v4742
        %v4744 = vpop.f32.mrf.mxu0
        %4745 = vmatprep.mubr.bf16.mxu0 0
        %4746 = vmatmul.mubr.bf16.gmra.mxu0 %v4631
        %v4747 = vpop.f32.mrf.mxu0
        %v4748 = vadd.f32 0.0, %v4747
        %v4749 = vpop.f32.mrf.mxu0
        %v4750 = vpop.f32.mrf.mxu0
        %v4751 = vadd.f32 0.0, %v4750
        %v4752 = vpop.f32.mrf.mxu0
        %4753 = vmatprep.mubr.bf16.mxu0 0
        %4754 = vmatmul.mubr.bf16.gmra.mxu0 %v4634
        %v4755 = vpop.f32.mrf.mxu0
        %v4756 = vadd.f32 0.0, %v4755
        %v4757 = vpop.f32.mrf.mxu0
        %v4758 = vpop.f32.mrf.mxu0
        %v4759 = vadd.f32 0.0, %v4758
        %v4760 = vpop.f32.mrf.mxu0
        %4761 = vmatprep.mubr.bf16.mxu0 0
        %4762 = vmatmul.mubr.bf16.gmra.mxu0 %v4637
        %v4763 = vpop.f32.mrf.mxu0
        %v4764 = vadd.f32 0.0, %v4763
        %v4765 = vpop.f32.mrf.mxu0
        %v4766 = vpop.f32.mrf.mxu0
        %v4767 = vadd.f32 0.0, %v4766
        %v4768 = vpop.f32.mrf.mxu0
        %4769 = vmatprep.mubr.bf16.mxu0 0
        %4770 = vmatmul.mubr.bf16.gmra.mxu0 %v4640
        %v4771 = vpop.f32.mrf.mxu0
        %v4772 = vadd.f32 0.0, %v4771
        %v4773 = vpop.f32.mrf.mxu0
        %v4774 = vpop.f32.mrf.mxu0
        %v4775 = vadd.f32 0.0, %v4774
        %v4776 = vpop.f32.mrf.mxu0
        %4777 = vmatprep.mubr.bf16.mxu0 0
        %4778 = vmatmul.mubr.bf16.gmra.mxu0 %v4643
        %v4779 = vpop.f32.mrf.mxu0
        %v4780 = vadd.f32 0.0, %v4779
        %v4781 = vpop.f32.mrf.mxu0
        %v4782 = vpop.f32.mrf.mxu0
        %v4783 = vadd.f32 0.0, %v4782
        %v4784 = vpop.f32.mrf.mxu0
        %4785 = vmatprep.mubr.bf16.mxu0 0
        %4786 = vmatmul.mubr.bf16.gmra.mxu0 %v4646
        %v4787 = vpop.f32.mrf.mxu0
        %v4788 = vadd.f32 0.0, %v4787
        %v4789 = vpop.f32.mrf.mxu0
        %v4790 = vpop.f32.mrf.mxu0
        %v4791 = vadd.f32 0.0, %v4790
        %v4792 = vpop.f32.mrf.mxu0
        %4793 = vmatprep.mubr.bf16.mxu0 0
        %4794 = vmatmul.mubr.bf16.gmra.mxu0 %v4649
        %v4795 = vpop.f32.mrf.mxu0
        %v4796 = vadd.f32 0.0, %v4795
        %v4797 = vpop.f32.mrf.mxu0
        %v4798 = vpop.f32.mrf.mxu0
        %v4799 = vadd.f32 0.0, %v4798
        %v4800 = vpop.f32.mrf.mxu0
        %4801 = vmatprep.mubr.bf16.mxu0 0
        %4802 = vmatmul.mubr.bf16.gmra.mxu0 %v4652
        %v4803 = vpop.f32.mrf.mxu0
        %v4804 = vadd.f32 0.0, %v4803
        %v4805 = vpop.f32.mrf.mxu0
        %v4806 = vpop.f32.mrf.mxu0
        %v4807 = vadd.f32 0.0, %v4806
        %v4808 = vpop.f32.mrf.mxu0
        %4809 = vmatprep.mubr.bf16.mxu0 0
        %4810 = vmatmul.mubr.bf16.gmra.mxu0 %v4655
        %v4811 = vpop.f32.mrf.mxu0
        %v4812 = vadd.f32 0.0, %v4811
        %v4813 = vpop.f32.mrf.mxu0
        %v4814 = vpop.f32.mrf.mxu0
        %v4815 = vadd.f32 0.0, %v4814
        %v4816 = vpop.f32.mrf.mxu0
        %4817 = vdwg.mxu0
        %v4818 = vld [vmem:[%s163] sm:$0xff]
        %v4819 = vld [vmem:[%s163 + $0x8] sm:$0xff]
        %v4820 = vld [vmem:[%s163 + $0x10] sm:$0xff]
        %v4821 = vld [vmem:[%s163 + $0x18] sm:$0xff]
        %v4822 = vld [vmem:[%s163 + $0x20] sm:$0xff]
        %v4823 = vld [vmem:[%s163 + $0x28] sm:$0xff]
        %v4824 = vld [vmem:[%s163 + $0x30] sm:$0xff]
        %v4825 = vld [vmem:[%s163 + $0x38] sm:$0xff]
        %v4826 = vld [vmem:[%s163 + $0x40] sm:$0xff]
        %v4827 = vld [vmem:[%s163 + $0x48] sm:$0xff]
        %v4828 = vld [vmem:[%s163 + $0x50] sm:$0xff]
        %v4829 = vld [vmem:[%s163 + $0x58] sm:$0xff]
        %v4830 = vld [vmem:[%s163 + $0x60] sm:$0xff]
        %v4831 = vld [vmem:[%s163 + $0x68] sm:$0xff]
        %v4832 = vld [vmem:[%s163 + $0x70] sm:$0xff]
        %v4833 = vld [vmem:[%s163 + $0x78] sm:$0xff]
        %v4834 = vld [vmem:[%s163 + $0x80] sm:$0xff]
        %v4835 = vld [vmem:[%s163 + $0x88] sm:$0xff]
        %v4836 = vld [vmem:[%s163 + $0x90] sm:$0xff]
        %v4837 = vld [vmem:[%s163 + $0x98] sm:$0xff]
        %v4838 = vld [vmem:[%s163 + $0xa0] sm:$0xff]
        %v4839 = vld [vmem:[%s163 + $0xa8] sm:$0xff]
        %v4840 = vld [vmem:[%s163 + $0xb0] sm:$0xff]
        %v4841 = vld [vmem:[%s163 + $0xb8] sm:$0xff]
        %v4842 = vld [vmem:[%s163 + $0xc0] sm:$0xff]
        %v4843 = vld [vmem:[%s163 + $0xc8] sm:$0xff]
        %v4844 = vld [vmem:[%s163 + $0xd0] sm:$0xff]
        %v4845 = vld [vmem:[%s163 + $0xd8] sm:$0xff]
        %v4846 = vld [vmem:[%s163 + $0xe0] sm:$0xff]
        %v4847 = vld [vmem:[%s163 + $0xe8] sm:$0xff]
        %v4848 = vld [vmem:[%s163 + $0xf0] sm:$0xff]
        %v4849 = vld [vmem:[%s163 + $0xf8] sm:$0xff]
        %v4850 = vadd.f32 %v4818, %v4692
        %v4851 = vadd.f32 %v4819, %v4695
        %v4852 = vadd.f32 %v4820, %v4700
        %v4853 = vadd.f32 %v4821, %v4703
        %v4854 = vadd.f32 %v4822, %v4708
        %v4855 = vadd.f32 %v4823, %v4711
        %v4856 = vadd.f32 %v4824, %v4716
        %v4857 = vadd.f32 %v4825, %v4719
        %v4858 = vadd.f32 %v4826, %v4724
        %v4859 = vadd.f32 %v4827, %v4727
        %v4860 = vadd.f32 %v4828, %v4732
        %v4861 = vadd.f32 %v4829, %v4735
        %v4862 = vadd.f32 %v4830, %v4740
        %v4863 = vadd.f32 %v4831, %v4743
        %v4864 = vadd.f32 %v4832, %v4748
        %v4865 = vadd.f32 %v4833, %v4751
        %v4866 = vadd.f32 %v4834, %v4756
        %v4867 = vadd.f32 %v4835, %v4759
        %v4868 = vadd.f32 %v4836, %v4764
        %v4869 = vadd.f32 %v4837, %v4767
        %v4870 = vadd.f32 %v4838, %v4772
        %v4871 = vadd.f32 %v4839, %v4775
        %v4872 = vadd.f32 %v4840, %v4780
        %v4873 = vadd.f32 %v4841, %v4783
        %v4874 = vadd.f32 %v4842, %v4788
        %v4875 = vadd.f32 %v4843, %v4791
        %v4876 = vadd.f32 %v4844, %v4796
        %v4877 = vadd.f32 %v4845, %v4799
        %v4878 = vadd.f32 %v4846, %v4804
        %v4879 = vadd.f32 %v4847, %v4807
        %v4880 = vadd.f32 %v4848, %v4812
        %v4881 = vadd.f32 %v4849, %v4815
        %4882 = vst [vmem:[%s163] sm:$0xff] %v4850
        %4883 = vst [vmem:[%s163 + $0x8] sm:$0xff] %v4851
        %4884 = vst [vmem:[%s163 + $0x10] sm:$0xff] %v4852
        %4885 = vst [vmem:[%s163 + $0x18] sm:$0xff] %v4853
        %4886 = vst [vmem:[%s163 + $0x20] sm:$0xff] %v4854
        %4887 = vst [vmem:[%s163 + $0x28] sm:$0xff] %v4855
        %4888 = vst [vmem:[%s163 + $0x30] sm:$0xff] %v4856
        %4889 = vst [vmem:[%s163 + $0x38] sm:$0xff] %v4857
        %4890 = vst [vmem:[%s163 + $0x40] sm:$0xff] %v4858
        %4891 = vst [vmem:[%s163 + $0x48] sm:$0xff] %v4859
        %4892 = vst [vmem:[%s163 + $0x50] sm:$0xff] %v4860
        %4893 = vst [vmem:[%s163 + $0x58] sm:$0xff] %v4861
        %4894 = vst [vmem:[%s163 + $0x60] sm:$0xff] %v4862
        %4895 = vst [vmem:[%s163 + $0x68] sm:$0xff] %v4863
        %4896 = vst [vmem:[%s163 + $0x70] sm:$0xff] %v4864
        %4897 = vst [vmem:[%s163 + $0x78] sm:$0xff] %v4865
        %4898 = vst [vmem:[%s163 + $0x80] sm:$0xff] %v4866
        %4899 = vst [vmem:[%s163 + $0x88] sm:$0xff] %v4867
        %4900 = vst [vmem:[%s163 + $0x90] sm:$0xff] %v4868
        %4901 = vst [vmem:[%s163 + $0x98] sm:$0xff] %v4869
        %4902 = vst [vmem:[%s163 + $0xa0] sm:$0xff] %v4870
        %4903 = vst [vmem:[%s163 + $0xa8] sm:$0xff] %v4871
        %4904 = vst [vmem:[%s163 + $0xb0] sm:$0xff] %v4872
        %4905 = vst [vmem:[%s163 + $0xb8] sm:$0xff] %v4873
        %4906 = vst [vmem:[%s163 + $0xc0] sm:$0xff] %v4874
        %4907 = vst [vmem:[%s163 + $0xc8] sm:$0xff] %v4875
        %4908 = vst [vmem:[%s163 + $0xd0] sm:$0xff] %v4876
        %4909 = vst [vmem:[%s163 + $0xd8] sm:$0xff] %v4877
        %4910 = vst [vmem:[%s163 + $0xe0] sm:$0xff] %v4878
        %4911 = vst [vmem:[%s163 + $0xe8] sm:$0xff] %v4879
        %4912 = vst [vmem:[%s163 + $0xf0] sm:$0xff] %v4880
        %4913 = vst [vmem:[%s163 + $0xf8] sm:$0xff] %v4881
        %v4914 = vld [vmem:[%s3693] sm:$0xe]
        %v4915 = vld [vmem:[%s3693 + $0x4] sm:$0xf]
        %v4916 = vld [vmem:[%s3693 + $0x8] sm:$0x1]
        %v4917 = vld [vmem:[%s3693 + $0xc] sm:$0xe]
        %v4918 = vld [vmem:[%s3693 + $0x10] sm:$0xf]
        %v4919 = vld [vmem:[%s3693 + $0x14] sm:$0x1]
        %v4920 = vld [vmem:[%s3693 + $0x18] sm:$0xe]
        %v4921 = vld [vmem:[%s3693 + $0x1c] sm:$0xf]
        %v4922 = vld [vmem:[%s3693 + $0x20] sm:$0x1]
        %v4923 = vld [vmem:[%s3693 + $0x24] sm:$0xe]
        %v4924 = vld [vmem:[%s3693 + $0x28] sm:$0xf]
        %v4925 = vld [vmem:[%s3693 + $0x2c] sm:$0x1]
        %v4926 = vld [vmem:[%s3693 + $0x30] sm:$0xe]
        %v4927 = vld [vmem:[%s3693 + $0x34] sm:$0xf]
        %v4928 = vld [vmem:[%s3693 + $0x38] sm:$0x1]
        %v4929 = vld [vmem:[%s3693 + $0x3c] sm:$0xe]
        %v4930 = vld [vmem:[%s3693 + $0x40] sm:$0xf]
        %v4931 = vld [vmem:[%s3693 + $0x44] sm:$0x1]
        %v4932 = vld [vmem:[%s3693 + $0x48] sm:$0xe]
        %v4933 = vld [vmem:[%s3693 + $0x4c] sm:$0xf]
        %v4934 = vld [vmem:[%s3693 + $0x50] sm:$0x1]
        %v4935 = vld [vmem:[%s3693 + $0x54] sm:$0xe]
        %v4936 = vld [vmem:[%s3693 + $0x58] sm:$0xf]
        %v4937 = vld [vmem:[%s3693 + $0x5c] sm:$0x1]
        %v4938 = vld [vmem:[%s3693 + $0x60] sm:$0xe]
        %v4939 = vld [vmem:[%s3693 + $0x64] sm:$0xf]
        %v4940 = vld [vmem:[%s3693 + $0x68] sm:$0x1]
        %v4941 = vld [vmem:[%s3693 + $0x6c] sm:$0xe]
        %v4942 = vld [vmem:[%s3693 + $0x70] sm:$0xf]
        %v4943 = vld [vmem:[%s3693 + $0x74] sm:$0x1]
        %v4944 = vld [vmem:[%s3693 + $0x78] sm:$0xe]
        %v4945 = vld [vmem:[%s3693 + $0x7c] sm:$0xf]
        %v4946 = vld [vmem:[%s3693 + $0x80] sm:$0x1]
        %v4947 = vld [vmem:[%s3693 + $0x84] sm:$0xe]
        %v4948 = vld [vmem:[%s3693 + $0x88] sm:$0xf]
        %v4949 = vld [vmem:[%s3693 + $0x8c] sm:$0x1]
        %v4950 = vld [vmem:[%s3693 + $0x90] sm:$0xe]
        %v4951 = vld [vmem:[%s3693 + $0x94] sm:$0xf]
        %v4952 = vld [vmem:[%s3693 + $0x98] sm:$0x1]
        %v4953 = vld [vmem:[%s3693 + $0x9c] sm:$0xe]
        %v4954 = vld [vmem:[%s3693 + $0xa0] sm:$0xf]
        %v4955 = vld [vmem:[%s3693 + $0xa4] sm:$0x1]
        %v4956 = vld [vmem:[%s3693 + $0xa8] sm:$0xe]
        %v4957 = vld [vmem:[%s3693 + $0xac] sm:$0xf]
        %v4958 = vld [vmem:[%s3693 + $0xb0] sm:$0x1]
        %v4959 = vld [vmem:[%s3693 + $0xb4] sm:$0xe]
        %v4960 = vld [vmem:[%s3693 + $0xb8] sm:$0xf]
        %v4961 = vld [vmem:[%s3693 + $0xbc] sm:$0x1]
        %v5010 = vrot.slane %v4914, 5
        %v5011 = vrot.slane %v5010, 4
        %v5012 = vrot.slane %v4915, 5
        %v5013 = vsel %vm1427, %v5011, %v5012
        %v5014 = vrot.slane %v5012, 4
        %v5015 = vrot.slane %v4916, 5
        %v5016 = vsel %vm1427, %v5014, %v5015
        %v5017 = vrot.slane %v4917, 5
        %v5018 = vrot.slane %v5017, 4
        %v5019 = vrot.slane %v4918, 5
        %v5020 = vsel %vm1427, %v5018, %v5019
        %v5021 = vrot.slane %v5019, 4
        %v5022 = vrot.slane %v4919, 5
        %v5023 = vsel %vm1427, %v5021, %v5022
        %v5024 = vrot.slane %v4920, 5
        %v5025 = vrot.slane %v5024, 4
        %v5026 = vrot.slane %v4921, 5
        %v5027 = vsel %vm1427, %v5025, %v5026
        %v5028 = vrot.slane %v5026, 4
        %v5029 = vrot.slane %v4922, 5
        %v5030 = vsel %vm1427, %v5028, %v5029
        %v5031 = vrot.slane %v4923, 5
        %v5032 = vrot.slane %v5031, 4
        %v5033 = vrot.slane %v4924, 5
        %v5034 = vsel %vm1427, %v5032, %v5033
        %v5035 = vrot.slane %v5033, 4
        %v5036 = vrot.slane %v4925, 5
        %v5037 = vsel %vm1427, %v5035, %v5036
        %v5038 = vrot.slane %v4926, 5
        %v5039 = vrot.slane %v5038, 4
        %v5040 = vrot.slane %v4927, 5
        %v5041 = vsel %vm1427, %v5039, %v5040
        %v5042 = vrot.slane %v5040, 4
        %v5043 = vrot.slane %v4928, 5
        %v5044 = vsel %vm1427, %v5042, %v5043
        %v5045 = vrot.slane %v4929, 5
        %v5046 = vrot.slane %v5045, 4
        %v5047 = vrot.slane %v4930, 5
        %v5048 = vsel %vm1427, %v5046, %v5047
        %v5049 = vrot.slane %v5047, 4
        %v5050 = vrot.slane %v4931, 5
        %v5051 = vsel %vm1427, %v5049, %v5050
        %v5052 = vrot.slane %v4932, 5
        %v5053 = vrot.slane %v5052, 4
        %v5054 = vrot.slane %v4933, 5
        %v5055 = vsel %vm1427, %v5053, %v5054
        %v5056 = vrot.slane %v5054, 4
        %v5057 = vrot.slane %v4934, 5
        %v5058 = vsel %vm1427, %v5056, %v5057
        %v5059 = vrot.slane %v4935, 5
        %v5060 = vrot.slane %v5059, 4
        %v5061 = vrot.slane %v4936, 5
        %v5062 = vsel %vm1427, %v5060, %v5061
        %v5063 = vrot.slane %v5061, 4
        %v5064 = vrot.slane %v4937, 5
        %v5065 = vsel %vm1427, %v5063, %v5064
        %v5066 = vrot.slane %v4938, 5
        %v5067 = vrot.slane %v5066, 4
        %v5068 = vrot.slane %v4939, 5
        %v5069 = vsel %vm1427, %v5067, %v5068
        %v5070 = vrot.slane %v5068, 4
        %v5071 = vrot.slane %v4940, 5
        %v5072 = vsel %vm1427, %v5070, %v5071
        %v5073 = vrot.slane %v4941, 5
        %v5074 = vrot.slane %v5073, 4
        %v5075 = vrot.slane %v4942, 5
        %v5076 = vsel %vm1427, %v5074, %v5075
        %v5077 = vrot.slane %v5075, 4
        %v5078 = vrot.slane %v4943, 5
        %v5079 = vsel %vm1427, %v5077, %v5078
        %v5080 = vrot.slane %v4944, 5
        %v5081 = vrot.slane %v5080, 4
        %v5082 = vrot.slane %v4945, 5
        %v5083 = vsel %vm1427, %v5081, %v5082
        %v5084 = vrot.slane %v5082, 4
        %v5085 = vrot.slane %v4946, 5
        %v5086 = vsel %vm1427, %v5084, %v5085
        %v5087 = vrot.slane %v4947, 5
        %v5088 = vrot.slane %v5087, 4
        %v5089 = vrot.slane %v4948, 5
        %v5090 = vsel %vm1427, %v5088, %v5089
        %v5091 = vrot.slane %v5089, 4
        %v5092 = vrot.slane %v4949, 5
        %v5093 = vsel %vm1427, %v5091, %v5092
        %v5094 = vrot.slane %v4950, 5
        %v5095 = vrot.slane %v5094, 4
        %v5096 = vrot.slane %v4951, 5
        %v5097 = vsel %vm1427, %v5095, %v5096
        %v5098 = vrot.slane %v5096, 4
        %v5099 = vrot.slane %v4952, 5
        %v5100 = vsel %vm1427, %v5098, %v5099
        %v5101 = vrot.slane %v4953, 5
        %v5102 = vrot.slane %v5101, 4
        %v5103 = vrot.slane %v4954, 5
        %v5104 = vsel %vm1427, %v5102, %v5103
        %v5105 = vrot.slane %v5103, 4
        %v5106 = vrot.slane %v4955, 5
        %v5107 = vsel %vm1427, %v5105, %v5106
        %v5108 = vrot.slane %v4956, 5
        %v5109 = vrot.slane %v5108, 4
        %v5110 = vrot.slane %v4957, 5
        %v5111 = vsel %vm1427, %v5109, %v5110
        %v5112 = vrot.slane %v5110, 4
        %v5113 = vrot.slane %v4958, 5
        %v5114 = vsel %vm1427, %v5112, %v5113
        %v5115 = vrot.slane %v4959, 5
        %v5116 = vrot.slane %v5115, 4
        %v5117 = vrot.slane %v4960, 5
        %v5118 = vsel %vm1427, %v5116, %v5117
        %v5119 = vrot.slane %v5117, 4
        %v5120 = vrot.slane %v4961, 5
        %v5121 = vsel %vm1427, %v5119, %v5120
        %s5122 = scalar_lea.vmem %s1, 64
        %v5123 = vld [vmem:[%s5122] sm:$0xf]
        %v5124 = vld [vmem:[%s5122 + $0x4] sm:$0xf]
        %v5125 = vunpack.c.l.b16 %v5013
        %v5126 = vunpack.c.l.b16 %v5016
        %v5127 = vunpack.c.l.b16 %v5020
        %v5128 = vunpack.c.l.b16 %v5023
        %v5129 = vunpack.c.l.b16 %v5027
        %v5130 = vunpack.c.l.b16 %v5030
        %v5131 = vunpack.c.l.b16 %v5034
        %v5132 = vunpack.c.l.b16 %v5037
        %v5133 = vunpack.c.l.b16 %v5041
        %v5134 = vunpack.c.l.b16 %v5044
        %v5135 = vunpack.c.l.b16 %v5048
        %v5136 = vunpack.c.l.b16 %v5051
        %v5137 = vunpack.c.l.b16 %v5055
        %v5138 = vunpack.c.l.b16 %v5058
        %v5139 = vunpack.c.l.b16 %v5062
        %v5140 = vunpack.c.l.b16 %v5065
        %v5141 = vunpack.c.l.b16 %v5069
        %v5142 = vunpack.c.l.b16 %v5072
        %v5143 = vunpack.c.l.b16 %v5076
        %v5144 = vunpack.c.l.b16 %v5079
        %v5145 = vunpack.c.l.b16 %v5083
        %v5146 = vunpack.c.l.b16 %v5086
        %v5147 = vunpack.c.l.b16 %v5090
        %v5148 = vunpack.c.l.b16 %v5093
        %v5149 = vunpack.c.l.b16 %v5097
        %v5150 = vunpack.c.l.b16 %v5100
        %v5151 = vunpack.c.l.b16 %v5104
        %v5152 = vunpack.c.l.b16 %v5107
        %v5153 = vunpack.c.l.b16 %v5111
        %v5154 = vunpack.c.l.b16 %v5114
        %v5155 = vunpack.c.l.b16 %v5118
        %v5156 = vunpack.c.l.b16 %v5121
        %v5157 = vpack.c.b16 %v5126, %v5125
        %v5158 = vpack.c.b16 %v5128, %v5127
        %v5159 = vpack.c.b16 %v5130, %v5129
        %v5160 = vpack.c.b16 %v5132, %v5131
        %v5161 = vpack.c.b16 %v5134, %v5133
        %v5162 = vpack.c.b16 %v5136, %v5135
        %v5163 = vpack.c.b16 %v5138, %v5137
        %v5164 = vpack.c.b16 %v5140, %v5139
        %v5165 = vpack.c.b16 %v5142, %v5141
        %v5166 = vpack.c.b16 %v5144, %v5143
        %v5167 = vpack.c.b16 %v5146, %v5145
        %v5168 = vpack.c.b16 %v5148, %v5147
        %v5169 = vpack.c.b16 %v5150, %v5149
        %v5170 = vpack.c.b16 %v5152, %v5151
        %v5171 = vpack.c.b16 %v5154, %v5153
        %v5172 = vpack.c.b16 %v5156, %v5155
        %v5175 = vunpack.c.l.b16 %v5123
        %v5176 = vunpack.c.l.b16 %v5124
        %v5177 = vpack.c.b16 %v5176, %v5175
        %v5180 = vsel %vm290, %v5157, 0
        %v5183 = vsel %vm290, %v5158, 0
        %v5186 = vsel %vm290, %v5159, 0
        %v5189 = vsel %vm290, %v5160, 0
        %v5192 = vsel %vm290, %v5161, 0
        %v5195 = vsel %vm290, %v5162, 0
        %v5198 = vsel %vm290, %v5163, 0
        %v5201 = vsel %vm290, %v5164, 0
        %v5204 = vsel %vm290, %v5165, 0
        %v5207 = vsel %vm290, %v5166, 0
        %v5210 = vsel %vm290, %v5167, 0
        %v5213 = vsel %vm290, %v5168, 0
        %v5216 = vsel %vm290, %v5169, 0
        %v5219 = vsel %vm290, %v5170, 0
        %v5222 = vsel %vm290, %v5171, 0
        %v5225 = vsel %vm290, %v5172, 0
        %5227 = vmatprep.subr.bf16.mxu0 0
        %5228 = vmatpush1.bf16.msra.mxu0 0
        %5229 = vmatprep.subr.bf16.mxu0 0
        %5230 = vmatpush1.bf16.msra.mxu0 0
        %5231 = vmatprep.subr.bf16.mxu0 0
        %5232 = vmatpush1.bf16.msra.mxu0 0
        %5233 = vmatprep.subr.bf16.mxu0 0
        %5234 = vmatpush1.bf16.msra.mxu0 0
        %5235 = vmatprep.subr.bf16.mxu0 0
        %5236 = vmatpush1.bf16.msra.mxu0 0
        %5237 = vmatprep.subr.bf16.mxu0 0
        %5238 = vmatpush1.bf16.msra.mxu0 0
        %5239 = vmatprep.subr.bf16.mxu0 0
        %5240 = vmatpush1.bf16.msra.mxu0 0
        %5241 = vmatprep.subr.bf16.mxu0 0
        %5242 = vmatpush1.bf16.msra.mxu0 %v5177
        %5243 = vmatprep.subr.bf16.mxu0 0
        %5244 = vmatpush2.bf16.msra.mxu0 0
        %5245 = vmatprep.subr.bf16.mxu0 0
        %5246 = vmatpush2.bf16.msra.mxu0 0
        %5247 = vmatprep.subr.bf16.mxu0 0
        %5248 = vmatpush2.bf16.msra.mxu0 0
        %5249 = vmatprep.subr.bf16.mxu0 0
        %5250 = vmatpush2.bf16.msra.mxu0 0
        %5251 = vmatprep.subr.bf16.mxu0 0
        %5252 = vmatpush2.bf16.msra.mxu0 0
        %5253 = vmatprep.subr.bf16.mxu0 0
        %5254 = vmatpush2.bf16.msra.mxu0 0
        %5255 = vmatprep.subr.bf16.mxu0 0
        %5256 = vmatpush2.bf16.msra.mxu0 0
        %5257 = vmatprep.subr.bf16.mxu0 0
        %5258 = vmatpush2.bf16.msra.mxu0 0
        %5259 = vmatprep.mubr.bf16.mxu0 0
        %5260 = vmatmul.mubr.bf16.gmra.mxu0 %v5180
        %v5261 = vpop.f32.mrf.mxu0
        %v5262 = vadd.f32 0.0, %v5261
        %v5263 = vpop.f32.mrf.mxu0
        %v5264 = vpop.f32.mrf.mxu0
        %v5265 = vadd.f32 0.0, %v5264
        %v5266 = vpop.f32.mrf.mxu0
        %5267 = vmatprep.mubr.bf16.mxu0 0
        %5268 = vmatmul.mubr.bf16.gmra.mxu0 %v5183
        %v5269 = vpop.f32.mrf.mxu0
        %v5270 = vadd.f32 0.0, %v5269
        %v5271 = vpop.f32.mrf.mxu0
        %v5272 = vpop.f32.mrf.mxu0
        %v5273 = vadd.f32 0.0, %v5272
        %v5274 = vpop.f32.mrf.mxu0
        %5275 = vmatprep.mubr.bf16.mxu0 0
        %5276 = vmatmul.mubr.bf16.gmra.mxu0 %v5186
        %v5277 = vpop.f32.mrf.mxu0
        %v5278 = vadd.f32 0.0, %v5277
        %v5279 = vpop.f32.mrf.mxu0
        %v5280 = vpop.f32.mrf.mxu0
        %v5281 = vadd.f32 0.0, %v5280
        %v5282 = vpop.f32.mrf.mxu0
        %5283 = vmatprep.mubr.bf16.mxu0 0
        %5284 = vmatmul.mubr.bf16.gmra.mxu0 %v5189
        %v5285 = vpop.f32.mrf.mxu0
        %v5286 = vadd.f32 0.0, %v5285
        %v5287 = vpop.f32.mrf.mxu0
        %v5288 = vpop.f32.mrf.mxu0
        %v5289 = vadd.f32 0.0, %v5288
        %v5290 = vpop.f32.mrf.mxu0
        %5291 = vmatprep.mubr.bf16.mxu0 0
        %5292 = vmatmul.mubr.bf16.gmra.mxu0 %v5192
        %v5293 = vpop.f32.mrf.mxu0
        %v5294 = vadd.f32 0.0, %v5293
        %v5295 = vpop.f32.mrf.mxu0
        %v5296 = vpop.f32.mrf.mxu0
        %v5297 = vadd.f32 0.0, %v5296
        %v5298 = vpop.f32.mrf.mxu0
        %5299 = vmatprep.mubr.bf16.mxu0 0
        %5300 = vmatmul.mubr.bf16.gmra.mxu0 %v5195
        %v5301 = vpop.f32.mrf.mxu0
        %v5302 = vadd.f32 0.0, %v5301
        %v5303 = vpop.f32.mrf.mxu0
        %v5304 = vpop.f32.mrf.mxu0
        %v5305 = vadd.f32 0.0, %v5304
        %v5306 = vpop.f32.mrf.mxu0
        %5307 = vmatprep.mubr.bf16.mxu0 0
        %5308 = vmatmul.mubr.bf16.gmra.mxu0 %v5198
        %v5309 = vpop.f32.mrf.mxu0
        %v5310 = vadd.f32 0.0, %v5309
        %v5311 = vpop.f32.mrf.mxu0
        %v5312 = vpop.f32.mrf.mxu0
        %v5313 = vadd.f32 0.0, %v5312
        %v5314 = vpop.f32.mrf.mxu0
        %5315 = vmatprep.mubr.bf16.mxu0 0
        %5316 = vmatmul.mubr.bf16.gmra.mxu0 %v5201
        %v5317 = vpop.f32.mrf.mxu0
        %v5318 = vadd.f32 0.0, %v5317
        %v5319 = vpop.f32.mrf.mxu0
        %v5320 = vpop.f32.mrf.mxu0
        %v5321 = vadd.f32 0.0, %v5320
        %v5322 = vpop.f32.mrf.mxu0
        %5323 = vmatprep.mubr.bf16.mxu0 0
        %5324 = vmatmul.mubr.bf16.gmra.mxu0 %v5204
        %v5325 = vpop.f32.mrf.mxu0
        %v5326 = vadd.f32 0.0, %v5325
        %v5327 = vpop.f32.mrf.mxu0
        %v5328 = vpop.f32.mrf.mxu0
        %v5329 = vadd.f32 0.0, %v5328
        %v5330 = vpop.f32.mrf.mxu0
        %5331 = vmatprep.mubr.bf16.mxu0 0
        %5332 = vmatmul.mubr.bf16.gmra.mxu0 %v5207
        %v5333 = vpop.f32.mrf.mxu0
        %v5334 = vadd.f32 0.0, %v5333
        %v5335 = vpop.f32.mrf.mxu0
        %v5336 = vpop.f32.mrf.mxu0
        %v5337 = vadd.f32 0.0, %v5336
        %v5338 = vpop.f32.mrf.mxu0
        %5339 = vmatprep.mubr.bf16.mxu0 0
        %5340 = vmatmul.mubr.bf16.gmra.mxu0 %v5210
        %v5341 = vpop.f32.mrf.mxu0
        %v5342 = vadd.f32 0.0, %v5341
        %v5343 = vpop.f32.mrf.mxu0
        %v5344 = vpop.f32.mrf.mxu0
        %v5345 = vadd.f32 0.0, %v5344
        %v5346 = vpop.f32.mrf.mxu0
        %5347 = vmatprep.mubr.bf16.mxu0 0
        %5348 = vmatmul.mubr.bf16.gmra.mxu0 %v5213
        %v5349 = vpop.f32.mrf.mxu0
        %v5350 = vadd.f32 0.0, %v5349
        %v5351 = vpop.f32.mrf.mxu0
        %v5352 = vpop.f32.mrf.mxu0
        %v5353 = vadd.f32 0.0, %v5352
        %v5354 = vpop.f32.mrf.mxu0
        %5355 = vmatprep.mubr.bf16.mxu0 0
        %5356 = vmatmul.mubr.bf16.gmra.mxu0 %v5216
        %v5357 = vpop.f32.mrf.mxu0
        %v5358 = vadd.f32 0.0, %v5357
        %v5359 = vpop.f32.mrf.mxu0
        %v5360 = vpop.f32.mrf.mxu0
        %v5361 = vadd.f32 0.0, %v5360
        %v5362 = vpop.f32.mrf.mxu0
        %5363 = vmatprep.mubr.bf16.mxu0 0
        %5364 = vmatmul.mubr.bf16.gmra.mxu0 %v5219
        %v5365 = vpop.f32.mrf.mxu0
        %v5366 = vadd.f32 0.0, %v5365
        %v5367 = vpop.f32.mrf.mxu0
        %v5368 = vpop.f32.mrf.mxu0
        %v5369 = vadd.f32 0.0, %v5368
        %v5370 = vpop.f32.mrf.mxu0
        %5371 = vmatprep.mubr.bf16.mxu0 0
        %5372 = vmatmul.mubr.bf16.gmra.mxu0 %v5222
        %v5373 = vpop.f32.mrf.mxu0
        %v5374 = vadd.f32 0.0, %v5373
        %v5375 = vpop.f32.mrf.mxu0
        %v5376 = vpop.f32.mrf.mxu0
        %v5377 = vadd.f32 0.0, %v5376
        %v5378 = vpop.f32.mrf.mxu0
        %5379 = vmatprep.mubr.bf16.mxu0 0
        %5380 = vmatmul.mubr.bf16.gmra.mxu0 %v5225
        %v5381 = vpop.f32.mrf.mxu0
        %v5382 = vadd.f32 0.0, %v5381
        %v5383 = vpop.f32.mrf.mxu0
        %v5384 = vpop.f32.mrf.mxu0
        %v5385 = vadd.f32 0.0, %v5384
        %v5386 = vpop.f32.mrf.mxu0
        %5387 = vdwg.mxu0
        %v5388 = vld [vmem:[%s163] sm:$0xff]
        %v5389 = vld [vmem:[%s163 + $0x8] sm:$0xff]
        %v5390 = vld [vmem:[%s163 + $0x10] sm:$0xff]
        %v5391 = vld [vmem:[%s163 + $0x18] sm:$0xff]
        %v5392 = vld [vmem:[%s163 + $0x20] sm:$0xff]
        %v5393 = vld [vmem:[%s163 + $0x28] sm:$0xff]
        %v5394 = vld [vmem:[%s163 + $0x30] sm:$0xff]
        %v5395 = vld [vmem:[%s163 + $0x38] sm:$0xff]
        %v5396 = vld [vmem:[%s163 + $0x40] sm:$0xff]
        %v5397 = vld [vmem:[%s163 + $0x48] sm:$0xff]
        %v5398 = vld [vmem:[%s163 + $0x50] sm:$0xff]
        %v5399 = vld [vmem:[%s163 + $0x58] sm:$0xff]
        %v5400 = vld [vmem:[%s163 + $0x60] sm:$0xff]
        %v5401 = vld [vmem:[%s163 + $0x68] sm:$0xff]
        %v5402 = vld [vmem:[%s163 + $0x70] sm:$0xff]
        %v5403 = vld [vmem:[%s163 + $0x78] sm:$0xff]
        %v5404 = vld [vmem:[%s163 + $0x80] sm:$0xff]
        %v5405 = vld [vmem:[%s163 + $0x88] sm:$0xff]
        %v5406 = vld [vmem:[%s163 + $0x90] sm:$0xff]
        %v5407 = vld [vmem:[%s163 + $0x98] sm:$0xff]
        %v5408 = vld [vmem:[%s163 + $0xa0] sm:$0xff]
        %v5409 = vld [vmem:[%s163 + $0xa8] sm:$0xff]
        %v5410 = vld [vmem:[%s163 + $0xb0] sm:$0xff]
        %v5411 = vld [vmem:[%s163 + $0xb8] sm:$0xff]
        %v5412 = vld [vmem:[%s163 + $0xc0] sm:$0xff]
        %v5413 = vld [vmem:[%s163 + $0xc8] sm:$0xff]
        %v5414 = vld [vmem:[%s163 + $0xd0] sm:$0xff]
        %v5415 = vld [vmem:[%s163 + $0xd8] sm:$0xff]
        %v5416 = vld [vmem:[%s163 + $0xe0] sm:$0xff]
        %v5417 = vld [vmem:[%s163 + $0xe8] sm:$0xff]
        %v5418 = vld [vmem:[%s163 + $0xf0] sm:$0xff]
        %v5419 = vld [vmem:[%s163 + $0xf8] sm:$0xff]
        %v5420 = vadd.f32 %v5388, %v5262
        %v5421 = vadd.f32 %v5389, %v5265
        %v5422 = vadd.f32 %v5390, %v5270
        %v5423 = vadd.f32 %v5391, %v5273
        %v5424 = vadd.f32 %v5392, %v5278
        %v5425 = vadd.f32 %v5393, %v5281
        %v5426 = vadd.f32 %v5394, %v5286
        %v5427 = vadd.f32 %v5395, %v5289
        %v5428 = vadd.f32 %v5396, %v5294
        %v5429 = vadd.f32 %v5397, %v5297
        %v5430 = vadd.f32 %v5398, %v5302
        %v5431 = vadd.f32 %v5399, %v5305
        %v5432 = vadd.f32 %v5400, %v5310
        %v5433 = vadd.f32 %v5401, %v5313
        %v5434 = vadd.f32 %v5402, %v5318
        %v5435 = vadd.f32 %v5403, %v5321
        %v5436 = vadd.f32 %v5404, %v5326
        %v5437 = vadd.f32 %v5405, %v5329
        %v5438 = vadd.f32 %v5406, %v5334
        %v5439 = vadd.f32 %v5407, %v5337
        %v5440 = vadd.f32 %v5408, %v5342
        %v5441 = vadd.f32 %v5409, %v5345
        %v5442 = vadd.f32 %v5410, %v5350
        %v5443 = vadd.f32 %v5411, %v5353
        %v5444 = vadd.f32 %v5412, %v5358
        %v5445 = vadd.f32 %v5413, %v5361
        %v5446 = vadd.f32 %v5414, %v5366
        %v5447 = vadd.f32 %v5415, %v5369
        %v5448 = vadd.f32 %v5416, %v5374
        %v5449 = vadd.f32 %v5417, %v5377
        %v5450 = vadd.f32 %v5418, %v5382
        %v5451 = vadd.f32 %v5419, %v5385
        %5452 = vst [vmem:[%s163] sm:$0xff] %v5420
        %5453 = vst [vmem:[%s163 + $0x8] sm:$0xff] %v5421
        %5454 = vst [vmem:[%s163 + $0x10] sm:$0xff] %v5422
        %5455 = vst [vmem:[%s163 + $0x18] sm:$0xff] %v5423
        %5456 = vst [vmem:[%s163 + $0x20] sm:$0xff] %v5424
        %5457 = vst [vmem:[%s163 + $0x28] sm:$0xff] %v5425
        %5458 = vst [vmem:[%s163 + $0x30] sm:$0xff] %v5426
        %5459 = vst [vmem:[%s163 + $0x38] sm:$0xff] %v5427
        %5460 = vst [vmem:[%s163 + $0x40] sm:$0xff] %v5428
        %5461 = vst [vmem:[%s163 + $0x48] sm:$0xff] %v5429
        %5462 = vst [vmem:[%s163 + $0x50] sm:$0xff] %v5430
        %5463 = vst [vmem:[%s163 + $0x58] sm:$0xff] %v5431
        %5464 = vst [vmem:[%s163 + $0x60] sm:$0xff] %v5432
        %5465 = vst [vmem:[%s163 + $0x68] sm:$0xff] %v5433
        %5466 = vst [vmem:[%s163 + $0x70] sm:$0xff] %v5434
        %5467 = vst [vmem:[%s163 + $0x78] sm:$0xff] %v5435
        %5468 = vst [vmem:[%s163 + $0x80] sm:$0xff] %v5436
        %5469 = vst [vmem:[%s163 + $0x88] sm:$0xff] %v5437
        %5470 = vst [vmem:[%s163 + $0x90] sm:$0xff] %v5438
        %5471 = vst [vmem:[%s163 + $0x98] sm:$0xff] %v5439
        %5472 = vst [vmem:[%s163 + $0xa0] sm:$0xff] %v5440
        %5473 = vst [vmem:[%s163 + $0xa8] sm:$0xff] %v5441
        %5474 = vst [vmem:[%s163 + $0xb0] sm:$0xff] %v5442
        %5475 = vst [vmem:[%s163 + $0xb8] sm:$0xff] %v5443
        %5476 = vst [vmem:[%s163 + $0xc0] sm:$0xff] %v5444
        %5477 = vst [vmem:[%s163 + $0xc8] sm:$0xff] %v5445
        %5478 = vst [vmem:[%s163 + $0xd0] sm:$0xff] %v5446
        %5479 = vst [vmem:[%s163 + $0xd8] sm:$0xff] %v5447
        %5480 = vst [vmem:[%s163 + $0xe0] sm:$0xff] %v5448
        %5481 = vst [vmem:[%s163 + $0xe8] sm:$0xff] %v5449
        %5482 = vst [vmem:[%s163 + $0xf0] sm:$0xff] %v5450
        %5483 = vst [vmem:[%s163 + $0xf8] sm:$0xff] %v5451
        %v5484 = vld [vmem:[%s163] sm:$0xff]
        %v5485 = vld [vmem:[%s163 + $0x8] sm:$0xff]
        %v5486 = vld [vmem:[%s163 + $0x10] sm:$0xff]
        %v5487 = vld [vmem:[%s163 + $0x18] sm:$0xff]
        %v5488 = vld [vmem:[%s163 + $0x20] sm:$0xff]
        %v5489 = vld [vmem:[%s163 + $0x28] sm:$0xff]
        %v5490 = vld [vmem:[%s163 + $0x30] sm:$0xff]
        %v5491 = vld [vmem:[%s163 + $0x38] sm:$0xff]
        %v5492 = vld [vmem:[%s163 + $0x40] sm:$0xff]
        %v5493 = vld [vmem:[%s163 + $0x48] sm:$0xff]
        %v5494 = vld [vmem:[%s163 + $0x50] sm:$0xff]
        %v5495 = vld [vmem:[%s163 + $0x58] sm:$0xff]
        %v5496 = vld [vmem:[%s163 + $0x60] sm:$0xff]
        %v5497 = vld [vmem:[%s163 + $0x68] sm:$0xff]
        %v5498 = vld [vmem:[%s163 + $0x70] sm:$0xff]
        %v5499 = vld [vmem:[%s163 + $0x78] sm:$0xff]
        %v5500 = vld [vmem:[%s163 + $0x80] sm:$0xff]
        %v5501 = vld [vmem:[%s163 + $0x88] sm:$0xff]
        %v5502 = vld [vmem:[%s163 + $0x90] sm:$0xff]
        %v5503 = vld [vmem:[%s163 + $0x98] sm:$0xff]
        %v5504 = vld [vmem:[%s163 + $0xa0] sm:$0xff]
        %v5505 = vld [vmem:[%s163 + $0xa8] sm:$0xff]
        %v5506 = vld [vmem:[%s163 + $0xb0] sm:$0xff]
        %v5507 = vld [vmem:[%s163 + $0xb8] sm:$0xff]
        %v5508 = vld [vmem:[%s163 + $0xc0] sm:$0xff]
        %v5509 = vld [vmem:[%s163 + $0xc8] sm:$0xff]
        %v5510 = vld [vmem:[%s163 + $0xd0] sm:$0xff]
        %v5511 = vld [vmem:[%s163 + $0xd8] sm:$0xff]
        %v5512 = vld [vmem:[%s163 + $0xe0] sm:$0xff]
        %v5513 = vld [vmem:[%s163 + $0xe8] sm:$0xff]
        %v5514 = vld [vmem:[%s163 + $0xf0] sm:$0xff]
        %v5515 = vld [vmem:[%s163 + $0xf8] sm:$0xff]
        %v5516 = vld [vmem:[%s2] sm:$0x1]
        %v5518 = vlaneseq
        %v5519 = vshrl.u32 %v5518, 7
        %v5520 = vsub.s32 0, %v5519
        %v5521 = vrot.slane %v5516, %v5520
        %v5523 = vadd.f32 %v5484, %v5521
        %v5524 = vadd.f32 %v5485, %v5521
        %v5525 = vadd.f32 %v5486, %v5521
        %v5526 = vadd.f32 %v5487, %v5521
        %v5527 = vadd.f32 %v5488, %v5521
        %v5528 = vadd.f32 %v5489, %v5521
        %v5529 = vadd.f32 %v5490, %v5521
        %v5530 = vadd.f32 %v5491, %v5521
        %v5531 = vadd.f32 %v5492, %v5521
        %v5532 = vadd.f32 %v5493, %v5521
        %v5533 = vadd.f32 %v5494, %v5521
        %v5534 = vadd.f32 %v5495, %v5521
        %v5535 = vadd.f32 %v5496, %v5521
        %v5536 = vadd.f32 %v5497, %v5521
        %v5537 = vadd.f32 %v5498, %v5521
        %v5538 = vadd.f32 %v5499, %v5521
        %v5539 = vadd.f32 %v5500, %v5521
        %v5540 = vadd.f32 %v5501, %v5521
        %v5541 = vadd.f32 %v5502, %v5521
        %v5542 = vadd.f32 %v5503, %v5521
        %v5543 = vadd.f32 %v5504, %v5521
        %v5544 = vadd.f32 %v5505, %v5521
        %v5545 = vadd.f32 %v5506, %v5521
        %v5546 = vadd.f32 %v5507, %v5521
        %v5547 = vadd.f32 %v5508, %v5521
        %v5548 = vadd.f32 %v5509, %v5521
        %v5549 = vadd.f32 %v5510, %v5521
        %v5550 = vadd.f32 %v5511, %v5521
        %v5551 = vadd.f32 %v5512, %v5521
        %v5552 = vadd.f32 %v5513, %v5521
        %v5553 = vadd.f32 %v5514, %v5521
        %v5554 = vadd.f32 %v5515, %v5521
        %v5555 = vmax.f32 %v5523, 0.0
        %v5556 = vmax.f32 %v5524, 0.0
        %v5557 = vmax.f32 %v5525, 0.0
        %v5558 = vmax.f32 %v5526, 0.0
        %v5559 = vmax.f32 %v5527, 0.0
        %v5560 = vmax.f32 %v5528, 0.0
        %v5561 = vmax.f32 %v5529, 0.0
        %v5562 = vmax.f32 %v5530, 0.0
        %v5563 = vmax.f32 %v5531, 0.0
        %v5564 = vmax.f32 %v5532, 0.0
        %v5565 = vmax.f32 %v5533, 0.0
        %v5566 = vmax.f32 %v5534, 0.0
        %v5567 = vmax.f32 %v5535, 0.0
        %v5568 = vmax.f32 %v5536, 0.0
        %v5569 = vmax.f32 %v5537, 0.0
        %v5570 = vmax.f32 %v5538, 0.0
        %v5571 = vmax.f32 %v5539, 0.0
        %v5572 = vmax.f32 %v5540, 0.0
        %v5573 = vmax.f32 %v5541, 0.0
        %v5574 = vmax.f32 %v5542, 0.0
        %v5575 = vmax.f32 %v5543, 0.0
        %v5576 = vmax.f32 %v5544, 0.0
        %v5577 = vmax.f32 %v5545, 0.0
        %v5578 = vmax.f32 %v5546, 0.0
        %v5579 = vmax.f32 %v5547, 0.0
        %v5580 = vmax.f32 %v5548, 0.0
        %v5581 = vmax.f32 %v5549, 0.0
        %v5582 = vmax.f32 %v5550, 0.0
        %v5583 = vmax.f32 %v5551, 0.0
        %v5584 = vmax.f32 %v5552, 0.0
        %v5585 = vmax.f32 %v5553, 0.0
        %v5586 = vmax.f32 %v5554, 0.0
        %5587 = vst [vmem:[%s163] sm:$0xff] %v5555
        %5588 = vst [vmem:[%s163 + $0x8] sm:$0xff] %v5556
        %5589 = vst [vmem:[%s163 + $0x10] sm:$0xff] %v5557
        %5590 = vst [vmem:[%s163 + $0x18] sm:$0xff] %v5558
        %5591 = vst [vmem:[%s163 + $0x20] sm:$0xff] %v5559
        %5592 = vst [vmem:[%s163 + $0x28] sm:$0xff] %v5560
        %5593 = vst [vmem:[%s163 + $0x30] sm:$0xff] %v5561
        %5594 = vst [vmem:[%s163 + $0x38] sm:$0xff] %v5562
        %5595 = vst [vmem:[%s163 + $0x40] sm:$0xff] %v5563
        %5596 = vst [vmem:[%s163 + $0x48] sm:$0xff] %v5564
        %5597 = vst [vmem:[%s163 + $0x50] sm:$0xff] %v5565
        %5598 = vst [vmem:[%s163 + $0x58] sm:$0xff] %v5566
        %5599 = vst [vmem:[%s163 + $0x60] sm:$0xff] %v5567
        %5600 = vst [vmem:[%s163 + $0x68] sm:$0xff] %v5568
        %5601 = vst [vmem:[%s163 + $0x70] sm:$0xff] %v5569
        %5602 = vst [vmem:[%s163 + $0x78] sm:$0xff] %v5570
        %5603 = vst [vmem:[%s163 + $0x80] sm:$0xff] %v5571
        %5604 = vst [vmem:[%s163 + $0x88] sm:$0xff] %v5572
        %5605 = vst [vmem:[%s163 + $0x90] sm:$0xff] %v5573
        %5606 = vst [vmem:[%s163 + $0x98] sm:$0xff] %v5574
        %5607 = vst [vmem:[%s163 + $0xa0] sm:$0xff] %v5575
        %5608 = vst [vmem:[%s163 + $0xa8] sm:$0xff] %v5576
        %5609 = vst [vmem:[%s163 + $0xb0] sm:$0xff] %v5577
        %5610 = vst [vmem:[%s163 + $0xb8] sm:$0xff] %v5578
        %5611 = vst [vmem:[%s163 + $0xc0] sm:$0xff] %v5579
        %5612 = vst [vmem:[%s163 + $0xc8] sm:$0xff] %v5580
        %5613 = vst [vmem:[%s163 + $0xd0] sm:$0xff] %v5581
        %5614 = vst [vmem:[%s163 + $0xd8] sm:$0xff] %v5582
        %5615 = vst [vmem:[%s163 + $0xe0] sm:$0xff] %v5583
        %5616 = vst [vmem:[%s163 + $0xe8] sm:$0xff] %v5584
        %5617 = vst [vmem:[%s163 + $0xf0] sm:$0xff] %v5585
        %5618 = vst [vmem:[%s163 + $0xf8] sm:$0xff] %v5586
        %s5619 = sand.u32 %s93, 1
        %s5620 = scalar_lea.sflag [#allocation3], %s5619
        %s5621 = sand.u32 %s93, 1
        %s5622 = smul.addr %s5621, 256
        %s5623 = scalar_lea.vmem [#allocation2], %s5622
        // Predicated region
        $region33: #{tpu_custom_call.1} parent=31 // pred_check
          %p5624 = pneg %p103
        $region34: #{tpu_custom_call.1} parent=31 // pred_check_branch
          %5626 = sbr.rel (%p5624) target = $region36
        $region35: #{tpu_custom_call.1} parent=31 // pred_region
          %s5628 = ssub.s32 4096, 4096
          %5629 = vsyncadd %s5620, %s5628
          %s5630 = smul.addr %s17, 32
          %s5631 = smul.addr %s5630, 128
          %s5632 = scalar_lea.hbm %s3, %s5631
          %s5633 = sshll.u32 %s5623, 4
          %s5634 = int_to_ptr.vmem [resolvable:$true] %s5633
          %5639 = dma.vmem_to_hbm [thread:$0]  %s5634, 4096, %s5632, %s5620, 128, 128, 8
        $region36: #{tpu_custom_call.1} parent=31 // pred_fallthru
          _
      $region32: #{tpu_custom_call.1} parent=5 // pred_fallthru
        _
      %p5640 = scmp.le.s32.totalorder 2, %s12
      // Predicated region
      $region37: #{tpu_custom_call.1} parent=5 // pred_check
        %p5641 = pneg %p5640
      $region38: #{tpu_custom_call.1} parent=5 // pred_check_branch
        %5643 = sbr.rel (%p5641) target = $region40
      $region39: #{tpu_custom_call.1} parent=5 // pred_region
        %s5644 = ssub.s32 %s12, 2
        // Predicated region
        $region41: #{tpu_custom_call.1} parent=39 // pred_check
          %p5645 = pneg %p109
        $region42: #{tpu_custom_call.1} parent=39 // pred_check_branch
          %5647 = sbr.rel (%p5645) target = $region44
        $region43: #{tpu_custom_call.1} parent=39 // pred_region
          %s5648 = sand.u32 %s94, 1
          %s5649 = scalar_lea.sflag [#allocation3], %s5648
          %s5650 = sand.u32 %s94, 1
          %s5651 = smul.addr %s5650, 256
          %s5652 = scalar_lea.vmem [#allocation2], %s5651
          %5653 = dma.done %s5649, 4096
        $region44: #{tpu_custom_call.1} parent=39 // pred_fallthru
          _
      $region40: #{tpu_custom_call.1} parent=5 // pred_fallthru
        _
    $region6: #{tpu_custom_call.1} parent=1 // loop_footer
      %s16 = sadd.s32 1, %s12
    $region7: #{tpu_custom_call.1} parent=1 // loop_footer_branch
      %11 = sbr.rel target = $region3
    $region8: #{tpu_custom_call.1} parent=1 // loop_exit
      _
    %5654 = vsyncpa [#allocation3], 1
    %s5655 = scalar_lea.sflag [#allocation3], 1
    %5656 = vsyncpa %s5655, 1

</llo_original>
